<compile_context>
chip_gen: v6e
topology: v6e:2x2x1
jax: 0.10.0
libtpu: 0.0.40
codegen_flags: <defaults>
</compile_context>

<pallas_src>
import functools

import jax
import jax.numpy as jnp
from jax.experimental import pallas as pl
from jax.experimental.pallas import tpu as pltpu


def make_encoder_kernel(seq_len, embed_dim, hidden, layers, vocab):
    """Builds the kernel body (small static loops are unrolled at trace time)."""
    H = hidden

    def kernel(ids_ref, emb_ref, *args):
        # args = [w_ih_0, w_hh_0, bfold_0, b_hh_0, ..., h0, out, h_final]
        ws = args[: 4 * layers]
        h0_ref = args[4 * layers]
        out_ref = args[4 * layers + 1]
        hfin_ref = args[4 * layers + 2]

        # ---- Embedding gather: tiny table is resident in VMEM; one-hot MXU gather
        # replaces seq_len row DMAs (no descriptors, no semaphores, no barrier).
        ids = ids_ref[...]                                             # (seq_len, 1) int32
        col = jax.lax.broadcasted_iota(jnp.int32, (seq_len, vocab), 1)
        onehot = (ids == col).astype(jnp.float32)                      # (seq_len, vocab)
        x0 = jnp.dot(onehot, emb_ref[...],
                     preferred_element_type=jnp.float32)               # (seq_len, embed)

        w_ih = [ws[4 * l + 0][...] for l in range(layers)]
        w_hh = [ws[4 * l + 1][...] for l in range(layers)]
        bfold = [ws[4 * l + 2][...] for l in range(layers)]            # b_ih + [b_hr,b_hz,0]
        b_hn = [ws[4 * l + 3][...][:, 2 * H:3 * H] for l in range(layers)]

        # Layer 0: batched input projection for the whole sequence (one MXU matmul),
        # with the foldable biases already added -> per-step chain only adds b_hn.
        gx0_all = jnp.dot(x0, w_ih[0], preferred_element_type=jnp.float32) + bfold[0]

        h = [h0_ref[l:l + 1, :] for l in range(layers)]                # per-layer (1, H)
        gx_pending = {}                                                # (layer, t) -> gx

        def cell(gx, h_prev, l):
            gh = jnp.dot(h_prev, w_hh[l], preferred_element_type=jnp.float32)
            # fused r,z sigmoid on the contiguous (1, 2H) slice
            rz = jax.nn.sigmoid(gx[:, 0:2 * H] + gh[:, 0:2 * H])
            r = rz[:, 0:H]
            z = rz[:, H:2 * H]
            n = jnp.tanh(gx[:, 2 * H:3 * H] + r * (gh[:, 2 * H:3 * H] + b_hn[l]))
            return n + z * (h_prev - n)                                # == (1-z)*n + z*h

        # ---- Wavefront over (layer, time): step s runs layer l at t = s - l.
        for s in range(seq_len + layers - 1):
            for l in range(layers):
                t = s - l
                if t < 0 or t >= seq_len:
                    continue
                gx = gx0_all[t:t + 1, :] if l == 0 else gx_pending.pop((l, t))
                h_new = cell(gx, h[l], l)
                h[l] = h_new
                if l == layers - 1:
                    out_ref[t:t + 1, :] = h_new                        # per-step store
                else:
                    # Next layer's input projection for this timestep; consumed at
                    # wavefront step s + 1, so it sits off the critical path.
                    gx_pending[(l + 1, t)] = (
                        jnp.dot(h_new, w_ih[l + 1],
                                preferred_element_type=jnp.float32) + bfold[l + 1])
                if t == seq_len - 1:
                    hfin_ref[l:l + 1, :] = h_new                       # per-layer store

    return kernel


def encoder_forward(ids, h0, params, *, seq_len, embed_dim, hidden, layers):
    """Mirrors Encoder.forward(inputs, hidden) of the PyTorch module."""
    H = hidden
    vocab = params["emb"].shape[0]
    # Pad gate columns 3H -> multiple of 128 lanes (padded columns never consumed).
    gate_w = ((3 * H + 127) // 128) * 128

    def pad_cols(a):
        return jnp.pad(a, ((0, 0), (0, gate_w - a.shape[-1])))

    flat = []
    for l in range(layers):
        b_ih = params[f"b_ih_{l}"]
        b_hh = params[f"b_hh_{l}"]
        # Fold b_ih + b_hh[:, :2H] into the precomputed input projection bias;
        # b_hn must stay inside r*(W_hn h + b_hn) to match torch.nn.GRU.
        bfold = b_ih + jnp.concatenate(
            [b_hh[:, :2 * H], jnp.zeros((1, H), b_hh.dtype)], axis=1)
        flat += [pad_cols(params[f"w_ih_{l}"]), pad_cols(params[f"w_hh_{l}"]),
                 pad_cols(bfold), pad_cols(b_hh)]
    h0_2d = h0.reshape(layers, hidden)
    ids_2d = ids.astype(jnp.int32).reshape(seq_len, 1)
    emb = params["emb"].astype(jnp.float32)
    # TODO(synk): for v7x at production hidden sizes, cast weights to bf16 here (MXU
    # accumulates in f32) and stream per-layer weights from HBM instead of holding all.

    vmem = pl.BlockSpec(memory_space=pltpu.MemorySpace.VMEM)
    out2d, hfin = pl.pallas_call(
        make_encoder_kernel(seq_len, embed_dim, hidden, layers, vocab),
        out_shape=(jax.ShapeDtypeStruct((seq_len, hidden), jnp.float32),
                   jax.ShapeDtypeStruct((layers, hidden), jnp.float32)),
        in_specs=[vmem] * (2 + 4 * layers + 1),
        out_specs=(vmem, vmem),
        compiler_params=pltpu.CompilerParams(vmem_limit_bytes=32 * 1024 * 1024),
    )(ids_2d, emb, *flat, h0_2d)

    # Re-insert the batch=1 axis to match torch GRU output conventions.
    return out2d.reshape(seq_len, 1, hidden), hfin.reshape(layers, 1, hidden)


def reference_forward(ids, h0, params, *, seq_len, embed_dim, hidden, layers):
    """Pure-JAX reference (matches torch.nn.GRU math)."""
    H = hidden
    x = params["emb"][ids]                                  # (seq, embed)
    h0 = h0.reshape(layers, hidden)
    hs = []
    inp = x
    for l in range(layers):
        w_ih, w_hh = params[f"w_ih_{l}"], params[f"w_hh_{l}"]
        b_ih, b_hh = params[f"b_ih_{l}"], params[f"b_hh_{l}"]
        h = h0[l:l + 1]
        outs = []
        for t in range(seq_len):
            xt = inp[t:t + 1]
            gx = xt @ w_ih + b_ih
            gh = h @ w_hh + b_hh
            r = jax.nn.sigmoid(gx[:, 0:H] + gh[:, 0:H])
            z = jax.nn.sigmoid(gx[:, H:2 * H] + gh[:, H:2 * H])
            n = jnp.tanh(gx[:, 2 * H:3 * H] + r * gh[:, 2 * H:3 * H])
            h = (1.0 - z) * n + z * h
            outs.append(h)
        inp = jnp.concatenate(outs, axis=0)
        hs.append(h)
    return inp.reshape(seq_len, 1, hidden), jnp.concatenate(hs, 0).reshape(layers, 1, hidden)


def init_params(key, *, word_num, embed_dim, hidden, layers):
    """Deterministic init (uniform(-1/sqrt(H), 1/sqrt(H)), like torch.nn.GRU)."""
    params = {}
    k_emb, key = jax.random.split(key)
    params["emb"] = jax.random.normal(k_emb, (word_num, embed_dim), jnp.float32)
    bound = 1.0 / jnp.sqrt(hidden)
    for l in range(layers):
        in_dim = embed_dim if l == 0 else hidden
        k1, k2, k3, k4, key = jax.random.split(key, 5)
        params[f"w_ih_{l}"] = jax.random.uniform(k1, (in_dim, 3 * hidden), jnp.float32,
                                                 -bound, bound)
        params[f"w_hh_{l}"] = jax.random.uniform(k2, (hidden, 3 * hidden), jnp.float32,
                                                 -bound, bound)
        params[f"b_ih_{l}"] = jax.random.uniform(k3, (1, 3 * hidden), jnp.float32,
                                                 -bound, bound)
        params[f"b_hh_{l}"] = jax.random.uniform(k4, (1, 3 * hidden), jnp.float32,
                                                 -bound, bound)
    return params


if __name__ == "__main__":
    # Small config consistent with the module's forward:
    word_num = 16        # vocab size (self.input_size)
    embed_dim = 32       # config.embed_dim
    hidden = 32          # config.hidden_size
    layers = 2           # config.hidden_layers
    seq_len = 8

    key = jax.random.PRNGKey(0)
    k_ids, k_h0, k_params = jax.random.split(key, 3)

    ids = jax.random.randint(k_ids, (seq_len,), 0, word_num, dtype=jnp.int32)
    params = init_params(k_params, word_num=word_num, embed_dim=embed_dim,
                         hidden=hidden, layers=layers)
    # forward() accepts an arbitrary hidden state; init_hidden() would give zeros.
    h0 = 0.1 * jax.random.normal(k_h0, (layers, 1, hidden), jnp.float32)

    fwd = functools.partial(encoder_forward, seq_len=seq_len, embed_dim=embed_dim,
                            hidden=hidden, layers=layers)
    out, h_final = fwd(ids, h0, params)
    out = jax.block_until_ready(out)
    h_final = jax.block_until_ready(h_final)

    out_ref, h_ref = reference_forward(ids, h0, params, seq_len=seq_len,
                                       embed_dim=embed_dim, hidden=hidden, layers=layers)
    assert out.shape == (seq_len, 1, hidden) and h_final.shape == (layers, 1, hidden)
    assert jnp.allclose(out, out_ref, atol=1e-5), "output mismatch vs reference"
    assert jnp.allclose(h_final, h_ref, atol=1e-5), "hidden mismatch vs reference"

    print("KERNEL_OK")
</pallas_src>

<mosaic_0001>
module attributes {stable_mosaic.version = 11 : i64} {
  func.func @kernel(%arg0: memref<8x1xi32, #tpu.memory_space<vmem>>, %arg1: memref<16x32xf32, #tpu.memory_space<vmem>>, %arg2: memref<32x128xf32, #tpu.memory_space<vmem>>, %arg3: memref<32x128xf32, #tpu.memory_space<vmem>>, %arg4: memref<1x128xf32, #tpu.memory_space<vmem>>, %arg5: memref<1x128xf32, #tpu.memory_space<vmem>>, %arg6: memref<32x128xf32, #tpu.memory_space<vmem>>, %arg7: memref<32x128xf32, #tpu.memory_space<vmem>>, %arg8: memref<1x128xf32, #tpu.memory_space<vmem>>, %arg9: memref<1x128xf32, #tpu.memory_space<vmem>>, %arg10: memref<2x32xf32, #tpu.memory_space<vmem>>, %arg11: memref<8x32xf32, #tpu.memory_space<vmem>>, %arg12: memref<2x32xf32, #tpu.memory_space<vmem>>) attributes {dimension_semantics = [], scalar_prefetch = 0 : i64, scratch_operands = 0 : i64, tpu.core_type = #tpu.core_type<tc>} {
    %c0 = arith.constant 0 : index
    %c0_0 = arith.constant 0 : index
    %0 = vector.load %arg0[%c0, %c0_0] : memref<8x1xi32, #tpu.memory_space<vmem>>, vector<8x1xi32>
    %1 = tpu.iota {dimensions = array<i32: 1>} : vector<8x16xi32>
    %2 = vector.broadcast %0 : vector<8x1xi32> to vector<8x16xi32>
    %3 = arith.cmpi eq, %2, %1 : vector<8x16xi32>
    %4 = arith.extui %3 : vector<8x16xi1> to vector<8x16xi32>
    %5 = arith.sitofp %4 : vector<8x16xi32> to vector<8x16xf32>
    %c0_1 = arith.constant 0 : index
    %c0_2 = arith.constant 0 : index
    %6 = vector.load %arg1[%c0_1, %c0_2] : memref<16x32xf32, #tpu.memory_space<vmem>>, vector<16x32xf32>
    %cst = arith.constant dense<0.000000e+00> : vector<8x32xf32>
    %7 = tpu.matmul %5, %6, %cst {dimension_numbers = #tpu.dot_dimension_numbers<[1], [0], [0], [1], [0, 0, 1, 1], [], []>} : vector<8x16xf32>, vector<16x32xf32>, vector<8x32xf32> -> vector<8x32xf32>
    %c0_3 = arith.constant 0 : index
    %c0_4 = arith.constant 0 : index
    %8 = vector.load %arg2[%c0_3, %c0_4] : memref<32x128xf32, #tpu.memory_space<vmem>>, vector<32x128xf32>
    %c0_5 = arith.constant 0 : index
    %c0_6 = arith.constant 0 : index
    %9 = vector.load %arg6[%c0_5, %c0_6] : memref<32x128xf32, #tpu.memory_space<vmem>>, vector<32x128xf32>
    %c0_7 = arith.constant 0 : index
    %c0_8 = arith.constant 0 : index
    %10 = vector.load %arg3[%c0_7, %c0_8] : memref<32x128xf32, #tpu.memory_space<vmem>>, vector<32x128xf32>
    %c0_9 = arith.constant 0 : index
    %c0_10 = arith.constant 0 : index
    %11 = vector.load %arg7[%c0_9, %c0_10] : memref<32x128xf32, #tpu.memory_space<vmem>>, vector<32x128xf32>
    %c0_11 = arith.constant 0 : index
    %c0_12 = arith.constant 0 : index
    %12 = vector.load %arg4[%c0_11, %c0_12] : memref<1x128xf32, #tpu.memory_space<vmem>>, vector<1x128xf32>
    %c0_13 = arith.constant 0 : index
    %c0_14 = arith.constant 0 : index
    %13 = vector.load %arg8[%c0_13, %c0_14] : memref<1x128xf32, #tpu.memory_space<vmem>>, vector<1x128xf32>
    %c0_15 = arith.constant 0 : index
    %c0_16 = arith.constant 0 : index
    %14 = vector.load %arg5[%c0_15, %c0_16] : memref<1x128xf32, #tpu.memory_space<vmem>>, vector<1x128xf32>
    %15 = vector.extract_strided_slice %14 {offsets = [0, 64], sizes = [1, 32], strides = [1, 1]} : vector<1x128xf32> to vector<1x32xf32>
    %c0_17 = arith.constant 0 : index
    %c0_18 = arith.constant 0 : index
    %16 = vector.load %arg9[%c0_17, %c0_18] : memref<1x128xf32, #tpu.memory_space<vmem>>, vector<1x128xf32>
    %17 = vector.extract_strided_slice %16 {offsets = [0, 64], sizes = [1, 32], strides = [1, 1]} : vector<1x128xf32> to vector<1x32xf32>
    %cst_19 = arith.constant dense<0.000000e+00> : vector<8x128xf32>
    %18 = tpu.matmul %7, %8, %cst_19 {dimension_numbers = #tpu.dot_dimension_numbers<[1], [0], [0], [1], [0, 0, 1, 1], [], []>} : vector<8x32xf32>, vector<32x128xf32>, vector<8x128xf32> -> vector<8x128xf32>
    %19 = vector.broadcast %12 : vector<1x128xf32> to vector<8x128xf32>
    %20 = arith.addf %18, %19 : vector<8x128xf32>
    %c0_20 = arith.constant 0 : index
    %c0_21 = arith.constant 0 : index
    %21 = vector.load %arg10[%c0_20, %c0_21] : memref<2x32xf32, #tpu.memory_space<vmem>>, vector<1x32xf32>
    %c1 = arith.constant 1 : index
    %c0_22 = arith.constant 0 : index
    %22 = vector.load %arg10[%c1, %c0_22] : memref<2x32xf32, #tpu.memory_space<vmem>>, vector<1x32xf32>
    %23 = vector.extract_strided_slice %20 {offsets = [0, 0], sizes = [1, 128], strides = [1, 1]} : vector<8x128xf32> to vector<1x128xf32>
    %cst_23 = arith.constant dense<0.000000e+00> : vector<1x128xf32>
    %24 = tpu.matmul %21, %10, %cst_23 {dimension_numbers = #tpu.dot_dimension_numbers<[1], [0], [0], [1], [0, 0, 1, 1], [], []>} : vector<1x32xf32>, vector<32x128xf32>, vector<1x128xf32> -> vector<1x128xf32>
    %25 = vector.extract_strided_slice %23 {offsets = [0, 0], sizes = [1, 64], strides = [1, 1]} : vector<1x128xf32> to vector<1x64xf32>
    %26 = vector.extract_strided_slice %24 {offsets = [0, 0], sizes = [1, 64], strides = [1, 1]} : vector<1x128xf32> to vector<1x64xf32>
    %27 = arith.addf %25, %26 : vector<1x64xf32>
    %28 = arith.negf %27 : vector<1x64xf32>
    %29 = math.exp %28 : vector<1x64xf32>
    %cst_24 = arith.constant 1.000000e+00 : f32
    %30 = vector.broadcast %cst_24 : f32 to vector<1x64xf32>
    %31 = arith.addf %30, %29 : vector<1x64xf32>
    %32 = arith.divf %30, %31 : vector<1x64xf32>
    %33 = vector.extract_strided_slice %32 {offsets = [0, 0], sizes = [1, 32], strides = [1, 1]} : vector<1x64xf32> to vector<1x32xf32>
    %34 = vector.extract_strided_slice %32 {offsets = [0, 32], sizes = [1, 32], strides = [1, 1]} : vector<1x64xf32> to vector<1x32xf32>
    %35 = vector.extract_strided_slice %23 {offsets = [0, 64], sizes = [1, 32], strides = [1, 1]} : vector<1x128xf32> to vector<1x32xf32>
    %36 = vector.extract_strided_slice %24 {offsets = [0, 64], sizes = [1, 32], strides = [1, 1]} : vector<1x128xf32> to vector<1x32xf32>
    %37 = arith.addf %36, %15 : vector<1x32xf32>
    %38 = arith.mulf %33, %37 : vector<1x32xf32>
    %39 = arith.addf %35, %38 : vector<1x32xf32>
    %40 = math.tanh %39 : vector<1x32xf32>
    %41 = arith.subf %21, %40 : vector<1x32xf32>
    %42 = arith.mulf %34, %41 : vector<1x32xf32>
    %43 = arith.addf %40, %42 : vector<1x32xf32>
    %cst_25 = arith.constant dense<0.000000e+00> : vector<1x128xf32>
    %44 = tpu.matmul %43, %9, %cst_25 {dimension_numbers = #tpu.dot_dimension_numbers<[1], [0], [0], [1], [0, 0, 1, 1], [], []>} : vector<1x32xf32>, vector<32x128xf32>, vector<1x128xf32> -> vector<1x128xf32>
    %45 = arith.addf %44, %13 : vector<1x128xf32>
    %46 = vector.extract_strided_slice %20 {offsets = [1, 0], sizes = [1, 128], strides = [1, 1]} : vector<8x128xf32> to vector<1x128xf32>
    %cst_26 = arith.constant dense<0.000000e+00> : vector<1x128xf32>
    %47 = tpu.matmul %43, %10, %cst_26 {dimension_numbers = #tpu.dot_dimension_numbers<[1], [0], [0], [1], [0, 0, 1, 1], [], []>} : vector<1x32xf32>, vector<32x128xf32>, vector<1x128xf32> -> vector<1x128xf32>
    %48 = vector.extract_strided_slice %46 {offsets = [0, 0], sizes = [1, 64], strides = [1, 1]} : vector<1x128xf32> to vector<1x64xf32>
    %49 = vector.extract_strided_slice %47 {offsets = [0, 0], sizes = [1, 64], strides = [1, 1]} : vector<1x128xf32> to vector<1x64xf32>
    %50 = arith.addf %48, %49 : vector<1x64xf32>
    %51 = arith.negf %50 : vector<1x64xf32>
    %52 = math.exp %51 : vector<1x64xf32>
    %cst_27 = arith.constant 1.000000e+00 : f32
    %53 = vector.broadcast %cst_27 : f32 to vector<1x64xf32>
    %54 = arith.addf %53, %52 : vector<1x64xf32>
    %55 = arith.divf %53, %54 : vector<1x64xf32>
    %56 = vector.extract_strided_slice %55 {offsets = [0, 0], sizes = [1, 32], strides = [1, 1]} : vector<1x64xf32> to vector<1x32xf32>
    %57 = vector.extract_strided_slice %55 {offsets = [0, 32], sizes = [1, 32], strides = [1, 1]} : vector<1x64xf32> to vector<1x32xf32>
    %58 = vector.extract_strided_slice %46 {offsets = [0, 64], sizes = [1, 32], strides = [1, 1]} : vector<1x128xf32> to vector<1x32xf32>
    %59 = vector.extract_strided_slice %47 {offsets = [0, 64], sizes = [1, 32], strides = [1, 1]} : vector<1x128xf32> to vector<1x32xf32>
    %60 = arith.addf %59, %15 : vector<1x32xf32>
    %61 = arith.mulf %56, %60 : vector<1x32xf32>
    %62 = arith.addf %58, %61 : vector<1x32xf32>
    %63 = math.tanh %62 : vector<1x32xf32>
    %64 = arith.subf %43, %63 : vector<1x32xf32>
    %65 = arith.mulf %57, %64 : vector<1x32xf32>
    %66 = arith.addf %63, %65 : vector<1x32xf32>
    %cst_28 = arith.constant dense<0.000000e+00> : vector<1x128xf32>
    %67 = tpu.matmul %66, %9, %cst_28 {dimension_numbers = #tpu.dot_dimension_numbers<[1], [0], [0], [1], [0, 0, 1, 1], [], []>} : vector<1x32xf32>, vector<32x128xf32>, vector<1x128xf32> -> vector<1x128xf32>
    %68 = arith.addf %67, %13 : vector<1x128xf32>
    %cst_29 = arith.constant dense<0.000000e+00> : vector<1x128xf32>
    %69 = tpu.matmul %22, %11, %cst_29 {dimension_numbers = #tpu.dot_dimension_numbers<[1], [0], [0], [1], [0, 0, 1, 1], [], []>} : vector<1x32xf32>, vector<32x128xf32>, vector<1x128xf32> -> vector<1x128xf32>
    %70 = vector.extract_strided_slice %45 {offsets = [0, 0], sizes = [1, 64], strides = [1, 1]} : vector<1x128xf32> to vector<1x64xf32>
    %71 = vector.extract_strided_slice %69 {offsets = [0, 0], sizes = [1, 64], strides = [1, 1]} : vector<1x128xf32> to vector<1x64xf32>
    %72 = arith.addf %70, %71 : vector<1x64xf32>
    %73 = arith.negf %72 : vector<1x64xf32>
    %74 = math.exp %73 : vector<1x64xf32>
    %cst_30 = arith.constant 1.000000e+00 : f32
    %75 = vector.broadcast %cst_30 : f32 to vector<1x64xf32>
    %76 = arith.addf %75, %74 : vector<1x64xf32>
    %77 = arith.divf %75, %76 : vector<1x64xf32>
    %78 = vector.extract_strided_slice %77 {offsets = [0, 0], sizes = [1, 32], strides = [1, 1]} : vector<1x64xf32> to vector<1x32xf32>
    %79 = vector.extract_strided_slice %77 {offsets = [0, 32], sizes = [1, 32], strides = [1, 1]} : vector<1x64xf32> to vector<1x32xf32>
    %80 = vector.extract_strided_slice %45 {offsets = [0, 64], sizes = [1, 32], strides = [1, 1]} : vector<1x128xf32> to vector<1x32xf32>
    %81 = vector.extract_strided_slice %69 {offsets = [0, 64], sizes = [1, 32], strides = [1, 1]} : vector<1x128xf32> to vector<1x32xf32>
    %82 = arith.addf %81, %17 : vector<1x32xf32>
    %83 = arith.mulf %78, %82 : vector<1x32xf32>
    %84 = arith.addf %80, %83 : vector<1x32xf32>
    %85 = math.tanh %84 : vector<1x32xf32>
    %86 = arith.subf %22, %85 : vector<1x32xf32>
    %87 = arith.mulf %79, %86 : vector<1x32xf32>
    %88 = arith.addf %85, %87 : vector<1x32xf32>
    %c0_31 = arith.constant 0 : index
    %c0_32 = arith.constant 0 : index
    %89 = vector.load %arg11[%c0_31, %c0_32] : memref<8x32xf32, #tpu.memory_space<vmem>>, vector<1x32xf32>
    tpu.vector_store %arg11[%c0_31, %c0_32], %88 {strides = array<i32>} : memref<8x32xf32, #tpu.memory_space<vmem>>, vector<1x32xf32>,
    %90 = vector.extract_strided_slice %20 {offsets = [2, 0], sizes = [1, 128], strides = [1, 1]} : vector<8x128xf32> to vector<1x128xf32>
    %cst_33 = arith.constant dense<0.000000e+00> : vector<1x128xf32>
    %91 = tpu.matmul %66, %10, %cst_33 {dimension_numbers = #tpu.dot_dimension_numbers<[1], [0], [0], [1], [0, 0, 1, 1], [], []>} : vector<1x32xf32>, vector<32x128xf32>, vector<1x128xf32> -> vector<1x128xf32>
    %92 = vector.extract_strided_slice %90 {offsets = [0, 0], sizes = [1, 64], strides = [1, 1]} : vector<1x128xf32> to vector<1x64xf32>
    %93 = vector.extract_strided_slice %91 {offsets = [0, 0], sizes = [1, 64], strides = [1, 1]} : vector<1x128xf32> to vector<1x64xf32>
    %94 = arith.addf %92, %93 : vector<1x64xf32>
    %95 = arith.negf %94 : vector<1x64xf32>
    %96 = math.exp %95 : vector<1x64xf32>
    %cst_34 = arith.constant 1.000000e+00 : f32
    %97 = vector.broadcast %cst_34 : f32 to vector<1x64xf32>
    %98 = arith.addf %97, %96 : vector<1x64xf32>
    %99 = arith.divf %97, %98 : vector<1x64xf32>
    %100 = vector.extract_strided_slice %99 {offsets = [0, 0], sizes = [1, 32], strides = [1, 1]} : vector<1x64xf32> to vector<1x32xf32>
    %101 = vector.extract_strided_slice %99 {offsets = [0, 32], sizes = [1, 32], strides = [1, 1]} : vector<1x64xf32> to vector<1x32xf32>
    %102 = vector.extract_strided_slice %90 {offsets = [0, 64], sizes = [1, 32], strides = [1, 1]} : vector<1x128xf32> to vector<1x32xf32>
    %103 = vector.extract_strided_slice %91 {offsets = [0, 64], sizes = [1, 32], strides = [1, 1]} : vector<1x128xf32> to vector<1x32xf32>
    %104 = arith.addf %103, %15 : vector<1x32xf32>
    %105 = arith.mulf %100, %104 : vector<1x32xf32>
    %106 = arith.addf %102, %105 : vector<1x32xf32>
    %107 = math.tanh %106 : vector<1x32xf32>
    %108 = arith.subf %66, %107 : vector<1x32xf32>
    %109 = arith.mulf %101, %108 : vector<1x32xf32>
    %110 = arith.addf %107, %109 : vector<1x32xf32>
    %cst_35 = arith.constant dense<0.000000e+00> : vector<1x128xf32>
    %111 = tpu.matmul %110, %9, %cst_35 {dimension_numbers = #tpu.dot_dimension_numbers<[1], [0], [0], [1], [0, 0, 1, 1], [], []>} : vector<1x32xf32>, vector<32x128xf32>, vector<1x128xf32> -> vector<1x128xf32>
    %112 = arith.addf %111, %13 : vector<1x128xf32>
    %cst_36 = arith.constant dense<0.000000e+00> : vector<1x128xf32>
    %113 = tpu.matmul %88, %11, %cst_36 {dimension_numbers = #tpu.dot_dimension_numbers<[1], [0], [0], [1], [0, 0, 1, 1], [], []>} : vector<1x32xf32>, vector<32x128xf32>, vector<1x128xf32> -> vector<1x128xf32>
    %114 = vector.extract_strided_slice %68 {offsets = [0, 0], sizes = [1, 64], strides = [1, 1]} : vector<1x128xf32> to vector<1x64xf32>
    %115 = vector.extract_strided_slice %113 {offsets = [0, 0], sizes = [1, 64], strides = [1, 1]} : vector<1x128xf32> to vector<1x64xf32>
    %116 = arith.addf %114, %115 : vector<1x64xf32>
    %117 = arith.negf %116 : vector<1x64xf32>
    %118 = math.exp %117 : vector<1x64xf32>
    %cst_37 = arith.constant 1.000000e+00 : f32
    %119 = vector.broadcast %cst_37 : f32 to vector<1x64xf32>
    %120 = arith.addf %119, %118 : vector<1x64xf32>
    %121 = arith.divf %119, %120 : vector<1x64xf32>
    %122 = vector.extract_strided_slice %121 {offsets = [0, 0], sizes = [1, 32], strides = [1, 1]} : vector<1x64xf32> to vector<1x32xf32>
    %123 = vector.extract_strided_slice %121 {offsets = [0, 32], sizes = [1, 32], strides = [1, 1]} : vector<1x64xf32> to vector<1x32xf32>
    %124 = vector.extract_strided_slice %68 {offsets = [0, 64], sizes = [1, 32], strides = [1, 1]} : vector<1x128xf32> to vector<1x32xf32>
    %125 = vector.extract_strided_slice %113 {offsets = [0, 64], sizes = [1, 32], strides = [1, 1]} : vector<1x128xf32> to vector<1x32xf32>
    %126 = arith.addf %125, %17 : vector<1x32xf32>
    %127 = arith.mulf %122, %126 : vector<1x32xf32>
    %128 = arith.addf %124, %127 : vector<1x32xf32>
    %129 = math.tanh %128 : vector<1x32xf32>
    %130 = arith.subf %88, %129 : vector<1x32xf32>
    %131 = arith.mulf %123, %130 : vector<1x32xf32>
    %132 = arith.addf %129, %131 : vector<1x32xf32>
    %c1_38 = arith.constant 1 : index
    %c0_39 = arith.constant 0 : index
    %133 = vector.load %arg11[%c1_38, %c0_39] : memref<8x32xf32, #tpu.memory_space<vmem>>, vector<1x32xf32>
    tpu.vector_store %arg11[%c1_38, %c0_39], %132 {strides = array<i32>} : memref<8x32xf32, #tpu.memory_space<vmem>>, vector<1x32xf32>,
    %134 = vector.extract_strided_slice %20 {offsets = [3, 0], sizes = [1, 128], strides = [1, 1]} : vector<8x128xf32> to vector<1x128xf32>
    %cst_40 = arith.constant dense<0.000000e+00> : vector<1x128xf32>
    %135 = tpu.matmul %110, %10, %cst_40 {dimension_numbers = #tpu.dot_dimension_numbers<[1], [0], [0], [1], [0, 0, 1, 1], [], []>} : vector<1x32xf32>, vector<32x128xf32>, vector<1x128xf32> -> vector<1x128xf32>
    %136 = vector.extract_strided_slice %134 {offsets = [0, 0], sizes = [1, 64], strides = [1, 1]} : vector<1x128xf32> to vector<1x64xf32>
    %137 = vector.extract_strided_slice %135 {offsets = [0, 0], sizes = [1, 64], strides = [1, 1]} : vector<1x128xf32> to vector<1x64xf32>
    %138 = arith.addf %136, %137 : vector<1x64xf32>
    %139 = arith.negf %138 : vector<1x64xf32>
    %140 = math.exp %139 : vector<1x64xf32>
    %cst_41 = arith.constant 1.000000e+00 : f32
    %141 = vector.broadcast %cst_41 : f32 to vector<1x64xf32>
    %142 = arith.addf %141, %140 : vector<1x64xf32>
    %143 = arith.divf %141, %142 : vector<1x64xf32>
    %144 = vector.extract_strided_slice %143 {offsets = [0, 0], sizes = [1, 32], strides = [1, 1]} : vector<1x64xf32> to vector<1x32xf32>
    %145 = vector.extract_strided_slice %143 {offsets = [0, 32], sizes = [1, 32], strides = [1, 1]} : vector<1x64xf32> to vector<1x32xf32>
    %146 = vector.extract_strided_slice %134 {offsets = [0, 64], sizes = [1, 32], strides = [1, 1]} : vector<1x128xf32> to vector<1x32xf32>
    %147 = vector.extract_strided_slice %135 {offsets = [0, 64], sizes = [1, 32], strides = [1, 1]} : vector<1x128xf32> to vector<1x32xf32>
    %148 = arith.addf %147, %15 : vector<1x32xf32>
    %149 = arith.mulf %144, %148 : vector<1x32xf32>
    %150 = arith.addf %146, %149 : vector<1x32xf32>
    %151 = math.tanh %150 : vector<1x32xf32>
    %152 = arith.subf %110, %151 : vector<1x32xf32>
    %153 = arith.mulf %145, %152 : vector<1x32xf32>
    %154 = arith.addf %151, %153 : vector<1x32xf32>
    %cst_42 = arith.constant dense<0.000000e+00> : vector<1x128xf32>
    %155 = tpu.matmul %154, %9, %cst_42 {dimension_numbers = #tpu.dot_dimension_numbers<[1], [0], [0], [1], [0, 0, 1, 1], [], []>} : vector<1x32xf32>, vector<32x128xf32>, vector<1x128xf32> -> vector<1x128xf32>
    %156 = arith.addf %155, %13 : vector<1x128xf32>
    %cst_43 = arith.constant dense<0.000000e+00> : vector<1x128xf32>
    %157 = tpu.matmul %132, %11, %cst_43 {dimension_numbers = #tpu.dot_dimension_numbers<[1], [0], [0], [1], [0, 0, 1, 1], [], []>} : vector<1x32xf32>, vector<32x128xf32>, vector<1x128xf32> -> vector<1x128xf32>
    %158 = vector.extract_strided_slice %112 {offsets = [0, 0], sizes = [1, 64], strides = [1, 1]} : vector<1x128xf32> to vector<1x64xf32>
    %159 = vector.extract_strided_slice %157 {offsets = [0, 0], sizes = [1, 64], strides = [1, 1]} : vector<1x128xf32> to vector<1x64xf32>
    %160 = arith.addf %158, %159 : vector<1x64xf32>
    %161 = arith.negf %160 : vector<1x64xf32>
    %162 = math.exp %161 : vector<1x64xf32>
    %cst_44 = arith.constant 1.000000e+00 : f32
    %163 = vector.broadcast %cst_44 : f32 to vector<1x64xf32>
    %164 = arith.addf %163, %162 : vector<1x64xf32>
    %165 = arith.divf %163, %164 : vector<1x64xf32>
    %166 = vector.extract_strided_slice %165 {offsets = [0, 0], sizes = [1, 32], strides = [1, 1]} : vector<1x64xf32> to vector<1x32xf32>
    %167 = vector.extract_strided_slice %165 {offsets = [0, 32], sizes = [1, 32], strides = [1, 1]} : vector<1x64xf32> to vector<1x32xf32>
    %168 = vector.extract_strided_slice %112 {offsets = [0, 64], sizes = [1, 32], strides = [1, 1]} : vector<1x128xf32> to vector<1x32xf32>
    %169 = vector.extract_strided_slice %157 {offsets = [0, 64], sizes = [1, 32], strides = [1, 1]} : vector<1x128xf32> to vector<1x32xf32>
    %170 = arith.addf %169, %17 : vector<1x32xf32>
    %171 = arith.mulf %166, %170 : vector<1x32xf32>
    %172 = arith.addf %168, %171 : vector<1x32xf32>
    %173 = math.tanh %172 : vector<1x32xf32>
    %174 = arith.subf %132, %173 : vector<1x32xf32>
    %175 = arith.mulf %167, %174 : vector<1x32xf32>
    %176 = arith.addf %173, %175 : vector<1x32xf32>
    %c2 = arith.constant 2 : index
    %c0_45 = arith.constant 0 : index
    %177 = vector.load %arg11[%c2, %c0_45] : memref<8x32xf32, #tpu.memory_space<vmem>>, vector<1x32xf32>
    tpu.vector_store %arg11[%c2, %c0_45], %176 {strides = array<i32>} : memref<8x32xf32, #tpu.memory_space<vmem>>, vector<1x32xf32>,
    %178 = vector.extract_strided_slice %20 {offsets = [4, 0], sizes = [1, 128], strides = [1, 1]} : vector<8x128xf32> to vector<1x128xf32>
    %cst_46 = arith.constant dense<0.000000e+00> : vector<1x128xf32>
    %179 = tpu.matmul %154, %10, %cst_46 {dimension_numbers = #tpu.dot_dimension_numbers<[1], [0], [0], [1], [0, 0, 1, 1], [], []>} : vector<1x32xf32>, vector<32x128xf32>, vector<1x128xf32> -> vector<1x128xf32>
    %180 = vector.extract_strided_slice %178 {offsets = [0, 0], sizes = [1, 64], strides = [1, 1]} : vector<1x128xf32> to vector<1x64xf32>
    %181 = vector.extract_strided_slice %179 {offsets = [0, 0], sizes = [1, 64], strides = [1, 1]} : vector<1x128xf32> to vector<1x64xf32>
    %182 = arith.addf %180, %181 : vector<1x64xf32>
    %183 = arith.negf %182 : vector<1x64xf32>
    %184 = math.exp %183 : vector<1x64xf32>
    %cst_47 = arith.constant 1.000000e+00 : f32
    %185 = vector.broadcast %cst_47 : f32 to vector<1x64xf32>
    %186 = arith.addf %185, %184 : vector<1x64xf32>
    %187 = arith.divf %185, %186 : vector<1x64xf32>
    %188 = vector.extract_strided_slice %187 {offsets = [0, 0], sizes = [1, 32], strides = [1, 1]} : vector<1x64xf32> to vector<1x32xf32>
    %189 = vector.extract_strided_slice %187 {offsets = [0, 32], sizes = [1, 32], strides = [1, 1]} : vector<1x64xf32> to vector<1x32xf32>
    %190 = vector.extract_strided_slice %178 {offsets = [0, 64], sizes = [1, 32], strides = [1, 1]} : vector<1x128xf32> to vector<1x32xf32>
    %191 = vector.extract_strided_slice %179 {offsets = [0, 64], sizes = [1, 32], strides = [1, 1]} : vector<1x128xf32> to vector<1x32xf32>
    %192 = arith.addf %191, %15 : vector<1x32xf32>
    %193 = arith.mulf %188, %192 : vector<1x32xf32>
    %194 = arith.addf %190, %193 : vector<1x32xf32>
    %195 = math.tanh %194 : vector<1x32xf32>
    %196 = arith.subf %154, %195 : vector<1x32xf32>
    %197 = arith.mulf %189, %196 : vector<1x32xf32>
    %198 = arith.addf %195, %197 : vector<1x32xf32>
    %cst_48 = arith.constant dense<0.000000e+00> : vector<1x128xf32>
    %199 = tpu.matmul %198, %9, %cst_48 {dimension_numbers = #tpu.dot_dimension_numbers<[1], [0], [0], [1], [0, 0, 1, 1], [], []>} : vector<1x32xf32>, vector<32x128xf32>, vector<1x128xf32> -> vector<1x128xf32>
    %200 = arith.addf %199, %13 : vector<1x128xf32>
    %cst_49 = arith.constant dense<0.000000e+00> : vector<1x128xf32>
    %201 = tpu.matmul %176, %11, %cst_49 {dimension_numbers = #tpu.dot_dimension_numbers<[1], [0], [0], [1], [0, 0, 1, 1], [], []>} : vector<1x32xf32>, vector<32x128xf32>, vector<1x128xf32> -> vector<1x128xf32>
    %202 = vector.extract_strided_slice %156 {offsets = [0, 0], sizes = [1, 64], strides = [1, 1]} : vector<1x128xf32> to vector<1x64xf32>
    %203 = vector.extract_strided_slice %201 {offsets = [0, 0], sizes = [1, 64], strides = [1, 1]} : vector<1x128xf32> to vector<1x64xf32>
    %204 = arith.addf %202, %203 : vector<1x64xf32>
    %205 = arith.negf %204 : vector<1x64xf32>
    %206 = math.exp %205 : vector<1x64xf32>
    %cst_50 = arith.constant 1.000000e+00 : f32
    %207 = vector.broadcast %cst_50 : f32 to vector<1x64xf32>
    %208 = arith.addf %207, %206 : vector<1x64xf32>
    %209 = arith.divf %207, %208 : vector<1x64xf32>
    %210 = vector.extract_strided_slice %209 {offsets = [0, 0], sizes = [1, 32], strides = [1, 1]} : vector<1x64xf32> to vector<1x32xf32>
    %211 = vector.extract_strided_slice %209 {offsets = [0, 32], sizes = [1, 32], strides = [1, 1]} : vector<1x64xf32> to vector<1x32xf32>
    %212 = vector.extract_strided_slice %156 {offsets = [0, 64], sizes = [1, 32], strides = [1, 1]} : vector<1x128xf32> to vector<1x32xf32>
    %213 = vector.extract_strided_slice %201 {offsets = [0, 64], sizes = [1, 32], strides = [1, 1]} : vector<1x128xf32> to vector<1x32xf32>
    %214 = arith.addf %213, %17 : vector<1x32xf32>
    %215 = arith.mulf %210, %214 : vector<1x32xf32>
    %216 = arith.addf %212, %215 : vector<1x32xf32>
    %217 = math.tanh %216 : vector<1x32xf32>
    %218 = arith.subf %176, %217 : vector<1x32xf32>
    %219 = arith.mulf %211, %218 : vector<1x32xf32>
    %220 = arith.addf %217, %219 : vector<1x32xf32>
    %c3 = arith.constant 3 : index
    %c0_51 = arith.constant 0 : index
    %221 = vector.load %arg11[%c3, %c0_51] : memref<8x32xf32, #tpu.memory_space<vmem>>, vector<1x32xf32>
    tpu.vector_store %arg11[%c3, %c0_51], %220 {strides = array<i32>} : memref<8x32xf32, #tpu.memory_space<vmem>>, vector<1x32xf32>,
    %222 = vector.extract_strided_slice %20 {offsets = [5, 0], sizes = [1, 128], strides = [1, 1]} : vector<8x128xf32> to vector<1x128xf32>
    %cst_52 = arith.constant dense<0.000000e+00> : vector<1x128xf32>
    %223 = tpu.matmul %198, %10, %cst_52 {dimension_numbers = #tpu.dot_dimension_numbers<[1], [0], [0], [1], [0, 0, 1, 1], [], []>} : vector<1x32xf32>, vector<32x128xf32>, vector<1x128xf32> -> vector<1x128xf32>
    %224 = vector.extract_strided_slice %222 {offsets = [0, 0], sizes = [1, 64], strides = [1, 1]} : vector<1x128xf32> to vector<1x64xf32>
    %225 = vector.extract_strided_slice %223 {offsets = [0, 0], sizes = [1, 64], strides = [1, 1]} : vector<1x128xf32> to vector<1x64xf32>
    %226 = arith.addf %224, %225 : vector<1x64xf32>
    %227 = arith.negf %226 : vector<1x64xf32>
    %228 = math.exp %227 : vector<1x64xf32>
    %cst_53 = arith.constant 1.000000e+00 : f32
    %229 = vector.broadcast %cst_53 : f32 to vector<1x64xf32>
    %230 = arith.addf %229, %228 : vector<1x64xf32>
    %231 = arith.divf %229, %230 : vector<1x64xf32>
    %232 = vector.extract_strided_slice %231 {offsets = [0, 0], sizes = [1, 32], strides = [1, 1]} : vector<1x64xf32> to vector<1x32xf32>
    %233 = vector.extract_strided_slice %231 {offsets = [0, 32], sizes = [1, 32], strides = [1, 1]} : vector<1x64xf32> to vector<1x32xf32>
    %234 = vector.extract_strided_slice %222 {offsets = [0, 64], sizes = [1, 32], strides = [1, 1]} : vector<1x128xf32> to vector<1x32xf32>
    %235 = vector.extract_strided_slice %223 {offsets = [0, 64], sizes = [1, 32], strides = [1, 1]} : vector<1x128xf32> to vector<1x32xf32>
    %236 = arith.addf %235, %15 : vector<1x32xf32>
    %237 = arith.mulf %232, %236 : vector<1x32xf32>
    %238 = arith.addf %234, %237 : vector<1x32xf32>
    %239 = math.tanh %238 : vector<1x32xf32>
    %240 = arith.subf %198, %239 : vector<1x32xf32>
    %241 = arith.mulf %233, %240 : vector<1x32xf32>
    %242 = arith.addf %239, %241 : vector<1x32xf32>
    %cst_54 = arith.constant dense<0.000000e+00> : vector<1x128xf32>
    %243 = tpu.matmul %242, %9, %cst_54 {dimension_numbers = #tpu.dot_dimension_numbers<[1], [0], [0], [1], [0, 0, 1, 1], [], []>} : vector<1x32xf32>, vector<32x128xf32>, vector<1x128xf32> -> vector<1x128xf32>
    %244 = arith.addf %243, %13 : vector<1x128xf32>
    %cst_55 = arith.constant dense<0.000000e+00> : vector<1x128xf32>
    %245 = tpu.matmul %220, %11, %cst_55 {dimension_numbers = #tpu.dot_dimension_numbers<[1], [0], [0], [1], [0, 0, 1, 1], [], []>} : vector<1x32xf32>, vector<32x128xf32>, vector<1x128xf32> -> vector<1x128xf32>
    %246 = vector.extract_strided_slice %200 {offsets = [0, 0], sizes = [1, 64], strides = [1, 1]} : vector<1x128xf32> to vector<1x64xf32>
    %247 = vector.extract_strided_slice %245 {offsets = [0, 0], sizes = [1, 64], strides = [1, 1]} : vector<1x128xf32> to vector<1x64xf32>
    %248 = arith.addf %246, %247 : vector<1x64xf32>
    %249 = arith.negf %248 : vector<1x64xf32>
    %250 = math.exp %249 : vector<1x64xf32>
    %cst_56 = arith.constant 1.000000e+00 : f32
    %251 = vector.broadcast %cst_56 : f32 to vector<1x64xf32>
    %252 = arith.addf %251, %250 : vector<1x64xf32>
    %253 = arith.divf %251, %252 : vector<1x64xf32>
    %254 = vector.extract_strided_slice %253 {offsets = [0, 0], sizes = [1, 32], strides = [1, 1]} : vector<1x64xf32> to vector<1x32xf32>
    %255 = vector.extract_strided_slice %253 {offsets = [0, 32], sizes = [1, 32], strides = [1, 1]} : vector<1x64xf32> to vector<1x32xf32>
    %256 = vector.extract_strided_slice %200 {offsets = [0, 64], sizes = [1, 32], strides = [1, 1]} : vector<1x128xf32> to vector<1x32xf32>
    %257 = vector.extract_strided_slice %245 {offsets = [0, 64], sizes = [1, 32], strides = [1, 1]} : vector<1x128xf32> to vector<1x32xf32>
    %258 = arith.addf %257, %17 : vector<1x32xf32>
    %259 = arith.mulf %254, %258 : vector<1x32xf32>
    %260 = arith.addf %256, %259 : vector<1x32xf32>
    %261 = math.tanh %260 : vector<1x32xf32>
    %262 = arith.subf %220, %261 : vector<1x32xf32>
    %263 = arith.mulf %255, %262 : vector<1x32xf32>
    %264 = arith.addf %261, %263 : vector<1x32xf32>
    %c4 = arith.constant 4 : index
    %c0_57 = arith.constant 0 : index
    %265 = vector.load %arg11[%c4, %c0_57] : memref<8x32xf32, #tpu.memory_space<vmem>>, vector<1x32xf32>
    tpu.vector_store %arg11[%c4, %c0_57], %264 {strides = array<i32>} : memref<8x32xf32, #tpu.memory_space<vmem>>, vector<1x32xf32>,
    %266 = vector.extract_strided_slice %20 {offsets = [6, 0], sizes = [1, 128], strides = [1, 1]} : vector<8x128xf32> to vector<1x128xf32>
    %cst_58 = arith.constant dense<0.000000e+00> : vector<1x128xf32>
    %267 = tpu.matmul %242, %10, %cst_58 {dimension_numbers = #tpu.dot_dimension_numbers<[1], [0], [0], [1], [0, 0, 1, 1], [], []>} : vector<1x32xf32>, vector<32x128xf32>, vector<1x128xf32> -> vector<1x128xf32>
    %268 = vector.extract_strided_slice %266 {offsets = [0, 0], sizes = [1, 64], strides = [1, 1]} : vector<1x128xf32> to vector<1x64xf32>
    %269 = vector.extract_strided_slice %267 {offsets = [0, 0], sizes = [1, 64], strides = [1, 1]} : vector<1x128xf32> to vector<1x64xf32>
    %270 = arith.addf %268, %269 : vector<1x64xf32>
    %271 = arith.negf %270 : vector<1x64xf32>
    %272 = math.exp %271 : vector<1x64xf32>
    %cst_59 = arith.constant 1.000000e+00 : f32
    %273 = vector.broadcast %cst_59 : f32 to vector<1x64xf32>
    %274 = arith.addf %273, %272 : vector<1x64xf32>
    %275 = arith.divf %273, %274 : vector<1x64xf32>
    %276 = vector.extract_strided_slice %275 {offsets = [0, 0], sizes = [1, 32], strides = [1, 1]} : vector<1x64xf32> to vector<1x32xf32>
    %277 = vector.extract_strided_slice %275 {offsets = [0, 32], sizes = [1, 32], strides = [1, 1]} : vector<1x64xf32> to vector<1x32xf32>
    %278 = vector.extract_strided_slice %266 {offsets = [0, 64], sizes = [1, 32], strides = [1, 1]} : vector<1x128xf32> to vector<1x32xf32>
    %279 = vector.extract_strided_slice %267 {offsets = [0, 64], sizes = [1, 32], strides = [1, 1]} : vector<1x128xf32> to vector<1x32xf32>
    %280 = arith.addf %279, %15 : vector<1x32xf32>
    %281 = arith.mulf %276, %280 : vector<1x32xf32>
    %282 = arith.addf %278, %281 : vector<1x32xf32>
    %283 = math.tanh %282 : vector<1x32xf32>
    %284 = arith.subf %242, %283 : vector<1x32xf32>
    %285 = arith.mulf %277, %284 : vector<1x32xf32>
    %286 = arith.addf %283, %285 : vector<1x32xf32>
    %cst_60 = arith.constant dense<0.000000e+00> : vector<1x128xf32>
    %287 = tpu.matmul %286, %9, %cst_60 {dimension_numbers = #tpu.dot_dimension_numbers<[1], [0], [0], [1], [0, 0, 1, 1], [], []>} : vector<1x32xf32>, vector<32x128xf32>, vector<1x128xf32> -> vector<1x128xf32>
    %288 = arith.addf %287, %13 : vector<1x128xf32>
    %cst_61 = arith.constant dense<0.000000e+00> : vector<1x128xf32>
    %289 = tpu.matmul %264, %11, %cst_61 {dimension_numbers = #tpu.dot_dimension_numbers<[1], [0], [0], [1], [0, 0, 1, 1], [], []>} : vector<1x32xf32>, vector<32x128xf32>, vector<1x128xf32> -> vector<1x128xf32>
    %290 = vector.extract_strided_slice %244 {offsets = [0, 0], sizes = [1, 64], strides = [1, 1]} : vector<1x128xf32> to vector<1x64xf32>
    %291 = vector.extract_strided_slice %289 {offsets = [0, 0], sizes = [1, 64], strides = [1, 1]} : vector<1x128xf32> to vector<1x64xf32>
    %292 = arith.addf %290, %291 : vector<1x64xf32>
    %293 = arith.negf %292 : vector<1x64xf32>
    %294 = math.exp %293 : vector<1x64xf32>
    %cst_62 = arith.constant 1.000000e+00 : f32
    %295 = vector.broadcast %cst_62 : f32 to vector<1x64xf32>
    %296 = arith.addf %295, %294 : vector<1x64xf32>
    %297 = arith.divf %295, %296 : vector<1x64xf32>
    %298 = vector.extract_strided_slice %297 {offsets = [0, 0], sizes = [1, 32], strides = [1, 1]} : vector<1x64xf32> to vector<1x32xf32>
    %299 = vector.extract_strided_slice %297 {offsets = [0, 32], sizes = [1, 32], strides = [1, 1]} : vector<1x64xf32> to vector<1x32xf32>
    %300 = vector.extract_strided_slice %244 {offsets = [0, 64], sizes = [1, 32], strides = [1, 1]} : vector<1x128xf32> to vector<1x32xf32>
    %301 = vector.extract_strided_slice %289 {offsets = [0, 64], sizes = [1, 32], strides = [1, 1]} : vector<1x128xf32> to vector<1x32xf32>
    %302 = arith.addf %301, %17 : vector<1x32xf32>
    %303 = arith.mulf %298, %302 : vector<1x32xf32>
    %304 = arith.addf %300, %303 : vector<1x32xf32>
    %305 = math.tanh %304 : vector<1x32xf32>
    %306 = arith.subf %264, %305 : vector<1x32xf32>
    %307 = arith.mulf %299, %306 : vector<1x32xf32>
    %308 = arith.addf %305, %307 : vector<1x32xf32>
    %c5 = arith.constant 5 : index
    %c0_63 = arith.constant 0 : index
    %309 = vector.load %arg11[%c5, %c0_63] : memref<8x32xf32, #tpu.memory_space<vmem>>, vector<1x32xf32>
    tpu.vector_store %arg11[%c5, %c0_63], %308 {strides = array<i32>} : memref<8x32xf32, #tpu.memory_space<vmem>>, vector<1x32xf32>,
    %310 = vector.extract_strided_slice %20 {offsets = [7, 0], sizes = [1, 128], strides = [1, 1]} : vector<8x128xf32> to vector<1x128xf32>
    %cst_64 = arith.constant dense<0.000000e+00> : vector<1x128xf32>
    %311 = tpu.matmul %286, %10, %cst_64 {dimension_numbers = #tpu.dot_dimension_numbers<[1], [0], [0], [1], [0, 0, 1, 1], [], []>} : vector<1x32xf32>, vector<32x128xf32>, vector<1x128xf32> -> vector<1x128xf32>
    %312 = vector.extract_strided_slice %310 {offsets = [0, 0], sizes = [1, 64], strides = [1, 1]} : vector<1x128xf32> to vector<1x64xf32>
    %313 = vector.extract_strided_slice %311 {offsets = [0, 0], sizes = [1, 64], strides = [1, 1]} : vector<1x128xf32> to vector<1x64xf32>
    %314 = arith.addf %312, %313 : vector<1x64xf32>
    %315 = arith.negf %314 : vector<1x64xf32>
    %316 = math.exp %315 : vector<1x64xf32>
    %cst_65 = arith.constant 1.000000e+00 : f32
    %317 = vector.broadcast %cst_65 : f32 to vector<1x64xf32>
    %318 = arith.addf %317, %316 : vector<1x64xf32>
    %319 = arith.divf %317, %318 : vector<1x64xf32>
    %320 = vector.extract_strided_slice %319 {offsets = [0, 0], sizes = [1, 32], strides = [1, 1]} : vector<1x64xf32> to vector<1x32xf32>
    %321 = vector.extract_strided_slice %319 {offsets = [0, 32], sizes = [1, 32], strides = [1, 1]} : vector<1x64xf32> to vector<1x32xf32>
    %322 = vector.extract_strided_slice %310 {offsets = [0, 64], sizes = [1, 32], strides = [1, 1]} : vector<1x128xf32> to vector<1x32xf32>
    %323 = vector.extract_strided_slice %311 {offsets = [0, 64], sizes = [1, 32], strides = [1, 1]} : vector<1x128xf32> to vector<1x32xf32>
    %324 = arith.addf %323, %15 : vector<1x32xf32>
    %325 = arith.mulf %320, %324 : vector<1x32xf32>
    %326 = arith.addf %322, %325 : vector<1x32xf32>
    %327 = math.tanh %326 : vector<1x32xf32>
    %328 = arith.subf %286, %327 : vector<1x32xf32>
    %329 = arith.mulf %321, %328 : vector<1x32xf32>
    %330 = arith.addf %327, %329 : vector<1x32xf32>
    %cst_66 = arith.constant dense<0.000000e+00> : vector<1x128xf32>
    %331 = tpu.matmul %330, %9, %cst_66 {dimension_numbers = #tpu.dot_dimension_numbers<[1], [0], [0], [1], [0, 0, 1, 1], [], []>} : vector<1x32xf32>, vector<32x128xf32>, vector<1x128xf32> -> vector<1x128xf32>
    %332 = arith.addf %331, %13 : vector<1x128xf32>
    %c0_67 = arith.constant 0 : index
    %c0_68 = arith.constant 0 : index
    %333 = vector.load %arg12[%c0_67, %c0_68] : memref<2x32xf32, #tpu.memory_space<vmem>>, vector<1x32xf32>
    tpu.vector_store %arg12[%c0_67, %c0_68], %330 {strides = array<i32>} : memref<2x32xf32, #tpu.memory_space<vmem>>, vector<1x32xf32>,
    %cst_69 = arith.constant dense<0.000000e+00> : vector<1x128xf32>
    %334 = tpu.matmul %308, %11, %cst_69 {dimension_numbers = #tpu.dot_dimension_numbers<[1], [0], [0], [1], [0, 0, 1, 1], [], []>} : vector<1x32xf32>, vector<32x128xf32>, vector<1x128xf32> -> vector<1x128xf32>
    %335 = vector.extract_strided_slice %288 {offsets = [0, 0], sizes = [1, 64], strides = [1, 1]} : vector<1x128xf32> to vector<1x64xf32>
    %336 = vector.extract_strided_slice %334 {offsets = [0, 0], sizes = [1, 64], strides = [1, 1]} : vector<1x128xf32> to vector<1x64xf32>
    %337 = arith.addf %335, %336 : vector<1x64xf32>
    %338 = arith.negf %337 : vector<1x64xf32>
    %339 = math.exp %338 : vector<1x64xf32>
    %cst_70 = arith.constant 1.000000e+00 : f32
    %340 = vector.broadcast %cst_70 : f32 to vector<1x64xf32>
    %341 = arith.addf %340, %339 : vector<1x64xf32>
    %342 = arith.divf %340, %341 : vector<1x64xf32>
    %343 = vector.extract_strided_slice %342 {offsets = [0, 0], sizes = [1, 32], strides = [1, 1]} : vector<1x64xf32> to vector<1x32xf32>
    %344 = vector.extract_strided_slice %342 {offsets = [0, 32], sizes = [1, 32], strides = [1, 1]} : vector<1x64xf32> to vector<1x32xf32>
    %345 = vector.extract_strided_slice %288 {offsets = [0, 64], sizes = [1, 32], strides = [1, 1]} : vector<1x128xf32> to vector<1x32xf32>
    %346 = vector.extract_strided_slice %334 {offsets = [0, 64], sizes = [1, 32], strides = [1, 1]} : vector<1x128xf32> to vector<1x32xf32>
    %347 = arith.addf %346, %17 : vector<1x32xf32>
    %348 = arith.mulf %343, %347 : vector<1x32xf32>
    %349 = arith.addf %345, %348 : vector<1x32xf32>
    %350 = math.tanh %349 : vector<1x32xf32>
    %351 = arith.subf %308, %350 : vector<1x32xf32>
    %352 = arith.mulf %344, %351 : vector<1x32xf32>
    %353 = arith.addf %350, %352 : vector<1x32xf32>
    %c6 = arith.constant 6 : index
    %c0_71 = arith.constant 0 : index
    %354 = vector.load %arg11[%c6, %c0_71] : memref<8x32xf32, #tpu.memory_space<vmem>>, vector<1x32xf32>
    tpu.vector_store %arg11[%c6, %c0_71], %353 {strides = array<i32>} : memref<8x32xf32, #tpu.memory_space<vmem>>, vector<1x32xf32>,
    %cst_72 = arith.constant dense<0.000000e+00> : vector<1x128xf32>
    %355 = tpu.matmul %353, %11, %cst_72 {dimension_numbers = #tpu.dot_dimension_numbers<[1], [0], [0], [1], [0, 0, 1, 1], [], []>} : vector<1x32xf32>, vector<32x128xf32>, vector<1x128xf32> -> vector<1x128xf32>
    %356 = vector.extract_strided_slice %332 {offsets = [0, 0], sizes = [1, 64], strides = [1, 1]} : vector<1x128xf32> to vector<1x64xf32>
    %357 = vector.extract_strided_slice %355 {offsets = [0, 0], sizes = [1, 64], strides = [1, 1]} : vector<1x128xf32> to vector<1x64xf32>
    %358 = arith.addf %356, %357 : vector<1x64xf32>
    %359 = arith.negf %358 : vector<1x64xf32>
    %360 = math.exp %359 : vector<1x64xf32>
    %cst_73 = arith.constant 1.000000e+00 : f32
    %361 = vector.broadcast %cst_73 : f32 to vector<1x64xf32>
    %362 = arith.addf %361, %360 : vector<1x64xf32>
    %363 = arith.divf %361, %362 : vector<1x64xf32>
    %364 = vector.extract_strided_slice %363 {offsets = [0, 0], sizes = [1, 32], strides = [1, 1]} : vector<1x64xf32> to vector<1x32xf32>
    %365 = vector.extract_strided_slice %363 {offsets = [0, 32], sizes = [1, 32], strides = [1, 1]} : vector<1x64xf32> to vector<1x32xf32>
    %366 = vector.extract_strided_slice %332 {offsets = [0, 64], sizes = [1, 32], strides = [1, 1]} : vector<1x128xf32> to vector<1x32xf32>
    %367 = vector.extract_strided_slice %355 {offsets = [0, 64], sizes = [1, 32], strides = [1, 1]} : vector<1x128xf32> to vector<1x32xf32>
    %368 = arith.addf %367, %17 : vector<1x32xf32>
    %369 = arith.mulf %364, %368 : vector<1x32xf32>
    %370 = arith.addf %366, %369 : vector<1x32xf32>
    %371 = math.tanh %370 : vector<1x32xf32>
    %372 = arith.subf %353, %371 : vector<1x32xf32>
    %373 = arith.mulf %365, %372 : vector<1x32xf32>
    %374 = arith.addf %371, %373 : vector<1x32xf32>
    %c7 = arith.constant 7 : index
    %c0_74 = arith.constant 0 : index
    %375 = vector.load %arg11[%c7, %c0_74] : memref<8x32xf32, #tpu.memory_space<vmem>>, vector<1x32xf32>
    tpu.vector_store %arg11[%c7, %c0_74], %374 {strides = array<i32>} : memref<8x32xf32, #tpu.memory_space<vmem>>, vector<1x32xf32>,
    %c1_75 = arith.constant 1 : index
    %c0_76 = arith.constant 0 : index
    %376 = vector.load %arg12[%c1_75, %c0_76] : memref<2x32xf32, #tpu.memory_space<vmem>>, vector<1x32xf32>
    tpu.vector_store %arg12[%c1_75, %c0_76], %374 {strides = array<i32>} : memref<2x32xf32, #tpu.memory_space<vmem>>, vector<1x32xf32>,
    return
  }
}

</mosaic_0001>

<llo_original>
// kernel: tpu_custom_call.1
$region0: #{tpu_custom_call.1}
  #allocation0 [shape = 'u32[]', space=smem, size = 0x4, offset = 0x4, fixed_abs, tag = 'smem constant byte address 0x4 - core index']
  #allocation1 [shape = 'u32[144,128]{1,0:T(1,128)}', space=vmem, size = 0x12000, scoped, tag = 'internal scratch']
  %s0 = inlined_call_operand.vmem [shape: s32[8,1], index: 0, kind: input, shape index: {}]
  %s1 = inlined_call_operand.hbm [shape: f32[16,32], index: 1, kind: input, shape index: {}]
  %s2 = inlined_call_operand.hbm [shape: f32[32,128], index: 2, kind: input, shape index: {}]
  %s3 = inlined_call_operand.hbm [shape: f32[32,128], index: 3, kind: input, shape index: {}]
  %s4 = inlined_call_operand.vmem [shape: f32[1,128], index: 4, kind: input, shape index: {}]
  %s5 = inlined_call_operand.vmem [shape: f32[1,128], index: 5, kind: input, shape index: {}]
  %s6 = inlined_call_operand.hbm [shape: f32[32,128], index: 6, kind: input, shape index: {}]
  %s7 = inlined_call_operand.hbm [shape: f32[32,128], index: 7, kind: input, shape index: {}]
  %s8 = inlined_call_operand.vmem [shape: f32[1,128], index: 8, kind: input, shape index: {}]
  %s9 = inlined_call_operand.vmem [shape: f32[1,128], index: 9, kind: input, shape index: {}]
  %s10 = inlined_call_operand.vmem [shape: f32[2,32], index: 10, kind: input, shape index: {}]
  %s11 = inlined_call_operand.hbm [shape: f32[8,32], index: 11, kind: output, shape index: {0}]
  %s12 = inlined_call_operand.hbm [shape: f32[2,32], index: 12, kind: output, shape index: {1}]
  %13 = xla_tuple %s11, %s12
  %s14 = sld [smem:[#allocation0]]
  $region82: #{tpu_custom_call.1} parent=0
    _
  %s16 = ssub.s32 1, %s14
  %s17 = scalar_select 0, %s16, %s14
  $region1: #{tpu_custom_call.1} parent=0
    #allocation2 [shape = 'u8[8192]{0}', space=vmem, size = 0x2000, scoped, tag = 'input window, operand 1, single buffered']
    #allocation3 [shape = 's32[1]{0}', space=sflag, size = 0x4, scoped, tag = 'scoped memory for tpu_custom_call.1']
    #allocation4 [shape = 's32[1]{0}', space=sflag, size = 0x4, scoped, tag = 'scoped memory for tpu_custom_call.1']
    #allocation5 [shape = 'u8[16384]{0}', space=vmem, size = 0x4000, scoped, tag = 'input window, operand 2, single buffered']
    #allocation6 [shape = 's32[1]{0}', space=sflag, size = 0x4, scoped, tag = 'scoped memory for tpu_custom_call.1']
    #allocation7 [shape = 'u8[16384]{0}', space=vmem, size = 0x4000, scoped, tag = 'input window, operand 3, single buffered']
    #allocation8 [shape = 'u8[16384]{0}', space=vmem, size = 0x4000, scoped, tag = 'input window, operand 6, single buffered']
    #allocation9 [shape = 's32[1]{0}', space=sflag, size = 0x4, scoped, tag = 'scoped memory for tpu_custom_call.1']
    #allocation10 [shape = 'u8[16384]{0}', space=vmem, size = 0x4000, scoped, tag = 'input window, operand 7, single buffered']
    #allocation11 [shape = 'u8[4096]{0}', space=vmem, size = 0x1000, scoped, tag = 'output window, operand 0, single buffered']
    #allocation12 [shape = 'u8[1024]{0}', space=vmem, size = 0x400, scoped, tag = 'output window, operand 1, single buffered']
    #allocation13 [shape = 's32[1]{0}', space=sflag, size = 0x4, scoped, tag = 'scoped memory for tpu_custom_call.1']
    %18 = vsyncpa [#allocation3], 0
    %19 = vsyncpa [#allocation6], 0
    %20 = vsyncpa [#allocation9], 0
    %21 = vsyncpa [#allocation4], 0
    %22 = vsyncpa [#allocation13], 0
    // Predicated region
    $region2: #{tpu_custom_call.1} parent=1 // pred_check
      _
    $region3: #{tpu_custom_call.1} parent=1 // pred_check_branch
      %24 = sbr.rel (0) target = $region5
    $region4: #{tpu_custom_call.1} parent=1 // pred_region
      _
    $region5: #{tpu_custom_call.1} parent=1 // pred_fallthru
      _
    // Predicated region
    $region6: #{tpu_custom_call.1} parent=1 // pred_check
      _
    $region7: #{tpu_custom_call.1} parent=1 // pred_check_branch
      %26 = sbr.rel (0) target = $region9
    $region8: #{tpu_custom_call.1} parent=1 // pred_region
      %s28 = ssub.s32 256, 256
      %29 = vsyncadd [#allocation3], %s28
      %s30 = sshll.u32 [#allocation2], 4
      %s31 = int_to_ptr.vmem [resolvable:$true] %s30
      %36 = dma.hbm_to_vmem [thread:$0]  %s1, 256, %s31, [#allocation3], 128, 128, 8
    $region9: #{tpu_custom_call.1} parent=1 // pred_fallthru
      _
    // Predicated region
    $region10: #{tpu_custom_call.1} parent=1 // pred_check
      _
    $region11: #{tpu_custom_call.1} parent=1 // pred_check_branch
      %38 = sbr.rel (0) target = $region13
    $region12: #{tpu_custom_call.1} parent=1 // pred_region
      %s40 = ssub.s32 512, 512
      %41 = vsyncadd [#allocation6], %s40
      %s42 = sshll.u32 [#allocation5], 4
      %s43 = int_to_ptr.vmem [resolvable:$true] %s42
      %48 = dma.hbm_to_vmem [thread:$0]  %s2, 512, %s43, [#allocation6], 128, 128, 8
    $region13: #{tpu_custom_call.1} parent=1 // pred_fallthru
      _
    // Predicated region
    $region14: #{tpu_custom_call.1} parent=1 // pred_check
      _
    $region15: #{tpu_custom_call.1} parent=1 // pred_check_branch
      %50 = sbr.rel (0) target = $region17
    $region16: #{tpu_custom_call.1} parent=1 // pred_region
      %s52 = ssub.s32 512, 512
      %53 = vsyncadd [#allocation6], %s52
      %s54 = sshll.u32 [#allocation7], 4
      %s55 = int_to_ptr.vmem [resolvable:$true] %s54
      %60 = dma.hbm_to_vmem [thread:$0]  %s3, 512, %s55, [#allocation6], 128, 128, 8
    $region17: #{tpu_custom_call.1} parent=1 // pred_fallthru
      _
    // Predicated region
    $region18: #{tpu_custom_call.1} parent=1 // pred_check
      _
    $region19: #{tpu_custom_call.1} parent=1 // pred_check_branch
      %62 = sbr.rel (0) target = $region21
    $region20: #{tpu_custom_call.1} parent=1 // pred_region
      _
    $region21: #{tpu_custom_call.1} parent=1 // pred_fallthru
      _
    // Predicated region
    $region22: #{tpu_custom_call.1} parent=1 // pred_check
      _
    $region23: #{tpu_custom_call.1} parent=1 // pred_check_branch
      %64 = sbr.rel (0) target = $region25
    $region24: #{tpu_custom_call.1} parent=1 // pred_region
      _
    $region25: #{tpu_custom_call.1} parent=1 // pred_fallthru
      _
    // Predicated region
    $region26: #{tpu_custom_call.1} parent=1 // pred_check
      _
    $region27: #{tpu_custom_call.1} parent=1 // pred_check_branch
      %66 = sbr.rel (0) target = $region29
    $region28: #{tpu_custom_call.1} parent=1 // pred_region
      %s68 = ssub.s32 512, 512
      %69 = vsyncadd [#allocation9], %s68
      %s70 = sshll.u32 [#allocation8], 4
      %s71 = int_to_ptr.vmem [resolvable:$true] %s70
      %76 = dma.hbm_to_vmem [thread:$0]  %s6, 512, %s71, [#allocation9], 128, 128, 8
    $region29: #{tpu_custom_call.1} parent=1 // pred_fallthru
      _
    // Predicated region
    $region30: #{tpu_custom_call.1} parent=1 // pred_check
      _
    $region31: #{tpu_custom_call.1} parent=1 // pred_check_branch
      %78 = sbr.rel (0) target = $region33
    $region32: #{tpu_custom_call.1} parent=1 // pred_region
      %s80 = ssub.s32 512, 512
      %81 = vsyncadd [#allocation9], %s80
      %s82 = sshll.u32 [#allocation10], 4
      %s83 = int_to_ptr.vmem [resolvable:$true] %s82
      %88 = dma.hbm_to_vmem [thread:$0]  %s7, 512, %s83, [#allocation9], 128, 128, 8
    $region33: #{tpu_custom_call.1} parent=1 // pred_fallthru
      _
    // Predicated region
    $region34: #{tpu_custom_call.1} parent=1 // pred_check
      _
    $region35: #{tpu_custom_call.1} parent=1 // pred_check_branch
      %90 = sbr.rel (0) target = $region37
    $region36: #{tpu_custom_call.1} parent=1 // pred_region
      _
    $region37: #{tpu_custom_call.1} parent=1 // pred_fallthru
      _
    // Predicated region
    $region38: #{tpu_custom_call.1} parent=1 // pred_check
      _
    $region39: #{tpu_custom_call.1} parent=1 // pred_check_branch
      %92 = sbr.rel (0) target = $region41
    $region40: #{tpu_custom_call.1} parent=1 // pred_region
      _
    $region41: #{tpu_custom_call.1} parent=1 // pred_fallthru
      _
    // Predicated region
    $region42: #{tpu_custom_call.1} parent=1 // pred_check
      _
    $region43: #{tpu_custom_call.1} parent=1 // pred_check_branch
      %94 = sbr.rel (0) target = $region45
    $region44: #{tpu_custom_call.1} parent=1 // pred_region
      _
    $region45: #{tpu_custom_call.1} parent=1 // pred_fallthru
      _
    // Predicated region
    $region46: #{tpu_custom_call.1} parent=1 // pred_check
      _
    $region47: #{tpu_custom_call.1} parent=1 // pred_check_branch
      %96 = sbr.rel (0) target = $region49
    $region48: #{tpu_custom_call.1} parent=1 // pred_region
      %97 = dma.done [#allocation3], 256
    $region49: #{tpu_custom_call.1} parent=1 // pred_fallthru
      _
    // Predicated region
    $region50: #{tpu_custom_call.1} parent=1 // pred_check
      _
    $region51: #{tpu_custom_call.1} parent=1 // pred_check_branch
      %99 = sbr.rel (0) target = $region53
    $region52: #{tpu_custom_call.1} parent=1 // pred_region
      %100 = dma.done [#allocation6], 512
    $region53: #{tpu_custom_call.1} parent=1 // pred_fallthru
      _
    // Predicated region
    $region54: #{tpu_custom_call.1} parent=1 // pred_check
      _
    $region55: #{tpu_custom_call.1} parent=1 // pred_check_branch
      %102 = sbr.rel (0) target = $region57
    $region56: #{tpu_custom_call.1} parent=1 // pred_region
      %103 = dma.done [#allocation6], 512
    $region57: #{tpu_custom_call.1} parent=1 // pred_fallthru
      _
    // Predicated region
    $region58: #{tpu_custom_call.1} parent=1 // pred_check
      _
    $region59: #{tpu_custom_call.1} parent=1 // pred_check_branch
      %105 = sbr.rel (0) target = $region61
    $region60: #{tpu_custom_call.1} parent=1 // pred_region
      %106 = dma.done [#allocation9], 512
    $region61: #{tpu_custom_call.1} parent=1 // pred_fallthru
      _
    // Predicated region
    $region62: #{tpu_custom_call.1} parent=1 // pred_check
      _
    $region63: #{tpu_custom_call.1} parent=1 // pred_check_branch
      %108 = sbr.rel (0) target = $region65
    $region64: #{tpu_custom_call.1} parent=1 // pred_region
      %109 = dma.done [#allocation9], 512
    $region65: #{tpu_custom_call.1} parent=1 // pred_fallthru
      _
    %v110 = vld [vmem:[%s0] sm:$0xff]
    %v111 = vlaneseq
    %v112 = vand.u32 %v111, 127
    %113 = vset.pattern.permute.xlu0 0
    %114 = vperm.xlu0 %113, %v110
    %v115 = vpop.permute.xlu0 %114
    %vm116 = vcmp.eq.s32.totalorder %v115, %v112
    %v117 = vsel %vm116, 1, 0
    %v118 = vcvt.s32.f32 %v117
    %v119 = vld [vmem:[#allocation2] sm:$0xff]
    %v120 = vld [vmem:[#allocation2 + $0x8] sm:$0xff]
    %vm121 = vcmask 130048
    %v123 = vsel %vm121, %v118, 0
    %125 = vmatprep.subr.mxu0 0.0
    %126 = vmatpush1.msra.mxu0 0.0
    %127 = vmatprep.subr.mxu0 0.0
    %128 = vmatpush1.msra.mxu0 0.0
    %129 = vmatprep.subr.mxu0 0.0
    %130 = vmatpush1.msra.mxu0 0.0
    %131 = vmatprep.subr.mxu0 0.0
    %132 = vmatpush1.msra.mxu0 0.0
    %133 = vmatprep.subr.mxu0 0.0
    %134 = vmatpush1.msra.mxu0 0.0
    %135 = vmatprep.subr.mxu0 0.0
    %136 = vmatpush1.msra.mxu0 0.0
    %137 = vmatprep.subr.mxu0 0.0
    %138 = vmatpush1.msra.mxu0 0.0
    %139 = vmatprep.subr.mxu0 0.0
    %140 = vmatpush1.msra.mxu0 0.0
    %141 = vmatprep.subr.mxu0 0.0
    %142 = vmatpush1.msra.mxu0 0.0
    %143 = vmatprep.subr.mxu0 0.0
    %144 = vmatpush1.msra.mxu0 0.0
    %145 = vmatprep.subr.mxu0 0.0
    %146 = vmatpush1.msra.mxu0 0.0
    %147 = vmatprep.subr.mxu0 0.0
    %148 = vmatpush1.msra.mxu0 0.0
    %149 = vmatprep.subr.mxu0 0.0
    %150 = vmatpush1.msra.mxu0 0.0
    %151 = vmatprep.subr.mxu0 0.0
    %152 = vmatpush1.msra.mxu0 0.0
    %153 = vmatprep.subr.mxu0 0.0
    %154 = vmatpush1.msra.mxu0 %v120
    %155 = vmatprep.subr.mxu0 0.0
    %156 = vmatpush1.msra.mxu0 %v119
    %157 = vmatprep.subr.mxu0 0.0
    %158 = vmatpush2.msra.mxu0 0.0
    %159 = vmatprep.subr.mxu0 0.0
    %160 = vmatpush2.msra.mxu0 0.0
    %161 = vmatprep.subr.mxu0 0.0
    %162 = vmatpush2.msra.mxu0 0.0
    %163 = vmatprep.subr.mxu0 0.0
    %164 = vmatpush2.msra.mxu0 0.0
    %165 = vmatprep.subr.mxu0 0.0
    %166 = vmatpush2.msra.mxu0 0.0
    %167 = vmatprep.subr.mxu0 0.0
    %168 = vmatpush2.msra.mxu0 0.0
    %169 = vmatprep.subr.mxu0 0.0
    %170 = vmatpush2.msra.mxu0 0.0
    %171 = vmatprep.subr.mxu0 0.0
    %172 = vmatpush2.msra.mxu0 0.0
    %173 = vmatprep.subr.mxu0 0.0
    %174 = vmatpush2.msra.mxu0 0.0
    %175 = vmatprep.subr.mxu0 0.0
    %176 = vmatpush2.msra.mxu0 0.0
    %177 = vmatprep.subr.mxu0 0.0
    %178 = vmatpush2.msra.mxu0 0.0
    %179 = vmatprep.subr.mxu0 0.0
    %180 = vmatpush2.msra.mxu0 0.0
    %181 = vmatprep.subr.mxu0 0.0
    %182 = vmatpush2.msra.mxu0 0.0
    %183 = vmatprep.subr.mxu0 0.0
    %184 = vmatpush2.msra.mxu0 0.0
    %185 = vmatprep.subr.mxu0 0.0
    %186 = vmatpush2.msra.mxu0 0.0
    %187 = vmatprep.subr.mxu0 0.0
    %188 = vmatpush2.msra.mxu0 0.0
    %189 = vmatprep.mubr.f32.mxu0 0.0
    %190 = vmatmul.mubr.f32.gmra.mxu0 %v123
    %v191 = vpop.f32.mrf.mxu0
    %v192 = vadd.f32 0.0, %v191
    %v193 = vpop.f32.mrf.mxu0
    %194 = vdwg.mxu0
    %v195 = vld [vmem:[#allocation5] sm:$0xff]
    %v196 = vld [vmem:[#allocation5 + $0x8] sm:$0xff]
    %v197 = vld [vmem:[#allocation5 + $0x10] sm:$0xff]
    %v198 = vld [vmem:[#allocation5 + $0x18] sm:$0xff]
    %v199 = vld [vmem:[#allocation8] sm:$0xff]
    %v200 = vld [vmem:[#allocation8 + $0x8] sm:$0xff]
    %v201 = vld [vmem:[#allocation8 + $0x10] sm:$0xff]
    %v202 = vld [vmem:[#allocation8 + $0x18] sm:$0xff]
    %v203 = vld [vmem:[#allocation7] sm:$0xff]
    %v204 = vld [vmem:[#allocation7 + $0x8] sm:$0xff]
    %v205 = vld [vmem:[#allocation7 + $0x10] sm:$0xff]
    %v206 = vld [vmem:[#allocation7 + $0x18] sm:$0xff]
    %v207 = vld [vmem:[#allocation10] sm:$0xff]
    %v208 = vld [vmem:[#allocation10 + $0x8] sm:$0xff]
    %v209 = vld [vmem:[#allocation10 + $0x10] sm:$0xff]
    %v210 = vld [vmem:[#allocation10 + $0x18] sm:$0xff]
    %v211 = vld [vmem:[%s4] sm:$0x1]
    %v212 = vld [vmem:[%s8] sm:$0x1]
    %v213 = vld [vmem:[%s5] sm:$0x1]
    %v214 = vld [vmem:[%s9] sm:$0x1]
    %v216 = vlaneseq
    %v217 = vshrl.u32 %v216, 7
    %v218 = vsub.s32 0, %v217
    %v219 = vrot.slane %v211, %v218
    %vm221 = vcmask 261120
    %v223 = vsel %vm221, %v192, 0
    %225 = vmatprep.subr.mxu0 0.0
    %226 = vmatpush1.msra.mxu0 0.0
    %227 = vmatprep.subr.mxu0 0.0
    %228 = vmatpush1.msra.mxu0 0.0
    %229 = vmatprep.subr.mxu0 0.0
    %230 = vmatpush1.msra.mxu0 0.0
    %231 = vmatprep.subr.mxu0 0.0
    %232 = vmatpush1.msra.mxu0 0.0
    %233 = vmatprep.subr.mxu0 0.0
    %234 = vmatpush1.msra.mxu0 0.0
    %235 = vmatprep.subr.mxu0 0.0
    %236 = vmatpush1.msra.mxu0 0.0
    %237 = vmatprep.subr.mxu0 0.0
    %238 = vmatpush1.msra.mxu0 0.0
    %239 = vmatprep.subr.mxu0 0.0
    %240 = vmatpush1.msra.mxu0 0.0
    %241 = vmatprep.subr.mxu0 0.0
    %242 = vmatpush1.msra.mxu0 0.0
    %243 = vmatprep.subr.mxu0 0.0
    %244 = vmatpush1.msra.mxu0 0.0
    %245 = vmatprep.subr.mxu0 0.0
    %246 = vmatpush1.msra.mxu0 0.0
    %247 = vmatprep.subr.mxu0 0.0
    %248 = vmatpush1.msra.mxu0 0.0
    %249 = vmatprep.subr.mxu0 0.0
    %250 = vmatpush1.msra.mxu0 %v198
    %251 = vmatprep.subr.mxu0 0.0
    %252 = vmatpush1.msra.mxu0 %v197
    %253 = vmatprep.subr.mxu0 0.0
    %254 = vmatpush1.msra.mxu0 %v196
    %255 = vmatprep.subr.mxu0 0.0
    %256 = vmatpush1.msra.mxu0 %v195
    %257 = vmatprep.subr.mxu0 0.0
    %258 = vmatpush2.msra.mxu0 0.0
    %259 = vmatprep.subr.mxu0 0.0
    %260 = vmatpush2.msra.mxu0 0.0
    %261 = vmatprep.subr.mxu0 0.0
    %262 = vmatpush2.msra.mxu0 0.0
    %263 = vmatprep.subr.mxu0 0.0
    %264 = vmatpush2.msra.mxu0 0.0
    %265 = vmatprep.subr.mxu0 0.0
    %266 = vmatpush2.msra.mxu0 0.0
    %267 = vmatprep.subr.mxu0 0.0
    %268 = vmatpush2.msra.mxu0 0.0
    %269 = vmatprep.subr.mxu0 0.0
    %270 = vmatpush2.msra.mxu0 0.0
    %271 = vmatprep.subr.mxu0 0.0
    %272 = vmatpush2.msra.mxu0 0.0
    %273 = vmatprep.subr.mxu0 0.0
    %274 = vmatpush2.msra.mxu0 0.0
    %275 = vmatprep.subr.mxu0 0.0
    %276 = vmatpush2.msra.mxu0 0.0
    %277 = vmatprep.subr.mxu0 0.0
    %278 = vmatpush2.msra.mxu0 0.0
    %279 = vmatprep.subr.mxu0 0.0
    %280 = vmatpush2.msra.mxu0 0.0
    %281 = vmatprep.subr.mxu0 0.0
    %282 = vmatpush2.msra.mxu0 0.0
    %283 = vmatprep.subr.mxu0 0.0
    %284 = vmatpush2.msra.mxu0 0.0
    %285 = vmatprep.subr.mxu0 0.0
    %286 = vmatpush2.msra.mxu0 0.0
    %287 = vmatprep.subr.mxu0 0.0
    %288 = vmatpush2.msra.mxu0 0.0
    %289 = vmatprep.mubr.f32.mxu0 0.0
    %290 = vmatmul.mubr.f32.gmra.mxu0 %v223
    %v291 = vpop.f32.mrf.mxu0
    %v292 = vadd.f32 %v219, %v291
    %v293 = vpop.f32.mrf.mxu0
    %294 = vdwg.mxu0
    %v295 = vld [vmem:[%s10] sm:$0x1]
    %v296 = vld [vmem:[%s10 + $0x1] sm:$0x1]
    %v298 = vsel %vm221, %v295, 0
    %300 = vmatprep.subr.mxu0 0.0
    %301 = vmatpush1.msra.mxu0 0.0
    %302 = vmatprep.subr.mxu0 0.0
    %303 = vmatpush1.msra.mxu0 0.0
    %304 = vmatprep.subr.mxu0 0.0
    %305 = vmatpush1.msra.mxu0 0.0
    %306 = vmatprep.subr.mxu0 0.0
    %307 = vmatpush1.msra.mxu0 0.0
    %308 = vmatprep.subr.mxu0 0.0
    %309 = vmatpush1.msra.mxu0 0.0
    %310 = vmatprep.subr.mxu0 0.0
    %311 = vmatpush1.msra.mxu0 0.0
    %312 = vmatprep.subr.mxu0 0.0
    %313 = vmatpush1.msra.mxu0 0.0
    %314 = vmatprep.subr.mxu0 0.0
    %315 = vmatpush1.msra.mxu0 0.0
    %316 = vmatprep.subr.mxu0 0.0
    %317 = vmatpush1.msra.mxu0 0.0
    %318 = vmatprep.subr.mxu0 0.0
    %319 = vmatpush1.msra.mxu0 0.0
    %320 = vmatprep.subr.mxu0 0.0
    %321 = vmatpush1.msra.mxu0 0.0
    %322 = vmatprep.subr.mxu0 0.0
    %323 = vmatpush1.msra.mxu0 0.0
    %324 = vmatprep.subr.mxu0 0.0
    %325 = vmatpush1.msra.mxu0 %v206
    %326 = vmatprep.subr.mxu0 0.0
    %327 = vmatpush1.msra.mxu0 %v205
    %328 = vmatprep.subr.mxu0 0.0
    %329 = vmatpush1.msra.mxu0 %v204
    %330 = vmatprep.subr.mxu0 0.0
    %331 = vmatpush1.msra.mxu0 %v203
    %332 = vmatprep.subr.mxu0 0.0
    %333 = vmatpush2.msra.mxu0 0.0
    %334 = vmatprep.subr.mxu0 0.0
    %335 = vmatpush2.msra.mxu0 0.0
    %336 = vmatprep.subr.mxu0 0.0
    %337 = vmatpush2.msra.mxu0 0.0
    %338 = vmatprep.subr.mxu0 0.0
    %339 = vmatpush2.msra.mxu0 0.0
    %340 = vmatprep.subr.mxu0 0.0
    %341 = vmatpush2.msra.mxu0 0.0
    %342 = vmatprep.subr.mxu0 0.0
    %343 = vmatpush2.msra.mxu0 0.0
    %344 = vmatprep.subr.mxu0 0.0
    %345 = vmatpush2.msra.mxu0 0.0
    %346 = vmatprep.subr.mxu0 0.0
    %347 = vmatpush2.msra.mxu0 0.0
    %348 = vmatprep.subr.mxu0 0.0
    %349 = vmatpush2.msra.mxu0 0.0
    %350 = vmatprep.subr.mxu0 0.0
    %351 = vmatpush2.msra.mxu0 0.0
    %352 = vmatprep.subr.mxu0 0.0
    %353 = vmatpush2.msra.mxu0 0.0
    %354 = vmatprep.subr.mxu0 0.0
    %355 = vmatpush2.msra.mxu0 0.0
    %356 = vmatprep.subr.mxu0 0.0
    %357 = vmatpush2.msra.mxu0 0.0
    %358 = vmatprep.subr.mxu0 0.0
    %359 = vmatpush2.msra.mxu0 0.0
    %360 = vmatprep.subr.mxu0 0.0
    %361 = vmatpush2.msra.mxu0 0.0
    %362 = vmatprep.subr.mxu0 0.0
    %363 = vmatpush2.msra.mxu0 0.0
    %364 = vmatprep.mubr.f32.mxu0 0.0
    %365 = vmatmul.mubr.f32.gmra.mxu0 %v298
    %v366 = vpop.f32.mrf.mxu0
    %v367 = vadd.f32 0.0, %v366
    %v368 = vpop.f32.mrf.mxu0
    %369 = vdwg.mxu0
    %v370 = vadd.f32 %v292, %v367
    %v371 = vxor.u32 %v370, 2147483648
    %v372 = vmul.f32 %v371, 1.442695
    %v373 = vpow.pop %v372
    %v374 = vadd.f32 %v373, 1.0
    %v375 = vrcp.pop %v374
    %v376 = vmul.f32 1.0, %v375
    %v377 = vadd.f32 %v367, %v213
    %379 = vrot.lane.b32.xlu0 %v377, 64
    %v380 = vpop.permute.xlu0 %379
    %v382 = vmul.f32 %v376, %v380
    %384 = vrot.lane.b32.xlu0 %v382, 64
    %v385 = vpop.permute.xlu0 %384
    %v387 = vadd.f32 %v292, %v385
    %v388 = vtanh.pop %v387
    %390 = vrot.lane.b32.xlu0 %v388, 64
    %v391 = vpop.permute.xlu0 %390
    %v393 = vsub.f32 %v295, %v391
    %395 = vrot.lane.b32.xlu0 %v393, 32
    %v396 = vpop.permute.xlu0 %395
    %v398 = vmul.f32 %v376, %v396
    %400 = vrot.lane.b32.xlu0 %v398, 32
    %v401 = vpop.permute.xlu0 %400
    %v403 = vadd.f32 %v388, %v401
    %405 = vrot.lane.b32.xlu0 %v403, 64
    %v406 = vpop.permute.xlu0 %405
    %v407 = vsel %vm221, %v406, 0
    %409 = vmatprep.subr.mxu0 0.0
    %410 = vmatpush1.msra.mxu0 0.0
    %411 = vmatprep.subr.mxu0 0.0
    %412 = vmatpush1.msra.mxu0 0.0
    %413 = vmatprep.subr.mxu0 0.0
    %414 = vmatpush1.msra.mxu0 0.0
    %415 = vmatprep.subr.mxu0 0.0
    %416 = vmatpush1.msra.mxu0 0.0
    %417 = vmatprep.subr.mxu0 0.0
    %418 = vmatpush1.msra.mxu0 0.0
    %419 = vmatprep.subr.mxu0 0.0
    %420 = vmatpush1.msra.mxu0 0.0
    %421 = vmatprep.subr.mxu0 0.0
    %422 = vmatpush1.msra.mxu0 0.0
    %423 = vmatprep.subr.mxu0 0.0
    %424 = vmatpush1.msra.mxu0 0.0
    %425 = vmatprep.subr.mxu0 0.0
    %426 = vmatpush1.msra.mxu0 0.0
    %427 = vmatprep.subr.mxu0 0.0
    %428 = vmatpush1.msra.mxu0 0.0
    %429 = vmatprep.subr.mxu0 0.0
    %430 = vmatpush1.msra.mxu0 0.0
    %431 = vmatprep.subr.mxu0 0.0
    %432 = vmatpush1.msra.mxu0 0.0
    %433 = vmatprep.subr.mxu0 0.0
    %434 = vmatpush1.msra.mxu0 %v202
    %435 = vmatprep.subr.mxu0 0.0
    %436 = vmatpush1.msra.mxu0 %v201
    %437 = vmatprep.subr.mxu0 0.0
    %438 = vmatpush1.msra.mxu0 %v200
    %439 = vmatprep.subr.mxu0 0.0
    %440 = vmatpush1.msra.mxu0 %v199
    %441 = vmatprep.subr.mxu0 0.0
    %442 = vmatpush2.msra.mxu0 0.0
    %443 = vmatprep.subr.mxu0 0.0
    %444 = vmatpush2.msra.mxu0 0.0
    %445 = vmatprep.subr.mxu0 0.0
    %446 = vmatpush2.msra.mxu0 0.0
    %447 = vmatprep.subr.mxu0 0.0
    %448 = vmatpush2.msra.mxu0 0.0
    %449 = vmatprep.subr.mxu0 0.0
    %450 = vmatpush2.msra.mxu0 0.0
    %451 = vmatprep.subr.mxu0 0.0
    %452 = vmatpush2.msra.mxu0 0.0
    %453 = vmatprep.subr.mxu0 0.0
    %454 = vmatpush2.msra.mxu0 0.0
    %455 = vmatprep.subr.mxu0 0.0
    %456 = vmatpush2.msra.mxu0 0.0
    %457 = vmatprep.subr.mxu0 0.0
    %458 = vmatpush2.msra.mxu0 0.0
    %459 = vmatprep.subr.mxu0 0.0
    %460 = vmatpush2.msra.mxu0 0.0
    %461 = vmatprep.subr.mxu0 0.0
    %462 = vmatpush2.msra.mxu0 0.0
    %463 = vmatprep.subr.mxu0 0.0
    %464 = vmatpush2.msra.mxu0 0.0
    %465 = vmatprep.subr.mxu0 0.0
    %466 = vmatpush2.msra.mxu0 0.0
    %467 = vmatprep.subr.mxu0 0.0
    %468 = vmatpush2.msra.mxu0 0.0
    %469 = vmatprep.subr.mxu0 0.0
    %470 = vmatpush2.msra.mxu0 0.0
    %471 = vmatprep.subr.mxu0 0.0
    %472 = vmatpush2.msra.mxu0 0.0
    %473 = vmatprep.mubr.f32.mxu0 0.0
    %474 = vmatmul.mubr.f32.gmra.mxu0 %v407
    %v475 = vpop.f32.mrf.mxu0
    %v476 = vadd.f32 %v212, %v475
    %v477 = vpop.f32.mrf.mxu0
    %478 = vdwg.mxu0
    %479 = vmatprep.subr.mxu0 0.0
    %480 = vmatpush1.msra.mxu0 0.0
    %481 = vmatprep.subr.mxu0 0.0
    %482 = vmatpush1.msra.mxu0 0.0
    %483 = vmatprep.subr.mxu0 0.0
    %484 = vmatpush1.msra.mxu0 0.0
    %485 = vmatprep.subr.mxu0 0.0
    %486 = vmatpush1.msra.mxu0 0.0
    %487 = vmatprep.subr.mxu0 0.0
    %488 = vmatpush1.msra.mxu0 0.0
    %489 = vmatprep.subr.mxu0 0.0
    %490 = vmatpush1.msra.mxu0 0.0
    %491 = vmatprep.subr.mxu0 0.0
    %492 = vmatpush1.msra.mxu0 0.0
    %493 = vmatprep.subr.mxu0 0.0
    %494 = vmatpush1.msra.mxu0 0.0
    %495 = vmatprep.subr.mxu0 0.0
    %496 = vmatpush1.msra.mxu0 0.0
    %497 = vmatprep.subr.mxu0 0.0
    %498 = vmatpush1.msra.mxu0 0.0
    %499 = vmatprep.subr.mxu0 0.0
    %500 = vmatpush1.msra.mxu0 0.0
    %501 = vmatprep.subr.mxu0 0.0
    %502 = vmatpush1.msra.mxu0 0.0
    %503 = vmatprep.subr.mxu0 0.0
    %504 = vmatpush1.msra.mxu0 %v206
    %505 = vmatprep.subr.mxu0 0.0
    %506 = vmatpush1.msra.mxu0 %v205
    %507 = vmatprep.subr.mxu0 0.0
    %508 = vmatpush1.msra.mxu0 %v204
    %509 = vmatprep.subr.mxu0 0.0
    %510 = vmatpush1.msra.mxu0 %v203
    %511 = vmatprep.subr.mxu0 0.0
    %512 = vmatpush2.msra.mxu0 0.0
    %513 = vmatprep.subr.mxu0 0.0
    %514 = vmatpush2.msra.mxu0 0.0
    %515 = vmatprep.subr.mxu0 0.0
    %516 = vmatpush2.msra.mxu0 0.0
    %517 = vmatprep.subr.mxu0 0.0
    %518 = vmatpush2.msra.mxu0 0.0
    %519 = vmatprep.subr.mxu0 0.0
    %520 = vmatpush2.msra.mxu0 0.0
    %521 = vmatprep.subr.mxu0 0.0
    %522 = vmatpush2.msra.mxu0 0.0
    %523 = vmatprep.subr.mxu0 0.0
    %524 = vmatpush2.msra.mxu0 0.0
    %525 = vmatprep.subr.mxu0 0.0
    %526 = vmatpush2.msra.mxu0 0.0
    %527 = vmatprep.subr.mxu0 0.0
    %528 = vmatpush2.msra.mxu0 0.0
    %529 = vmatprep.subr.mxu0 0.0
    %530 = vmatpush2.msra.mxu0 0.0
    %531 = vmatprep.subr.mxu0 0.0
    %532 = vmatpush2.msra.mxu0 0.0
    %533 = vmatprep.subr.mxu0 0.0
    %534 = vmatpush2.msra.mxu0 0.0
    %535 = vmatprep.subr.mxu0 0.0
    %536 = vmatpush2.msra.mxu0 0.0
    %537 = vmatprep.subr.mxu0 0.0
    %538 = vmatpush2.msra.mxu0 0.0
    %539 = vmatprep.subr.mxu0 0.0
    %540 = vmatpush2.msra.mxu0 0.0
    %541 = vmatprep.subr.mxu0 0.0
    %542 = vmatpush2.msra.mxu0 0.0
    %543 = vmatprep.mubr.f32.mxu0 0.0
    %544 = vmatmul.mubr.f32.gmra.mxu0 %v407
    %v545 = vpop.f32.mrf.mxu0
    %v546 = vadd.f32 0.0, %v545
    %v547 = vpop.f32.mrf.mxu0
    %548 = vdwg.mxu0
    %v550 = vrot.slane %v546, 7
    %v552 = vadd.f32 %v292, %v550
    %v553 = vxor.u32 %v552, 2147483648
    %v554 = vmul.f32 %v553, 1.442695
    %v555 = vpow.pop %v554
    %v556 = vadd.f32 %v555, 1.0
    %v557 = vrcp.pop %v556
    %v558 = vmul.f32 1.0, %v557
    %v559 = vadd.f32 %v546, %v213
    %v561 = vrot.slane %v559, 7
    %562 = vrot.lane.b32.xlu0 %v561, 64
    %v563 = vpop.permute.xlu0 %562
    %v565 = vmul.f32 %v558, %v563
    %567 = vrot.lane.b32.xlu0 %v565, 64
    %v568 = vpop.permute.xlu0 %567
    %v570 = vadd.f32 %v292, %v568
    %v571 = vtanh.pop %v570
    %v573 = vrot.slane %v571, 1
    %v575 = vsub.f32 %v403, %v573
    %v577 = vrot.slane %v575, 7
    %578 = vrot.lane.b32.xlu0 %v577, 96
    %v579 = vpop.permute.xlu0 %578
    %v581 = vmul.f32 %v558, %v579
    %583 = vrot.lane.b32.xlu0 %v581, 32
    %v584 = vpop.permute.xlu0 %583
    %v586 = vadd.f32 %v571, %v584
    %v588 = vrot.slane %v586, 1
    %589 = vrot.lane.b32.xlu0 %v588, 64
    %v590 = vpop.permute.xlu0 %589
    %v591 = vsel %vm221, %v590, 0
    %593 = vmatprep.subr.mxu0 0.0
    %594 = vmatpush1.msra.mxu0 0.0
    %595 = vmatprep.subr.mxu0 0.0
    %596 = vmatpush1.msra.mxu0 0.0
    %597 = vmatprep.subr.mxu0 0.0
    %598 = vmatpush1.msra.mxu0 0.0
    %599 = vmatprep.subr.mxu0 0.0
    %600 = vmatpush1.msra.mxu0 0.0
    %601 = vmatprep.subr.mxu0 0.0
    %602 = vmatpush1.msra.mxu0 0.0
    %603 = vmatprep.subr.mxu0 0.0
    %604 = vmatpush1.msra.mxu0 0.0
    %605 = vmatprep.subr.mxu0 0.0
    %606 = vmatpush1.msra.mxu0 0.0
    %607 = vmatprep.subr.mxu0 0.0
    %608 = vmatpush1.msra.mxu0 0.0
    %609 = vmatprep.subr.mxu0 0.0
    %610 = vmatpush1.msra.mxu0 0.0
    %611 = vmatprep.subr.mxu0 0.0
    %612 = vmatpush1.msra.mxu0 0.0
    %613 = vmatprep.subr.mxu0 0.0
    %614 = vmatpush1.msra.mxu0 0.0
    %615 = vmatprep.subr.mxu0 0.0
    %616 = vmatpush1.msra.mxu0 0.0
    %617 = vmatprep.subr.mxu0 0.0
    %618 = vmatpush1.msra.mxu0 %v202
    %619 = vmatprep.subr.mxu0 0.0
    %620 = vmatpush1.msra.mxu0 %v201
    %621 = vmatprep.subr.mxu0 0.0
    %622 = vmatpush1.msra.mxu0 %v200
    %623 = vmatprep.subr.mxu0 0.0
    %624 = vmatpush1.msra.mxu0 %v199
    %625 = vmatprep.subr.mxu0 0.0
    %626 = vmatpush2.msra.mxu0 0.0
    %627 = vmatprep.subr.mxu0 0.0
    %628 = vmatpush2.msra.mxu0 0.0
    %629 = vmatprep.subr.mxu0 0.0
    %630 = vmatpush2.msra.mxu0 0.0
    %631 = vmatprep.subr.mxu0 0.0
    %632 = vmatpush2.msra.mxu0 0.0
    %633 = vmatprep.subr.mxu0 0.0
    %634 = vmatpush2.msra.mxu0 0.0
    %635 = vmatprep.subr.mxu0 0.0
    %636 = vmatpush2.msra.mxu0 0.0
    %637 = vmatprep.subr.mxu0 0.0
    %638 = vmatpush2.msra.mxu0 0.0
    %639 = vmatprep.subr.mxu0 0.0
    %640 = vmatpush2.msra.mxu0 0.0
    %641 = vmatprep.subr.mxu0 0.0
    %642 = vmatpush2.msra.mxu0 0.0
    %643 = vmatprep.subr.mxu0 0.0
    %644 = vmatpush2.msra.mxu0 0.0
    %645 = vmatprep.subr.mxu0 0.0
    %646 = vmatpush2.msra.mxu0 0.0
    %647 = vmatprep.subr.mxu0 0.0
    %648 = vmatpush2.msra.mxu0 0.0
    %649 = vmatprep.subr.mxu0 0.0
    %650 = vmatpush2.msra.mxu0 0.0
    %651 = vmatprep.subr.mxu0 0.0
    %652 = vmatpush2.msra.mxu0 0.0
    %653 = vmatprep.subr.mxu0 0.0
    %654 = vmatpush2.msra.mxu0 0.0
    %655 = vmatprep.subr.mxu0 0.0
    %656 = vmatpush2.msra.mxu0 0.0
    %657 = vmatprep.mubr.f32.mxu0 0.0
    %658 = vmatmul.mubr.f32.gmra.mxu0 %v591
    %v659 = vpop.f32.mrf.mxu0
    %v660 = vadd.f32 %v212, %v659
    %v661 = vpop.f32.mrf.mxu0
    %662 = vdwg.mxu0
    %v664 = vsel %vm221, %v296, 0
    %666 = vmatprep.subr.mxu0 0.0
    %667 = vmatpush1.msra.mxu0 0.0
    %668 = vmatprep.subr.mxu0 0.0
    %669 = vmatpush1.msra.mxu0 0.0
    %670 = vmatprep.subr.mxu0 0.0
    %671 = vmatpush1.msra.mxu0 0.0
    %672 = vmatprep.subr.mxu0 0.0
    %673 = vmatpush1.msra.mxu0 0.0
    %674 = vmatprep.subr.mxu0 0.0
    %675 = vmatpush1.msra.mxu0 0.0
    %676 = vmatprep.subr.mxu0 0.0
    %677 = vmatpush1.msra.mxu0 0.0
    %678 = vmatprep.subr.mxu0 0.0
    %679 = vmatpush1.msra.mxu0 0.0
    %680 = vmatprep.subr.mxu0 0.0
    %681 = vmatpush1.msra.mxu0 0.0
    %682 = vmatprep.subr.mxu0 0.0
    %683 = vmatpush1.msra.mxu0 0.0
    %684 = vmatprep.subr.mxu0 0.0
    %685 = vmatpush1.msra.mxu0 0.0
    %686 = vmatprep.subr.mxu0 0.0
    %687 = vmatpush1.msra.mxu0 0.0
    %688 = vmatprep.subr.mxu0 0.0
    %689 = vmatpush1.msra.mxu0 0.0
    %690 = vmatprep.subr.mxu0 0.0
    %691 = vmatpush1.msra.mxu0 %v210
    %692 = vmatprep.subr.mxu0 0.0
    %693 = vmatpush1.msra.mxu0 %v209
    %694 = vmatprep.subr.mxu0 0.0
    %695 = vmatpush1.msra.mxu0 %v208
    %696 = vmatprep.subr.mxu0 0.0
    %697 = vmatpush1.msra.mxu0 %v207
    %698 = vmatprep.subr.mxu0 0.0
    %699 = vmatpush2.msra.mxu0 0.0
    %700 = vmatprep.subr.mxu0 0.0
    %701 = vmatpush2.msra.mxu0 0.0
    %702 = vmatprep.subr.mxu0 0.0
    %703 = vmatpush2.msra.mxu0 0.0
    %704 = vmatprep.subr.mxu0 0.0
    %705 = vmatpush2.msra.mxu0 0.0
    %706 = vmatprep.subr.mxu0 0.0
    %707 = vmatpush2.msra.mxu0 0.0
    %708 = vmatprep.subr.mxu0 0.0
    %709 = vmatpush2.msra.mxu0 0.0
    %710 = vmatprep.subr.mxu0 0.0
    %711 = vmatpush2.msra.mxu0 0.0
    %712 = vmatprep.subr.mxu0 0.0
    %713 = vmatpush2.msra.mxu0 0.0
    %714 = vmatprep.subr.mxu0 0.0
    %715 = vmatpush2.msra.mxu0 0.0
    %716 = vmatprep.subr.mxu0 0.0
    %717 = vmatpush2.msra.mxu0 0.0
    %718 = vmatprep.subr.mxu0 0.0
    %719 = vmatpush2.msra.mxu0 0.0
    %720 = vmatprep.subr.mxu0 0.0
    %721 = vmatpush2.msra.mxu0 0.0
    %722 = vmatprep.subr.mxu0 0.0
    %723 = vmatpush2.msra.mxu0 0.0
    %724 = vmatprep.subr.mxu0 0.0
    %725 = vmatpush2.msra.mxu0 0.0
    %726 = vmatprep.subr.mxu0 0.0
    %727 = vmatpush2.msra.mxu0 0.0
    %728 = vmatprep.subr.mxu0 0.0
    %729 = vmatpush2.msra.mxu0 0.0
    %730 = vmatprep.mubr.f32.mxu0 0.0
    %731 = vmatmul.mubr.f32.gmra.mxu0 %v664
    %v732 = vpop.f32.mrf.mxu0
    %v733 = vadd.f32 0.0, %v732
    %v734 = vpop.f32.mrf.mxu0
    %735 = vdwg.mxu0
    %v736 = vadd.f32 %v476, %v733
    %v737 = vxor.u32 %v736, 2147483648
    %v738 = vmul.f32 %v737, 1.442695
    %v739 = vpow.pop %v738
    %v740 = vadd.f32 %v739, 1.0
    %v741 = vrcp.pop %v740
    %v742 = vmul.f32 1.0, %v741
    %v743 = vadd.f32 %v733, %v214
    %745 = vrot.lane.b32.xlu0 %v743, 64
    %v746 = vpop.permute.xlu0 %745
    %v748 = vmul.f32 %v742, %v746
    %750 = vrot.lane.b32.xlu0 %v748, 64
    %v751 = vpop.permute.xlu0 %750
    %v753 = vadd.f32 %v476, %v751
    %v754 = vtanh.pop %v753
    %756 = vrot.lane.b32.xlu0 %v754, 64
    %v757 = vpop.permute.xlu0 %756
    %v759 = vsub.f32 %v296, %v757
    %761 = vrot.lane.b32.xlu0 %v759, 32
    %v762 = vpop.permute.xlu0 %761
    %v764 = vmul.f32 %v742, %v762
    %766 = vrot.lane.b32.xlu0 %v764, 32
    %v767 = vpop.permute.xlu0 %766
    %v769 = vadd.f32 %v754, %v767
    %771 = vrot.lane.b32.xlu0 %v769, 64
    %v772 = vpop.permute.xlu0 %771
    %vm774 = vcmask 253952
    %775 = vst.msk [vmem:[#allocation11] sm:$0x1] %vm774, %v772
    %776 = vmatprep.subr.mxu0 0.0
    %777 = vmatpush1.msra.mxu0 0.0
    %778 = vmatprep.subr.mxu0 0.0
    %779 = vmatpush1.msra.mxu0 0.0
    %780 = vmatprep.subr.mxu0 0.0
    %781 = vmatpush1.msra.mxu0 0.0
    %782 = vmatprep.subr.mxu0 0.0
    %783 = vmatpush1.msra.mxu0 0.0
    %784 = vmatprep.subr.mxu0 0.0
    %785 = vmatpush1.msra.mxu0 0.0
    %786 = vmatprep.subr.mxu0 0.0
    %787 = vmatpush1.msra.mxu0 0.0
    %788 = vmatprep.subr.mxu0 0.0
    %789 = vmatpush1.msra.mxu0 0.0
    %790 = vmatprep.subr.mxu0 0.0
    %791 = vmatpush1.msra.mxu0 0.0
    %792 = vmatprep.subr.mxu0 0.0
    %793 = vmatpush1.msra.mxu0 0.0
    %794 = vmatprep.subr.mxu0 0.0
    %795 = vmatpush1.msra.mxu0 0.0
    %796 = vmatprep.subr.mxu0 0.0
    %797 = vmatpush1.msra.mxu0 0.0
    %798 = vmatprep.subr.mxu0 0.0
    %799 = vmatpush1.msra.mxu0 0.0
    %800 = vmatprep.subr.mxu0 0.0
    %801 = vmatpush1.msra.mxu0 %v206
    %802 = vmatprep.subr.mxu0 0.0
    %803 = vmatpush1.msra.mxu0 %v205
    %804 = vmatprep.subr.mxu0 0.0
    %805 = vmatpush1.msra.mxu0 %v204
    %806 = vmatprep.subr.mxu0 0.0
    %807 = vmatpush1.msra.mxu0 %v203
    %808 = vmatprep.subr.mxu0 0.0
    %809 = vmatpush2.msra.mxu0 0.0
    %810 = vmatprep.subr.mxu0 0.0
    %811 = vmatpush2.msra.mxu0 0.0
    %812 = vmatprep.subr.mxu0 0.0
    %813 = vmatpush2.msra.mxu0 0.0
    %814 = vmatprep.subr.mxu0 0.0
    %815 = vmatpush2.msra.mxu0 0.0
    %816 = vmatprep.subr.mxu0 0.0
    %817 = vmatpush2.msra.mxu0 0.0
    %818 = vmatprep.subr.mxu0 0.0
    %819 = vmatpush2.msra.mxu0 0.0
    %820 = vmatprep.subr.mxu0 0.0
    %821 = vmatpush2.msra.mxu0 0.0
    %822 = vmatprep.subr.mxu0 0.0
    %823 = vmatpush2.msra.mxu0 0.0
    %824 = vmatprep.subr.mxu0 0.0
    %825 = vmatpush2.msra.mxu0 0.0
    %826 = vmatprep.subr.mxu0 0.0
    %827 = vmatpush2.msra.mxu0 0.0
    %828 = vmatprep.subr.mxu0 0.0
    %829 = vmatpush2.msra.mxu0 0.0
    %830 = vmatprep.subr.mxu0 0.0
    %831 = vmatpush2.msra.mxu0 0.0
    %832 = vmatprep.subr.mxu0 0.0
    %833 = vmatpush2.msra.mxu0 0.0
    %834 = vmatprep.subr.mxu0 0.0
    %835 = vmatpush2.msra.mxu0 0.0
    %836 = vmatprep.subr.mxu0 0.0
    %837 = vmatpush2.msra.mxu0 0.0
    %838 = vmatprep.subr.mxu0 0.0
    %839 = vmatpush2.msra.mxu0 0.0
    %840 = vmatprep.mubr.f32.mxu0 0.0
    %841 = vmatmul.mubr.f32.gmra.mxu0 %v591
    %v842 = vpop.f32.mrf.mxu0
    %v843 = vadd.f32 0.0, %v842
    %v844 = vpop.f32.mrf.mxu0
    %845 = vdwg.mxu0
    %v847 = vrot.slane %v843, 6
    %v849 = vadd.f32 %v292, %v847
    %v850 = vxor.u32 %v849, 2147483648
    %v851 = vmul.f32 %v850, 1.442695
    %v852 = vpow.pop %v851
    %v853 = vadd.f32 %v852, 1.0
    %v854 = vrcp.pop %v853
    %v855 = vmul.f32 1.0, %v854
    %v856 = vadd.f32 %v843, %v213
    %v858 = vrot.slane %v856, 6
    %859 = vrot.lane.b32.xlu0 %v858, 64
    %v860 = vpop.permute.xlu0 %859
    %v862 = vmul.f32 %v855, %v860
    %864 = vrot.lane.b32.xlu0 %v862, 64
    %v865 = vpop.permute.xlu0 %864
    %v867 = vadd.f32 %v292, %v865
    %v868 = vtanh.pop %v867
    %v870 = vrot.slane %v868, 1
    %v872 = vsub.f32 %v586, %v870
    %v874 = vrot.slane %v872, 7
    %875 = vrot.lane.b32.xlu0 %v874, 96
    %v876 = vpop.permute.xlu0 %875
    %v878 = vmul.f32 %v855, %v876
    %880 = vrot.lane.b32.xlu0 %v878, 32
    %v881 = vpop.permute.xlu0 %880
    %v883 = vadd.f32 %v868, %v881
    %v885 = vrot.slane %v883, 2
    %886 = vrot.lane.b32.xlu0 %v885, 64
    %v887 = vpop.permute.xlu0 %886
    %v888 = vsel %vm221, %v887, 0
    %890 = vmatprep.subr.mxu0 0.0
    %891 = vmatpush1.msra.mxu0 0.0
    %892 = vmatprep.subr.mxu0 0.0
    %893 = vmatpush1.msra.mxu0 0.0
    %894 = vmatprep.subr.mxu0 0.0
    %895 = vmatpush1.msra.mxu0 0.0
    %896 = vmatprep.subr.mxu0 0.0
    %897 = vmatpush1.msra.mxu0 0.0
    %898 = vmatprep.subr.mxu0 0.0
    %899 = vmatpush1.msra.mxu0 0.0
    %900 = vmatprep.subr.mxu0 0.0
    %901 = vmatpush1.msra.mxu0 0.0
    %902 = vmatprep.subr.mxu0 0.0
    %903 = vmatpush1.msra.mxu0 0.0
    %904 = vmatprep.subr.mxu0 0.0
    %905 = vmatpush1.msra.mxu0 0.0
    %906 = vmatprep.subr.mxu0 0.0
    %907 = vmatpush1.msra.mxu0 0.0
    %908 = vmatprep.subr.mxu0 0.0
    %909 = vmatpush1.msra.mxu0 0.0
    %910 = vmatprep.subr.mxu0 0.0
    %911 = vmatpush1.msra.mxu0 0.0
    %912 = vmatprep.subr.mxu0 0.0
    %913 = vmatpush1.msra.mxu0 0.0
    %914 = vmatprep.subr.mxu0 0.0
    %915 = vmatpush1.msra.mxu0 %v202
    %916 = vmatprep.subr.mxu0 0.0
    %917 = vmatpush1.msra.mxu0 %v201
    %918 = vmatprep.subr.mxu0 0.0
    %919 = vmatpush1.msra.mxu0 %v200
    %920 = vmatprep.subr.mxu0 0.0
    %921 = vmatpush1.msra.mxu0 %v199
    %922 = vmatprep.subr.mxu0 0.0
    %923 = vmatpush2.msra.mxu0 0.0
    %924 = vmatprep.subr.mxu0 0.0
    %925 = vmatpush2.msra.mxu0 0.0
    %926 = vmatprep.subr.mxu0 0.0
    %927 = vmatpush2.msra.mxu0 0.0
    %928 = vmatprep.subr.mxu0 0.0
    %929 = vmatpush2.msra.mxu0 0.0
    %930 = vmatprep.subr.mxu0 0.0
    %931 = vmatpush2.msra.mxu0 0.0
    %932 = vmatprep.subr.mxu0 0.0
    %933 = vmatpush2.msra.mxu0 0.0
    %934 = vmatprep.subr.mxu0 0.0
    %935 = vmatpush2.msra.mxu0 0.0
    %936 = vmatprep.subr.mxu0 0.0
    %937 = vmatpush2.msra.mxu0 0.0
    %938 = vmatprep.subr.mxu0 0.0
    %939 = vmatpush2.msra.mxu0 0.0
    %940 = vmatprep.subr.mxu0 0.0
    %941 = vmatpush2.msra.mxu0 0.0
    %942 = vmatprep.subr.mxu0 0.0
    %943 = vmatpush2.msra.mxu0 0.0
    %944 = vmatprep.subr.mxu0 0.0
    %945 = vmatpush2.msra.mxu0 0.0
    %946 = vmatprep.subr.mxu0 0.0
    %947 = vmatpush2.msra.mxu0 0.0
    %948 = vmatprep.subr.mxu0 0.0
    %949 = vmatpush2.msra.mxu0 0.0
    %950 = vmatprep.subr.mxu0 0.0
    %951 = vmatpush2.msra.mxu0 0.0
    %952 = vmatprep.subr.mxu0 0.0
    %953 = vmatpush2.msra.mxu0 0.0
    %954 = vmatprep.mubr.f32.mxu0 0.0
    %955 = vmatmul.mubr.f32.gmra.mxu0 %v888
    %v956 = vpop.f32.mrf.mxu0
    %v957 = vadd.f32 %v212, %v956
    %v958 = vpop.f32.mrf.mxu0
    %959 = vdwg.mxu0
    %v960 = vsel %vm221, %v772, 0
    %962 = vmatprep.subr.mxu0 0.0
    %963 = vmatpush1.msra.mxu0 0.0
    %964 = vmatprep.subr.mxu0 0.0
    %965 = vmatpush1.msra.mxu0 0.0
    %966 = vmatprep.subr.mxu0 0.0
    %967 = vmatpush1.msra.mxu0 0.0
    %968 = vmatprep.subr.mxu0 0.0
    %969 = vmatpush1.msra.mxu0 0.0
    %970 = vmatprep.subr.mxu0 0.0
    %971 = vmatpush1.msra.mxu0 0.0
    %972 = vmatprep.subr.mxu0 0.0
    %973 = vmatpush1.msra.mxu0 0.0
    %974 = vmatprep.subr.mxu0 0.0
    %975 = vmatpush1.msra.mxu0 0.0
    %976 = vmatprep.subr.mxu0 0.0
    %977 = vmatpush1.msra.mxu0 0.0
    %978 = vmatprep.subr.mxu0 0.0
    %979 = vmatpush1.msra.mxu0 0.0
    %980 = vmatprep.subr.mxu0 0.0
    %981 = vmatpush1.msra.mxu0 0.0
    %982 = vmatprep.subr.mxu0 0.0
    %983 = vmatpush1.msra.mxu0 0.0
    %984 = vmatprep.subr.mxu0 0.0
    %985 = vmatpush1.msra.mxu0 0.0
    %986 = vmatprep.subr.mxu0 0.0
    %987 = vmatpush1.msra.mxu0 %v210
    %988 = vmatprep.subr.mxu0 0.0
    %989 = vmatpush1.msra.mxu0 %v209
    %990 = vmatprep.subr.mxu0 0.0
    %991 = vmatpush1.msra.mxu0 %v208
    %992 = vmatprep.subr.mxu0 0.0
    %993 = vmatpush1.msra.mxu0 %v207
    %994 = vmatprep.subr.mxu0 0.0
    %995 = vmatpush2.msra.mxu0 0.0
    %996 = vmatprep.subr.mxu0 0.0
    %997 = vmatpush2.msra.mxu0 0.0
    %998 = vmatprep.subr.mxu0 0.0
    %999 = vmatpush2.msra.mxu0 0.0
    %1000 = vmatprep.subr.mxu0 0.0
    %1001 = vmatpush2.msra.mxu0 0.0
    %1002 = vmatprep.subr.mxu0 0.0
    %1003 = vmatpush2.msra.mxu0 0.0
    %1004 = vmatprep.subr.mxu0 0.0
    %1005 = vmatpush2.msra.mxu0 0.0
    %1006 = vmatprep.subr.mxu0 0.0
    %1007 = vmatpush2.msra.mxu0 0.0
    %1008 = vmatprep.subr.mxu0 0.0
    %1009 = vmatpush2.msra.mxu0 0.0
    %1010 = vmatprep.subr.mxu0 0.0
    %1011 = vmatpush2.msra.mxu0 0.0
    %1012 = vmatprep.subr.mxu0 0.0
    %1013 = vmatpush2.msra.mxu0 0.0
    %1014 = vmatprep.subr.mxu0 0.0
    %1015 = vmatpush2.msra.mxu0 0.0
    %1016 = vmatprep.subr.mxu0 0.0
    %1017 = vmatpush2.msra.mxu0 0.0
    %1018 = vmatprep.subr.mxu0 0.0
    %1019 = vmatpush2.msra.mxu0 0.0
    %1020 = vmatprep.subr.mxu0 0.0
    %1021 = vmatpush2.msra.mxu0 0.0
    %1022 = vmatprep.subr.mxu0 0.0
    %1023 = vmatpush2.msra.mxu0 0.0
    %1024 = vmatprep.subr.mxu0 0.0
    %1025 = vmatpush2.msra.mxu0 0.0
    %1026 = vmatprep.mubr.f32.mxu0 0.0
    %1027 = vmatmul.mubr.f32.gmra.mxu0 %v960
    %v1028 = vpop.f32.mrf.mxu0
    %v1029 = vadd.f32 0.0, %v1028
    %v1030 = vpop.f32.mrf.mxu0
    %1031 = vdwg.mxu0
    %v1032 = vadd.f32 %v660, %v1029
    %v1033 = vxor.u32 %v1032, 2147483648
    %v1034 = vmul.f32 %v1033, 1.442695
    %v1035 = vpow.pop %v1034
    %v1036 = vadd.f32 %v1035, 1.0
    %v1037 = vrcp.pop %v1036
    %v1038 = vmul.f32 1.0, %v1037
    %v1039 = vadd.f32 %v1029, %v214
    %1041 = vrot.lane.b32.xlu0 %v1039, 64
    %v1042 = vpop.permute.xlu0 %1041
    %v1044 = vmul.f32 %v1038, %v1042
    %1046 = vrot.lane.b32.xlu0 %v1044, 64
    %v1047 = vpop.permute.xlu0 %1046
    %v1049 = vadd.f32 %v660, %v1047
    %v1050 = vtanh.pop %v1049
    %v1051 = vsub.f32 %v769, %v1050
    %1053 = vrot.lane.b32.xlu0 %v1051, 96
    %v1054 = vpop.permute.xlu0 %1053
    %v1056 = vmul.f32 %v1038, %v1054
    %1058 = vrot.lane.b32.xlu0 %v1056, 32
    %v1059 = vpop.permute.xlu0 %1058
    %v1061 = vadd.f32 %v1050, %v1059
    %1063 = vrot.lane.b32.xlu0 %v1061, 64
    %v1064 = vpop.permute.xlu0 %1063
    %1066 = vst.msk [vmem:[#allocation11 + $0x1] sm:$0x1] %vm774, %v1064
    %1067 = vmatprep.subr.mxu0 0.0
    %1068 = vmatpush1.msra.mxu0 0.0
    %1069 = vmatprep.subr.mxu0 0.0
    %1070 = vmatpush1.msra.mxu0 0.0
    %1071 = vmatprep.subr.mxu0 0.0
    %1072 = vmatpush1.msra.mxu0 0.0
    %1073 = vmatprep.subr.mxu0 0.0
    %1074 = vmatpush1.msra.mxu0 0.0
    %1075 = vmatprep.subr.mxu0 0.0
    %1076 = vmatpush1.msra.mxu0 0.0
    %1077 = vmatprep.subr.mxu0 0.0
    %1078 = vmatpush1.msra.mxu0 0.0
    %1079 = vmatprep.subr.mxu0 0.0
    %1080 = vmatpush1.msra.mxu0 0.0
    %1081 = vmatprep.subr.mxu0 0.0
    %1082 = vmatpush1.msra.mxu0 0.0
    %1083 = vmatprep.subr.mxu0 0.0
    %1084 = vmatpush1.msra.mxu0 0.0
    %1085 = vmatprep.subr.mxu0 0.0
    %1086 = vmatpush1.msra.mxu0 0.0
    %1087 = vmatprep.subr.mxu0 0.0
    %1088 = vmatpush1.msra.mxu0 0.0
    %1089 = vmatprep.subr.mxu0 0.0
    %1090 = vmatpush1.msra.mxu0 0.0
    %1091 = vmatprep.subr.mxu0 0.0
    %1092 = vmatpush1.msra.mxu0 %v206
    %1093 = vmatprep.subr.mxu0 0.0
    %1094 = vmatpush1.msra.mxu0 %v205
    %1095 = vmatprep.subr.mxu0 0.0
    %1096 = vmatpush1.msra.mxu0 %v204
    %1097 = vmatprep.subr.mxu0 0.0
    %1098 = vmatpush1.msra.mxu0 %v203
    %1099 = vmatprep.subr.mxu0 0.0
    %1100 = vmatpush2.msra.mxu0 0.0
    %1101 = vmatprep.subr.mxu0 0.0
    %1102 = vmatpush2.msra.mxu0 0.0
    %1103 = vmatprep.subr.mxu0 0.0
    %1104 = vmatpush2.msra.mxu0 0.0
    %1105 = vmatprep.subr.mxu0 0.0
    %1106 = vmatpush2.msra.mxu0 0.0
    %1107 = vmatprep.subr.mxu0 0.0
    %1108 = vmatpush2.msra.mxu0 0.0
    %1109 = vmatprep.subr.mxu0 0.0
    %1110 = vmatpush2.msra.mxu0 0.0
    %1111 = vmatprep.subr.mxu0 0.0
    %1112 = vmatpush2.msra.mxu0 0.0
    %1113 = vmatprep.subr.mxu0 0.0
    %1114 = vmatpush2.msra.mxu0 0.0
    %1115 = vmatprep.subr.mxu0 0.0
    %1116 = vmatpush2.msra.mxu0 0.0
    %1117 = vmatprep.subr.mxu0 0.0
    %1118 = vmatpush2.msra.mxu0 0.0
    %1119 = vmatprep.subr.mxu0 0.0
    %1120 = vmatpush2.msra.mxu0 0.0
    %1121 = vmatprep.subr.mxu0 0.0
    %1122 = vmatpush2.msra.mxu0 0.0
    %1123 = vmatprep.subr.mxu0 0.0
    %1124 = vmatpush2.msra.mxu0 0.0
    %1125 = vmatprep.subr.mxu0 0.0
    %1126 = vmatpush2.msra.mxu0 0.0
    %1127 = vmatprep.subr.mxu0 0.0
    %1128 = vmatpush2.msra.mxu0 0.0
    %1129 = vmatprep.subr.mxu0 0.0
    %1130 = vmatpush2.msra.mxu0 0.0
    %1131 = vmatprep.mubr.f32.mxu0 0.0
    %1132 = vmatmul.mubr.f32.gmra.mxu0 %v888
    %v1133 = vpop.f32.mrf.mxu0
    %v1134 = vadd.f32 0.0, %v1133
    %v1135 = vpop.f32.mrf.mxu0
    %1136 = vdwg.mxu0
    %v1138 = vrot.slane %v1134, 5
    %v1140 = vadd.f32 %v292, %v1138
    %v1141 = vxor.u32 %v1140, 2147483648
    %v1142 = vmul.f32 %v1141, 1.442695
    %v1143 = vpow.pop %v1142
    %v1144 = vadd.f32 %v1143, 1.0
    %v1145 = vrcp.pop %v1144
    %v1146 = vmul.f32 1.0, %v1145
    %v1147 = vadd.f32 %v1134, %v213
    %v1149 = vrot.slane %v1147, 5
    %1150 = vrot.lane.b32.xlu0 %v1149, 64
    %v1151 = vpop.permute.xlu0 %1150
    %v1153 = vmul.f32 %v1146, %v1151
    %1155 = vrot.lane.b32.xlu0 %v1153, 64
    %v1156 = vpop.permute.xlu0 %1155
    %v1158 = vadd.f32 %v292, %v1156
    %v1159 = vtanh.pop %v1158
    %v1161 = vrot.slane %v1159, 1
    %v1163 = vsub.f32 %v883, %v1161
    %v1165 = vrot.slane %v1163, 7
    %1166 = vrot.lane.b32.xlu0 %v1165, 96
    %v1167 = vpop.permute.xlu0 %1166
    %v1169 = vmul.f32 %v1146, %v1167
    %1171 = vrot.lane.b32.xlu0 %v1169, 32
    %v1172 = vpop.permute.xlu0 %1171
    %v1174 = vadd.f32 %v1159, %v1172
    %v1176 = vrot.slane %v1174, 3
    %1177 = vrot.lane.b32.xlu0 %v1176, 64
    %v1178 = vpop.permute.xlu0 %1177
    %v1179 = vsel %vm221, %v1178, 0
    %1181 = vmatprep.subr.mxu0 0.0
    %1182 = vmatpush1.msra.mxu0 0.0
    %1183 = vmatprep.subr.mxu0 0.0
    %1184 = vmatpush1.msra.mxu0 0.0
    %1185 = vmatprep.subr.mxu0 0.0
    %1186 = vmatpush1.msra.mxu0 0.0
    %1187 = vmatprep.subr.mxu0 0.0
    %1188 = vmatpush1.msra.mxu0 0.0
    %1189 = vmatprep.subr.mxu0 0.0
    %1190 = vmatpush1.msra.mxu0 0.0
    %1191 = vmatprep.subr.mxu0 0.0
    %1192 = vmatpush1.msra.mxu0 0.0
    %1193 = vmatprep.subr.mxu0 0.0
    %1194 = vmatpush1.msra.mxu0 0.0
    %1195 = vmatprep.subr.mxu0 0.0
    %1196 = vmatpush1.msra.mxu0 0.0
    %1197 = vmatprep.subr.mxu0 0.0
    %1198 = vmatpush1.msra.mxu0 0.0
    %1199 = vmatprep.subr.mxu0 0.0
    %1200 = vmatpush1.msra.mxu0 0.0
    %1201 = vmatprep.subr.mxu0 0.0
    %1202 = vmatpush1.msra.mxu0 0.0
    %1203 = vmatprep.subr.mxu0 0.0
    %1204 = vmatpush1.msra.mxu0 0.0
    %1205 = vmatprep.subr.mxu0 0.0
    %1206 = vmatpush1.msra.mxu0 %v202
    %1207 = vmatprep.subr.mxu0 0.0
    %1208 = vmatpush1.msra.mxu0 %v201
    %1209 = vmatprep.subr.mxu0 0.0
    %1210 = vmatpush1.msra.mxu0 %v200
    %1211 = vmatprep.subr.mxu0 0.0
    %1212 = vmatpush1.msra.mxu0 %v199
    %1213 = vmatprep.subr.mxu0 0.0
    %1214 = vmatpush2.msra.mxu0 0.0
    %1215 = vmatprep.subr.mxu0 0.0
    %1216 = vmatpush2.msra.mxu0 0.0
    %1217 = vmatprep.subr.mxu0 0.0
    %1218 = vmatpush2.msra.mxu0 0.0
    %1219 = vmatprep.subr.mxu0 0.0
    %1220 = vmatpush2.msra.mxu0 0.0
    %1221 = vmatprep.subr.mxu0 0.0
    %1222 = vmatpush2.msra.mxu0 0.0
    %1223 = vmatprep.subr.mxu0 0.0
    %1224 = vmatpush2.msra.mxu0 0.0
    %1225 = vmatprep.subr.mxu0 0.0
    %1226 = vmatpush2.msra.mxu0 0.0
    %1227 = vmatprep.subr.mxu0 0.0
    %1228 = vmatpush2.msra.mxu0 0.0
    %1229 = vmatprep.subr.mxu0 0.0
    %1230 = vmatpush2.msra.mxu0 0.0
    %1231 = vmatprep.subr.mxu0 0.0
    %1232 = vmatpush2.msra.mxu0 0.0
    %1233 = vmatprep.subr.mxu0 0.0
    %1234 = vmatpush2.msra.mxu0 0.0
    %1235 = vmatprep.subr.mxu0 0.0
    %1236 = vmatpush2.msra.mxu0 0.0
    %1237 = vmatprep.subr.mxu0 0.0
    %1238 = vmatpush2.msra.mxu0 0.0
    %1239 = vmatprep.subr.mxu0 0.0
    %1240 = vmatpush2.msra.mxu0 0.0
    %1241 = vmatprep.subr.mxu0 0.0
    %1242 = vmatpush2.msra.mxu0 0.0
    %1243 = vmatprep.subr.mxu0 0.0
    %1244 = vmatpush2.msra.mxu0 0.0
    %1245 = vmatprep.mubr.f32.mxu0 0.0
    %1246 = vmatmul.mubr.f32.gmra.mxu0 %v1179
    %v1247 = vpop.f32.mrf.mxu0
    %v1248 = vadd.f32 %v212, %v1247
    %v1249 = vpop.f32.mrf.mxu0
    %1250 = vdwg.mxu0
    %v1251 = vsel %vm221, %v1064, 0
    %1253 = vmatprep.subr.mxu0 0.0
    %1254 = vmatpush1.msra.mxu0 0.0
    %1255 = vmatprep.subr.mxu0 0.0
    %1256 = vmatpush1.msra.mxu0 0.0
    %1257 = vmatprep.subr.mxu0 0.0
    %1258 = vmatpush1.msra.mxu0 0.0
    %1259 = vmatprep.subr.mxu0 0.0
    %1260 = vmatpush1.msra.mxu0 0.0
    %1261 = vmatprep.subr.mxu0 0.0
    %1262 = vmatpush1.msra.mxu0 0.0
    %1263 = vmatprep.subr.mxu0 0.0
    %1264 = vmatpush1.msra.mxu0 0.0
    %1265 = vmatprep.subr.mxu0 0.0
    %1266 = vmatpush1.msra.mxu0 0.0
    %1267 = vmatprep.subr.mxu0 0.0
    %1268 = vmatpush1.msra.mxu0 0.0
    %1269 = vmatprep.subr.mxu0 0.0
    %1270 = vmatpush1.msra.mxu0 0.0
    %1271 = vmatprep.subr.mxu0 0.0
    %1272 = vmatpush1.msra.mxu0 0.0
    %1273 = vmatprep.subr.mxu0 0.0
    %1274 = vmatpush1.msra.mxu0 0.0
    %1275 = vmatprep.subr.mxu0 0.0
    %1276 = vmatpush1.msra.mxu0 0.0
    %1277 = vmatprep.subr.mxu0 0.0
    %1278 = vmatpush1.msra.mxu0 %v210
    %1279 = vmatprep.subr.mxu0 0.0
    %1280 = vmatpush1.msra.mxu0 %v209
    %1281 = vmatprep.subr.mxu0 0.0
    %1282 = vmatpush1.msra.mxu0 %v208
    %1283 = vmatprep.subr.mxu0 0.0
    %1284 = vmatpush1.msra.mxu0 %v207
    %1285 = vmatprep.subr.mxu0 0.0
    %1286 = vmatpush2.msra.mxu0 0.0
    %1287 = vmatprep.subr.mxu0 0.0
    %1288 = vmatpush2.msra.mxu0 0.0
    %1289 = vmatprep.subr.mxu0 0.0
    %1290 = vmatpush2.msra.mxu0 0.0
    %1291 = vmatprep.subr.mxu0 0.0
    %1292 = vmatpush2.msra.mxu0 0.0
    %1293 = vmatprep.subr.mxu0 0.0
    %1294 = vmatpush2.msra.mxu0 0.0
    %1295 = vmatprep.subr.mxu0 0.0
    %1296 = vmatpush2.msra.mxu0 0.0
    %1297 = vmatprep.subr.mxu0 0.0
    %1298 = vmatpush2.msra.mxu0 0.0
    %1299 = vmatprep.subr.mxu0 0.0
    %1300 = vmatpush2.msra.mxu0 0.0
    %1301 = vmatprep.subr.mxu0 0.0
    %1302 = vmatpush2.msra.mxu0 0.0
    %1303 = vmatprep.subr.mxu0 0.0
    %1304 = vmatpush2.msra.mxu0 0.0
    %1305 = vmatprep.subr.mxu0 0.0
    %1306 = vmatpush2.msra.mxu0 0.0
    %1307 = vmatprep.subr.mxu0 0.0
    %1308 = vmatpush2.msra.mxu0 0.0
    %1309 = vmatprep.subr.mxu0 0.0
    %1310 = vmatpush2.msra.mxu0 0.0
    %1311 = vmatprep.subr.mxu0 0.0
    %1312 = vmatpush2.msra.mxu0 0.0
    %1313 = vmatprep.subr.mxu0 0.0
    %1314 = vmatpush2.msra.mxu0 0.0
    %1315 = vmatprep.subr.mxu0 0.0
    %1316 = vmatpush2.msra.mxu0 0.0
    %1317 = vmatprep.mubr.f32.mxu0 0.0
    %1318 = vmatmul.mubr.f32.gmra.mxu0 %v1251
    %v1319 = vpop.f32.mrf.mxu0
    %v1320 = vadd.f32 0.0, %v1319
    %v1321 = vpop.f32.mrf.mxu0
    %1322 = vdwg.mxu0
    %v1323 = vadd.f32 %v957, %v1320
    %v1324 = vxor.u32 %v1323, 2147483648
    %v1325 = vmul.f32 %v1324, 1.442695
    %v1326 = vpow.pop %v1325
    %v1327 = vadd.f32 %v1326, 1.0
    %v1328 = vrcp.pop %v1327
    %v1329 = vmul.f32 1.0, %v1328
    %v1330 = vadd.f32 %v1320, %v214
    %1332 = vrot.lane.b32.xlu0 %v1330, 64
    %v1333 = vpop.permute.xlu0 %1332
    %v1335 = vmul.f32 %v1329, %v1333
    %1337 = vrot.lane.b32.xlu0 %v1335, 64
    %v1338 = vpop.permute.xlu0 %1337
    %v1340 = vadd.f32 %v957, %v1338
    %v1341 = vtanh.pop %v1340
    %v1342 = vsub.f32 %v1061, %v1341
    %1344 = vrot.lane.b32.xlu0 %v1342, 96
    %v1345 = vpop.permute.xlu0 %1344
    %v1347 = vmul.f32 %v1329, %v1345
    %1349 = vrot.lane.b32.xlu0 %v1347, 32
    %v1350 = vpop.permute.xlu0 %1349
    %v1352 = vadd.f32 %v1341, %v1350
    %1354 = vrot.lane.b32.xlu0 %v1352, 64
    %v1355 = vpop.permute.xlu0 %1354
    %1357 = vst.msk [vmem:[#allocation11 + $0x2] sm:$0x1] %vm774, %v1355
    %1358 = vmatprep.subr.mxu0 0.0
    %1359 = vmatpush1.msra.mxu0 0.0
    %1360 = vmatprep.subr.mxu0 0.0
    %1361 = vmatpush1.msra.mxu0 0.0
    %1362 = vmatprep.subr.mxu0 0.0
    %1363 = vmatpush1.msra.mxu0 0.0
    %1364 = vmatprep.subr.mxu0 0.0
    %1365 = vmatpush1.msra.mxu0 0.0
    %1366 = vmatprep.subr.mxu0 0.0
    %1367 = vmatpush1.msra.mxu0 0.0
    %1368 = vmatprep.subr.mxu0 0.0
    %1369 = vmatpush1.msra.mxu0 0.0
    %1370 = vmatprep.subr.mxu0 0.0
    %1371 = vmatpush1.msra.mxu0 0.0
    %1372 = vmatprep.subr.mxu0 0.0
    %1373 = vmatpush1.msra.mxu0 0.0
    %1374 = vmatprep.subr.mxu0 0.0
    %1375 = vmatpush1.msra.mxu0 0.0
    %1376 = vmatprep.subr.mxu0 0.0
    %1377 = vmatpush1.msra.mxu0 0.0
    %1378 = vmatprep.subr.mxu0 0.0
    %1379 = vmatpush1.msra.mxu0 0.0
    %1380 = vmatprep.subr.mxu0 0.0
    %1381 = vmatpush1.msra.mxu0 0.0
    %1382 = vmatprep.subr.mxu0 0.0
    %1383 = vmatpush1.msra.mxu0 %v206
    %1384 = vmatprep.subr.mxu0 0.0
    %1385 = vmatpush1.msra.mxu0 %v205
    %1386 = vmatprep.subr.mxu0 0.0
    %1387 = vmatpush1.msra.mxu0 %v204
    %1388 = vmatprep.subr.mxu0 0.0
    %1389 = vmatpush1.msra.mxu0 %v203
    %1390 = vmatprep.subr.mxu0 0.0
    %1391 = vmatpush2.msra.mxu0 0.0
    %1392 = vmatprep.subr.mxu0 0.0
    %1393 = vmatpush2.msra.mxu0 0.0
    %1394 = vmatprep.subr.mxu0 0.0
    %1395 = vmatpush2.msra.mxu0 0.0
    %1396 = vmatprep.subr.mxu0 0.0
    %1397 = vmatpush2.msra.mxu0 0.0
    %1398 = vmatprep.subr.mxu0 0.0
    %1399 = vmatpush2.msra.mxu0 0.0
    %1400 = vmatprep.subr.mxu0 0.0
    %1401 = vmatpush2.msra.mxu0 0.0
    %1402 = vmatprep.subr.mxu0 0.0
    %1403 = vmatpush2.msra.mxu0 0.0
    %1404 = vmatprep.subr.mxu0 0.0
    %1405 = vmatpush2.msra.mxu0 0.0
    %1406 = vmatprep.subr.mxu0 0.0
    %1407 = vmatpush2.msra.mxu0 0.0
    %1408 = vmatprep.subr.mxu0 0.0
    %1409 = vmatpush2.msra.mxu0 0.0
    %1410 = vmatprep.subr.mxu0 0.0
    %1411 = vmatpush2.msra.mxu0 0.0
    %1412 = vmatprep.subr.mxu0 0.0
    %1413 = vmatpush2.msra.mxu0 0.0
    %1414 = vmatprep.subr.mxu0 0.0
    %1415 = vmatpush2.msra.mxu0 0.0
    %1416 = vmatprep.subr.mxu0 0.0
    %1417 = vmatpush2.msra.mxu0 0.0
    %1418 = vmatprep.subr.mxu0 0.0
    %1419 = vmatpush2.msra.mxu0 0.0
    %1420 = vmatprep.subr.mxu0 0.0
    %1421 = vmatpush2.msra.mxu0 0.0
    %1422 = vmatprep.mubr.f32.mxu0 0.0
    %1423 = vmatmul.mubr.f32.gmra.mxu0 %v1179
    %v1424 = vpop.f32.mrf.mxu0
    %v1425 = vadd.f32 0.0, %v1424
    %v1426 = vpop.f32.mrf.mxu0
    %1427 = vdwg.mxu0
    %v1429 = vrot.slane %v1425, 4
    %v1431 = vadd.f32 %v292, %v1429
    %v1432 = vxor.u32 %v1431, 2147483648
    %v1433 = vmul.f32 %v1432, 1.442695
    %v1434 = vpow.pop %v1433
    %v1435 = vadd.f32 %v1434, 1.0
    %v1436 = vrcp.pop %v1435
    %v1437 = vmul.f32 1.0, %v1436
    %v1438 = vadd.f32 %v1425, %v213
    %v1440 = vrot.slane %v1438, 4
    %1441 = vrot.lane.b32.xlu0 %v1440, 64
    %v1442 = vpop.permute.xlu0 %1441
    %v1444 = vmul.f32 %v1437, %v1442
    %1446 = vrot.lane.b32.xlu0 %v1444, 64
    %v1447 = vpop.permute.xlu0 %1446
    %v1449 = vadd.f32 %v292, %v1447
    %v1450 = vtanh.pop %v1449
    %v1452 = vrot.slane %v1450, 1
    %v1454 = vsub.f32 %v1174, %v1452
    %v1456 = vrot.slane %v1454, 7
    %1457 = vrot.lane.b32.xlu0 %v1456, 96
    %v1458 = vpop.permute.xlu0 %1457
    %v1460 = vmul.f32 %v1437, %v1458
    %1462 = vrot.lane.b32.xlu0 %v1460, 32
    %v1463 = vpop.permute.xlu0 %1462
    %v1465 = vadd.f32 %v1450, %v1463
    %v1467 = vrot.slane %v1465, 4
    %1468 = vrot.lane.b32.xlu0 %v1467, 64
    %v1469 = vpop.permute.xlu0 %1468
    %v1470 = vsel %vm221, %v1469, 0
    %1472 = vmatprep.subr.mxu0 0.0
    %1473 = vmatpush1.msra.mxu0 0.0
    %1474 = vmatprep.subr.mxu0 0.0
    %1475 = vmatpush1.msra.mxu0 0.0
    %1476 = vmatprep.subr.mxu0 0.0
    %1477 = vmatpush1.msra.mxu0 0.0
    %1478 = vmatprep.subr.mxu0 0.0
    %1479 = vmatpush1.msra.mxu0 0.0
    %1480 = vmatprep.subr.mxu0 0.0
    %1481 = vmatpush1.msra.mxu0 0.0
    %1482 = vmatprep.subr.mxu0 0.0
    %1483 = vmatpush1.msra.mxu0 0.0
    %1484 = vmatprep.subr.mxu0 0.0
    %1485 = vmatpush1.msra.mxu0 0.0
    %1486 = vmatprep.subr.mxu0 0.0
    %1487 = vmatpush1.msra.mxu0 0.0
    %1488 = vmatprep.subr.mxu0 0.0
    %1489 = vmatpush1.msra.mxu0 0.0
    %1490 = vmatprep.subr.mxu0 0.0
    %1491 = vmatpush1.msra.mxu0 0.0
    %1492 = vmatprep.subr.mxu0 0.0
    %1493 = vmatpush1.msra.mxu0 0.0
    %1494 = vmatprep.subr.mxu0 0.0
    %1495 = vmatpush1.msra.mxu0 0.0
    %1496 = vmatprep.subr.mxu0 0.0
    %1497 = vmatpush1.msra.mxu0 %v202
    %1498 = vmatprep.subr.mxu0 0.0
    %1499 = vmatpush1.msra.mxu0 %v201
    %1500 = vmatprep.subr.mxu0 0.0
    %1501 = vmatpush1.msra.mxu0 %v200
    %1502 = vmatprep.subr.mxu0 0.0
    %1503 = vmatpush1.msra.mxu0 %v199
    %1504 = vmatprep.subr.mxu0 0.0
    %1505 = vmatpush2.msra.mxu0 0.0
    %1506 = vmatprep.subr.mxu0 0.0
    %1507 = vmatpush2.msra.mxu0 0.0
    %1508 = vmatprep.subr.mxu0 0.0
    %1509 = vmatpush2.msra.mxu0 0.0
    %1510 = vmatprep.subr.mxu0 0.0
    %1511 = vmatpush2.msra.mxu0 0.0
    %1512 = vmatprep.subr.mxu0 0.0
    %1513 = vmatpush2.msra.mxu0 0.0
    %1514 = vmatprep.subr.mxu0 0.0
    %1515 = vmatpush2.msra.mxu0 0.0
    %1516 = vmatprep.subr.mxu0 0.0
    %1517 = vmatpush2.msra.mxu0 0.0
    %1518 = vmatprep.subr.mxu0 0.0
    %1519 = vmatpush2.msra.mxu0 0.0
    %1520 = vmatprep.subr.mxu0 0.0
    %1521 = vmatpush2.msra.mxu0 0.0
    %1522 = vmatprep.subr.mxu0 0.0
    %1523 = vmatpush2.msra.mxu0 0.0
    %1524 = vmatprep.subr.mxu0 0.0
    %1525 = vmatpush2.msra.mxu0 0.0
    %1526 = vmatprep.subr.mxu0 0.0
    %1527 = vmatpush2.msra.mxu0 0.0
    %1528 = vmatprep.subr.mxu0 0.0
    %1529 = vmatpush2.msra.mxu0 0.0
    %1530 = vmatprep.subr.mxu0 0.0
    %1531 = vmatpush2.msra.mxu0 0.0
    %1532 = vmatprep.subr.mxu0 0.0
    %1533 = vmatpush2.msra.mxu0 0.0
    %1534 = vmatprep.subr.mxu0 0.0
    %1535 = vmatpush2.msra.mxu0 0.0
    %1536 = vmatprep.mubr.f32.mxu0 0.0
    %1537 = vmatmul.mubr.f32.gmra.mxu0 %v1470
    %v1538 = vpop.f32.mrf.mxu0
    %v1539 = vadd.f32 %v212, %v1538
    %v1540 = vpop.f32.mrf.mxu0
    %1541 = vdwg.mxu0
    %v1542 = vsel %vm221, %v1355, 0
    %1544 = vmatprep.subr.mxu0 0.0
    %1545 = vmatpush1.msra.mxu0 0.0
    %1546 = vmatprep.subr.mxu0 0.0
    %1547 = vmatpush1.msra.mxu0 0.0
    %1548 = vmatprep.subr.mxu0 0.0
    %1549 = vmatpush1.msra.mxu0 0.0
    %1550 = vmatprep.subr.mxu0 0.0
    %1551 = vmatpush1.msra.mxu0 0.0
    %1552 = vmatprep.subr.mxu0 0.0
    %1553 = vmatpush1.msra.mxu0 0.0
    %1554 = vmatprep.subr.mxu0 0.0
    %1555 = vmatpush1.msra.mxu0 0.0
    %1556 = vmatprep.subr.mxu0 0.0
    %1557 = vmatpush1.msra.mxu0 0.0
    %1558 = vmatprep.subr.mxu0 0.0
    %1559 = vmatpush1.msra.mxu0 0.0
    %1560 = vmatprep.subr.mxu0 0.0
    %1561 = vmatpush1.msra.mxu0 0.0
    %1562 = vmatprep.subr.mxu0 0.0
    %1563 = vmatpush1.msra.mxu0 0.0
    %1564 = vmatprep.subr.mxu0 0.0
    %1565 = vmatpush1.msra.mxu0 0.0
    %1566 = vmatprep.subr.mxu0 0.0
    %1567 = vmatpush1.msra.mxu0 0.0
    %1568 = vmatprep.subr.mxu0 0.0
    %1569 = vmatpush1.msra.mxu0 %v210
    %1570 = vmatprep.subr.mxu0 0.0
    %1571 = vmatpush1.msra.mxu0 %v209
    %1572 = vmatprep.subr.mxu0 0.0
    %1573 = vmatpush1.msra.mxu0 %v208
    %1574 = vmatprep.subr.mxu0 0.0
    %1575 = vmatpush1.msra.mxu0 %v207
    %1576 = vmatprep.subr.mxu0 0.0
    %1577 = vmatpush2.msra.mxu0 0.0
    %1578 = vmatprep.subr.mxu0 0.0
    %1579 = vmatpush2.msra.mxu0 0.0
    %1580 = vmatprep.subr.mxu0 0.0
    %1581 = vmatpush2.msra.mxu0 0.0
    %1582 = vmatprep.subr.mxu0 0.0
    %1583 = vmatpush2.msra.mxu0 0.0
    %1584 = vmatprep.subr.mxu0 0.0
    %1585 = vmatpush2.msra.mxu0 0.0
    %1586 = vmatprep.subr.mxu0 0.0
    %1587 = vmatpush2.msra.mxu0 0.0
    %1588 = vmatprep.subr.mxu0 0.0
    %1589 = vmatpush2.msra.mxu0 0.0
    %1590 = vmatprep.subr.mxu0 0.0
    %1591 = vmatpush2.msra.mxu0 0.0
    %1592 = vmatprep.subr.mxu0 0.0
    %1593 = vmatpush2.msra.mxu0 0.0
    %1594 = vmatprep.subr.mxu0 0.0
    %1595 = vmatpush2.msra.mxu0 0.0
    %1596 = vmatprep.subr.mxu0 0.0
    %1597 = vmatpush2.msra.mxu0 0.0
    %1598 = vmatprep.subr.mxu0 0.0
    %1599 = vmatpush2.msra.mxu0 0.0
    %1600 = vmatprep.subr.mxu0 0.0
    %1601 = vmatpush2.msra.mxu0 0.0
    %1602 = vmatprep.subr.mxu0 0.0
    %1603 = vmatpush2.msra.mxu0 0.0
    %1604 = vmatprep.subr.mxu0 0.0
    %1605 = vmatpush2.msra.mxu0 0.0
    %1606 = vmatprep.subr.mxu0 0.0
    %1607 = vmatpush2.msra.mxu0 0.0
    %1608 = vmatprep.mubr.f32.mxu0 0.0
    %1609 = vmatmul.mubr.f32.gmra.mxu0 %v1542
    %v1610 = vpop.f32.mrf.mxu0
    %v1611 = vadd.f32 0.0, %v1610
    %v1612 = vpop.f32.mrf.mxu0
    %1613 = vdwg.mxu0
    %v1614 = vadd.f32 %v1248, %v1611
    %v1615 = vxor.u32 %v1614, 2147483648
    %v1616 = vmul.f32 %v1615, 1.442695
    %v1617 = vpow.pop %v1616
    %v1618 = vadd.f32 %v1617, 1.0
    %v1619 = vrcp.pop %v1618
    %v1620 = vmul.f32 1.0, %v1619
    %v1621 = vadd.f32 %v1611, %v214
    %1623 = vrot.lane.b32.xlu0 %v1621, 64
    %v1624 = vpop.permute.xlu0 %1623
    %v1626 = vmul.f32 %v1620, %v1624
    %1628 = vrot.lane.b32.xlu0 %v1626, 64
    %v1629 = vpop.permute.xlu0 %1628
    %v1631 = vadd.f32 %v1248, %v1629
    %v1632 = vtanh.pop %v1631
    %v1633 = vsub.f32 %v1352, %v1632
    %1635 = vrot.lane.b32.xlu0 %v1633, 96
    %v1636 = vpop.permute.xlu0 %1635
    %v1638 = vmul.f32 %v1620, %v1636
    %1640 = vrot.lane.b32.xlu0 %v1638, 32
    %v1641 = vpop.permute.xlu0 %1640
    %v1643 = vadd.f32 %v1632, %v1641
    %1645 = vrot.lane.b32.xlu0 %v1643, 64
    %v1646 = vpop.permute.xlu0 %1645
    %1648 = vst.msk [vmem:[#allocation11 + $0x3] sm:$0x1] %vm774, %v1646
    %1649 = vmatprep.subr.mxu0 0.0
    %1650 = vmatpush1.msra.mxu0 0.0
    %1651 = vmatprep.subr.mxu0 0.0
    %1652 = vmatpush1.msra.mxu0 0.0
    %1653 = vmatprep.subr.mxu0 0.0
    %1654 = vmatpush1.msra.mxu0 0.0
    %1655 = vmatprep.subr.mxu0 0.0
    %1656 = vmatpush1.msra.mxu0 0.0
    %1657 = vmatprep.subr.mxu0 0.0
    %1658 = vmatpush1.msra.mxu0 0.0
    %1659 = vmatprep.subr.mxu0 0.0
    %1660 = vmatpush1.msra.mxu0 0.0
    %1661 = vmatprep.subr.mxu0 0.0
    %1662 = vmatpush1.msra.mxu0 0.0
    %1663 = vmatprep.subr.mxu0 0.0
    %1664 = vmatpush1.msra.mxu0 0.0
    %1665 = vmatprep.subr.mxu0 0.0
    %1666 = vmatpush1.msra.mxu0 0.0
    %1667 = vmatprep.subr.mxu0 0.0
    %1668 = vmatpush1.msra.mxu0 0.0
    %1669 = vmatprep.subr.mxu0 0.0
    %1670 = vmatpush1.msra.mxu0 0.0
    %1671 = vmatprep.subr.mxu0 0.0
    %1672 = vmatpush1.msra.mxu0 0.0
    %1673 = vmatprep.subr.mxu0 0.0
    %1674 = vmatpush1.msra.mxu0 %v206
    %1675 = vmatprep.subr.mxu0 0.0
    %1676 = vmatpush1.msra.mxu0 %v205
    %1677 = vmatprep.subr.mxu0 0.0
    %1678 = vmatpush1.msra.mxu0 %v204
    %1679 = vmatprep.subr.mxu0 0.0
    %1680 = vmatpush1.msra.mxu0 %v203
    %1681 = vmatprep.subr.mxu0 0.0
    %1682 = vmatpush2.msra.mxu0 0.0
    %1683 = vmatprep.subr.mxu0 0.0
    %1684 = vmatpush2.msra.mxu0 0.0
    %1685 = vmatprep.subr.mxu0 0.0
    %1686 = vmatpush2.msra.mxu0 0.0
    %1687 = vmatprep.subr.mxu0 0.0
    %1688 = vmatpush2.msra.mxu0 0.0
    %1689 = vmatprep.subr.mxu0 0.0
    %1690 = vmatpush2.msra.mxu0 0.0
    %1691 = vmatprep.subr.mxu0 0.0
    %1692 = vmatpush2.msra.mxu0 0.0
    %1693 = vmatprep.subr.mxu0 0.0
    %1694 = vmatpush2.msra.mxu0 0.0
    %1695 = vmatprep.subr.mxu0 0.0
    %1696 = vmatpush2.msra.mxu0 0.0
    %1697 = vmatprep.subr.mxu0 0.0
    %1698 = vmatpush2.msra.mxu0 0.0
    %1699 = vmatprep.subr.mxu0 0.0
    %1700 = vmatpush2.msra.mxu0 0.0
    %1701 = vmatprep.subr.mxu0 0.0
    %1702 = vmatpush2.msra.mxu0 0.0
    %1703 = vmatprep.subr.mxu0 0.0
    %1704 = vmatpush2.msra.mxu0 0.0
    %1705 = vmatprep.subr.mxu0 0.0
    %1706 = vmatpush2.msra.mxu0 0.0
    %1707 = vmatprep.subr.mxu0 0.0
    %1708 = vmatpush2.msra.mxu0 0.0
    %1709 = vmatprep.subr.mxu0 0.0
    %1710 = vmatpush2.msra.mxu0 0.0
    %1711 = vmatprep.subr.mxu0 0.0
    %1712 = vmatpush2.msra.mxu0 0.0
    %1713 = vmatprep.mubr.f32.mxu0 0.0
    %1714 = vmatmul.mubr.f32.gmra.mxu0 %v1470
    %v1715 = vpop.f32.mrf.mxu0
    %v1716 = vadd.f32 0.0, %v1715
    %v1717 = vpop.f32.mrf.mxu0
    %1718 = vdwg.mxu0
    %v1720 = vrot.slane %v1716, 3
    %v1722 = vadd.f32 %v292, %v1720
    %v1723 = vxor.u32 %v1722, 2147483648
    %v1724 = vmul.f32 %v1723, 1.442695
    %v1725 = vpow.pop %v1724
    %v1726 = vadd.f32 %v1725, 1.0
    %v1727 = vrcp.pop %v1726
    %v1728 = vmul.f32 1.0, %v1727
    %v1729 = vadd.f32 %v1716, %v213
    %v1731 = vrot.slane %v1729, 3
    %1732 = vrot.lane.b32.xlu0 %v1731, 64
    %v1733 = vpop.permute.xlu0 %1732
    %v1735 = vmul.f32 %v1728, %v1733
    %1737 = vrot.lane.b32.xlu0 %v1735, 64
    %v1738 = vpop.permute.xlu0 %1737
    %v1740 = vadd.f32 %v292, %v1738
    %v1741 = vtanh.pop %v1740
    %v1743 = vrot.slane %v1741, 1
    %v1745 = vsub.f32 %v1465, %v1743
    %v1747 = vrot.slane %v1745, 7
    %1748 = vrot.lane.b32.xlu0 %v1747, 96
    %v1749 = vpop.permute.xlu0 %1748
    %v1751 = vmul.f32 %v1728, %v1749
    %1753 = vrot.lane.b32.xlu0 %v1751, 32
    %v1754 = vpop.permute.xlu0 %1753
    %v1756 = vadd.f32 %v1741, %v1754
    %v1758 = vrot.slane %v1756, 5
    %1759 = vrot.lane.b32.xlu0 %v1758, 64
    %v1760 = vpop.permute.xlu0 %1759
    %v1761 = vsel %vm221, %v1760, 0
    %1763 = vmatprep.subr.mxu0 0.0
    %1764 = vmatpush1.msra.mxu0 0.0
    %1765 = vmatprep.subr.mxu0 0.0
    %1766 = vmatpush1.msra.mxu0 0.0
    %1767 = vmatprep.subr.mxu0 0.0
    %1768 = vmatpush1.msra.mxu0 0.0
    %1769 = vmatprep.subr.mxu0 0.0
    %1770 = vmatpush1.msra.mxu0 0.0
    %1771 = vmatprep.subr.mxu0 0.0
    %1772 = vmatpush1.msra.mxu0 0.0
    %1773 = vmatprep.subr.mxu0 0.0
    %1774 = vmatpush1.msra.mxu0 0.0
    %1775 = vmatprep.subr.mxu0 0.0
    %1776 = vmatpush1.msra.mxu0 0.0
    %1777 = vmatprep.subr.mxu0 0.0
    %1778 = vmatpush1.msra.mxu0 0.0
    %1779 = vmatprep.subr.mxu0 0.0
    %1780 = vmatpush1.msra.mxu0 0.0
    %1781 = vmatprep.subr.mxu0 0.0
    %1782 = vmatpush1.msra.mxu0 0.0
    %1783 = vmatprep.subr.mxu0 0.0
    %1784 = vmatpush1.msra.mxu0 0.0
    %1785 = vmatprep.subr.mxu0 0.0
    %1786 = vmatpush1.msra.mxu0 0.0
    %1787 = vmatprep.subr.mxu0 0.0
    %1788 = vmatpush1.msra.mxu0 %v202
    %1789 = vmatprep.subr.mxu0 0.0
    %1790 = vmatpush1.msra.mxu0 %v201
    %1791 = vmatprep.subr.mxu0 0.0
    %1792 = vmatpush1.msra.mxu0 %v200
    %1793 = vmatprep.subr.mxu0 0.0
    %1794 = vmatpush1.msra.mxu0 %v199
    %1795 = vmatprep.subr.mxu0 0.0
    %1796 = vmatpush2.msra.mxu0 0.0
    %1797 = vmatprep.subr.mxu0 0.0
    %1798 = vmatpush2.msra.mxu0 0.0
    %1799 = vmatprep.subr.mxu0 0.0
    %1800 = vmatpush2.msra.mxu0 0.0
    %1801 = vmatprep.subr.mxu0 0.0
    %1802 = vmatpush2.msra.mxu0 0.0
    %1803 = vmatprep.subr.mxu0 0.0
    %1804 = vmatpush2.msra.mxu0 0.0
    %1805 = vmatprep.subr.mxu0 0.0
    %1806 = vmatpush2.msra.mxu0 0.0
    %1807 = vmatprep.subr.mxu0 0.0
    %1808 = vmatpush2.msra.mxu0 0.0
    %1809 = vmatprep.subr.mxu0 0.0
    %1810 = vmatpush2.msra.mxu0 0.0
    %1811 = vmatprep.subr.mxu0 0.0
    %1812 = vmatpush2.msra.mxu0 0.0
    %1813 = vmatprep.subr.mxu0 0.0
    %1814 = vmatpush2.msra.mxu0 0.0
    %1815 = vmatprep.subr.mxu0 0.0
    %1816 = vmatpush2.msra.mxu0 0.0
    %1817 = vmatprep.subr.mxu0 0.0
    %1818 = vmatpush2.msra.mxu0 0.0
    %1819 = vmatprep.subr.mxu0 0.0
    %1820 = vmatpush2.msra.mxu0 0.0
    %1821 = vmatprep.subr.mxu0 0.0
    %1822 = vmatpush2.msra.mxu0 0.0
    %1823 = vmatprep.subr.mxu0 0.0
    %1824 = vmatpush2.msra.mxu0 0.0
    %1825 = vmatprep.subr.mxu0 0.0
    %1826 = vmatpush2.msra.mxu0 0.0
    %1827 = vmatprep.mubr.f32.mxu0 0.0
    %1828 = vmatmul.mubr.f32.gmra.mxu0 %v1761
    %v1829 = vpop.f32.mrf.mxu0
    %v1830 = vadd.f32 %v212, %v1829
    %v1831 = vpop.f32.mrf.mxu0
    %1832 = vdwg.mxu0
    %v1833 = vsel %vm221, %v1646, 0
    %1835 = vmatprep.subr.mxu0 0.0
    %1836 = vmatpush1.msra.mxu0 0.0
    %1837 = vmatprep.subr.mxu0 0.0
    %1838 = vmatpush1.msra.mxu0 0.0
    %1839 = vmatprep.subr.mxu0 0.0
    %1840 = vmatpush1.msra.mxu0 0.0
    %1841 = vmatprep.subr.mxu0 0.0
    %1842 = vmatpush1.msra.mxu0 0.0
    %1843 = vmatprep.subr.mxu0 0.0
    %1844 = vmatpush1.msra.mxu0 0.0
    %1845 = vmatprep.subr.mxu0 0.0
    %1846 = vmatpush1.msra.mxu0 0.0
    %1847 = vmatprep.subr.mxu0 0.0
    %1848 = vmatpush1.msra.mxu0 0.0
    %1849 = vmatprep.subr.mxu0 0.0
    %1850 = vmatpush1.msra.mxu0 0.0
    %1851 = vmatprep.subr.mxu0 0.0
    %1852 = vmatpush1.msra.mxu0 0.0
    %1853 = vmatprep.subr.mxu0 0.0
    %1854 = vmatpush1.msra.mxu0 0.0
    %1855 = vmatprep.subr.mxu0 0.0
    %1856 = vmatpush1.msra.mxu0 0.0
    %1857 = vmatprep.subr.mxu0 0.0
    %1858 = vmatpush1.msra.mxu0 0.0
    %1859 = vmatprep.subr.mxu0 0.0
    %1860 = vmatpush1.msra.mxu0 %v210
    %1861 = vmatprep.subr.mxu0 0.0
    %1862 = vmatpush1.msra.mxu0 %v209
    %1863 = vmatprep.subr.mxu0 0.0
    %1864 = vmatpush1.msra.mxu0 %v208
    %1865 = vmatprep.subr.mxu0 0.0
    %1866 = vmatpush1.msra.mxu0 %v207
    %1867 = vmatprep.subr.mxu0 0.0
    %1868 = vmatpush2.msra.mxu0 0.0
    %1869 = vmatprep.subr.mxu0 0.0
    %1870 = vmatpush2.msra.mxu0 0.0
    %1871 = vmatprep.subr.mxu0 0.0
    %1872 = vmatpush2.msra.mxu0 0.0
    %1873 = vmatprep.subr.mxu0 0.0
    %1874 = vmatpush2.msra.mxu0 0.0
    %1875 = vmatprep.subr.mxu0 0.0
    %1876 = vmatpush2.msra.mxu0 0.0
    %1877 = vmatprep.subr.mxu0 0.0
    %1878 = vmatpush2.msra.mxu0 0.0
    %1879 = vmatprep.subr.mxu0 0.0
    %1880 = vmatpush2.msra.mxu0 0.0
    %1881 = vmatprep.subr.mxu0 0.0
    %1882 = vmatpush2.msra.mxu0 0.0
    %1883 = vmatprep.subr.mxu0 0.0
    %1884 = vmatpush2.msra.mxu0 0.0
    %1885 = vmatprep.subr.mxu0 0.0
    %1886 = vmatpush2.msra.mxu0 0.0
    %1887 = vmatprep.subr.mxu0 0.0
    %1888 = vmatpush2.msra.mxu0 0.0
    %1889 = vmatprep.subr.mxu0 0.0
    %1890 = vmatpush2.msra.mxu0 0.0
    %1891 = vmatprep.subr.mxu0 0.0
    %1892 = vmatpush2.msra.mxu0 0.0
    %1893 = vmatprep.subr.mxu0 0.0
    %1894 = vmatpush2.msra.mxu0 0.0
    %1895 = vmatprep.subr.mxu0 0.0
    %1896 = vmatpush2.msra.mxu0 0.0
    %1897 = vmatprep.subr.mxu0 0.0
    %1898 = vmatpush2.msra.mxu0 0.0
    %1899 = vmatprep.mubr.f32.mxu0 0.0
    %1900 = vmatmul.mubr.f32.gmra.mxu0 %v1833
    %v1901 = vpop.f32.mrf.mxu0
    %v1902 = vadd.f32 0.0, %v1901
    %v1903 = vpop.f32.mrf.mxu0
    %1904 = vdwg.mxu0
    %v1905 = vadd.f32 %v1539, %v1902
    %v1906 = vxor.u32 %v1905, 2147483648
    %v1907 = vmul.f32 %v1906, 1.442695
    %v1908 = vpow.pop %v1907
    %v1909 = vadd.f32 %v1908, 1.0
    %v1910 = vrcp.pop %v1909
    %v1911 = vmul.f32 1.0, %v1910
    %v1912 = vadd.f32 %v1902, %v214
    %1914 = vrot.lane.b32.xlu0 %v1912, 64
    %v1915 = vpop.permute.xlu0 %1914
    %v1917 = vmul.f32 %v1911, %v1915
    %1919 = vrot.lane.b32.xlu0 %v1917, 64
    %v1920 = vpop.permute.xlu0 %1919
    %v1922 = vadd.f32 %v1539, %v1920
    %v1923 = vtanh.pop %v1922
    %v1924 = vsub.f32 %v1643, %v1923
    %1926 = vrot.lane.b32.xlu0 %v1924, 96
    %v1927 = vpop.permute.xlu0 %1926
    %v1929 = vmul.f32 %v1911, %v1927
    %1931 = vrot.lane.b32.xlu0 %v1929, 32
    %v1932 = vpop.permute.xlu0 %1931
    %v1934 = vadd.f32 %v1923, %v1932
    %1936 = vrot.lane.b32.xlu0 %v1934, 64
    %v1937 = vpop.permute.xlu0 %1936
    %1939 = vst.msk [vmem:[#allocation11 + $0x4] sm:$0x1] %vm774, %v1937
    %1940 = vmatprep.subr.mxu0 0.0
    %1941 = vmatpush1.msra.mxu0 0.0
    %1942 = vmatprep.subr.mxu0 0.0
    %1943 = vmatpush1.msra.mxu0 0.0
    %1944 = vmatprep.subr.mxu0 0.0
    %1945 = vmatpush1.msra.mxu0 0.0
    %1946 = vmatprep.subr.mxu0 0.0
    %1947 = vmatpush1.msra.mxu0 0.0
    %1948 = vmatprep.subr.mxu0 0.0
    %1949 = vmatpush1.msra.mxu0 0.0
    %1950 = vmatprep.subr.mxu0 0.0
    %1951 = vmatpush1.msra.mxu0 0.0
    %1952 = vmatprep.subr.mxu0 0.0
    %1953 = vmatpush1.msra.mxu0 0.0
    %1954 = vmatprep.subr.mxu0 0.0
    %1955 = vmatpush1.msra.mxu0 0.0
    %1956 = vmatprep.subr.mxu0 0.0
    %1957 = vmatpush1.msra.mxu0 0.0
    %1958 = vmatprep.subr.mxu0 0.0
    %1959 = vmatpush1.msra.mxu0 0.0
    %1960 = vmatprep.subr.mxu0 0.0
    %1961 = vmatpush1.msra.mxu0 0.0
    %1962 = vmatprep.subr.mxu0 0.0
    %1963 = vmatpush1.msra.mxu0 0.0
    %1964 = vmatprep.subr.mxu0 0.0
    %1965 = vmatpush1.msra.mxu0 %v206
    %1966 = vmatprep.subr.mxu0 0.0
    %1967 = vmatpush1.msra.mxu0 %v205
    %1968 = vmatprep.subr.mxu0 0.0
    %1969 = vmatpush1.msra.mxu0 %v204
    %1970 = vmatprep.subr.mxu0 0.0
    %1971 = vmatpush1.msra.mxu0 %v203
    %1972 = vmatprep.subr.mxu0 0.0
    %1973 = vmatpush2.msra.mxu0 0.0
    %1974 = vmatprep.subr.mxu0 0.0
    %1975 = vmatpush2.msra.mxu0 0.0
    %1976 = vmatprep.subr.mxu0 0.0
    %1977 = vmatpush2.msra.mxu0 0.0
    %1978 = vmatprep.subr.mxu0 0.0
    %1979 = vmatpush2.msra.mxu0 0.0
    %1980 = vmatprep.subr.mxu0 0.0
    %1981 = vmatpush2.msra.mxu0 0.0
    %1982 = vmatprep.subr.mxu0 0.0
    %1983 = vmatpush2.msra.mxu0 0.0
    %1984 = vmatprep.subr.mxu0 0.0
    %1985 = vmatpush2.msra.mxu0 0.0
    %1986 = vmatprep.subr.mxu0 0.0
    %1987 = vmatpush2.msra.mxu0 0.0
    %1988 = vmatprep.subr.mxu0 0.0
    %1989 = vmatpush2.msra.mxu0 0.0
    %1990 = vmatprep.subr.mxu0 0.0
    %1991 = vmatpush2.msra.mxu0 0.0
    %1992 = vmatprep.subr.mxu0 0.0
    %1993 = vmatpush2.msra.mxu0 0.0
    %1994 = vmatprep.subr.mxu0 0.0
    %1995 = vmatpush2.msra.mxu0 0.0
    %1996 = vmatprep.subr.mxu0 0.0
    %1997 = vmatpush2.msra.mxu0 0.0
    %1998 = vmatprep.subr.mxu0 0.0
    %1999 = vmatpush2.msra.mxu0 0.0
    %2000 = vmatprep.subr.mxu0 0.0
    %2001 = vmatpush2.msra.mxu0 0.0
    %2002 = vmatprep.subr.mxu0 0.0
    %2003 = vmatpush2.msra.mxu0 0.0
    %2004 = vmatprep.mubr.f32.mxu0 0.0
    %2005 = vmatmul.mubr.f32.gmra.mxu0 %v1761
    %v2006 = vpop.f32.mrf.mxu0
    %v2007 = vadd.f32 0.0, %v2006
    %v2008 = vpop.f32.mrf.mxu0
    %2009 = vdwg.mxu0
    %v2011 = vrot.slane %v2007, 2
    %v2013 = vadd.f32 %v292, %v2011
    %v2014 = vxor.u32 %v2013, 2147483648
    %v2015 = vmul.f32 %v2014, 1.442695
    %v2016 = vpow.pop %v2015
    %v2017 = vadd.f32 %v2016, 1.0
    %v2018 = vrcp.pop %v2017
    %v2019 = vmul.f32 1.0, %v2018
    %v2020 = vadd.f32 %v2007, %v213
    %v2022 = vrot.slane %v2020, 2
    %2023 = vrot.lane.b32.xlu0 %v2022, 64
    %v2024 = vpop.permute.xlu0 %2023
    %v2026 = vmul.f32 %v2019, %v2024
    %2028 = vrot.lane.b32.xlu0 %v2026, 64
    %v2029 = vpop.permute.xlu0 %2028
    %v2031 = vadd.f32 %v292, %v2029
    %v2032 = vtanh.pop %v2031
    %v2034 = vrot.slane %v2032, 1
    %v2036 = vsub.f32 %v1756, %v2034
    %v2038 = vrot.slane %v2036, 7
    %2039 = vrot.lane.b32.xlu0 %v2038, 96
    %v2040 = vpop.permute.xlu0 %2039
    %v2042 = vmul.f32 %v2019, %v2040
    %2044 = vrot.lane.b32.xlu0 %v2042, 32
    %v2045 = vpop.permute.xlu0 %2044
    %v2047 = vadd.f32 %v2032, %v2045
    %v2049 = vrot.slane %v2047, 6
    %2050 = vrot.lane.b32.xlu0 %v2049, 64
    %v2051 = vpop.permute.xlu0 %2050
    %v2052 = vsel %vm221, %v2051, 0
    %2054 = vmatprep.subr.mxu0 0.0
    %2055 = vmatpush1.msra.mxu0 0.0
    %2056 = vmatprep.subr.mxu0 0.0
    %2057 = vmatpush1.msra.mxu0 0.0
    %2058 = vmatprep.subr.mxu0 0.0
    %2059 = vmatpush1.msra.mxu0 0.0
    %2060 = vmatprep.subr.mxu0 0.0
    %2061 = vmatpush1.msra.mxu0 0.0
    %2062 = vmatprep.subr.mxu0 0.0
    %2063 = vmatpush1.msra.mxu0 0.0
    %2064 = vmatprep.subr.mxu0 0.0
    %2065 = vmatpush1.msra.mxu0 0.0
    %2066 = vmatprep.subr.mxu0 0.0
    %2067 = vmatpush1.msra.mxu0 0.0
    %2068 = vmatprep.subr.mxu0 0.0
    %2069 = vmatpush1.msra.mxu0 0.0
    %2070 = vmatprep.subr.mxu0 0.0
    %2071 = vmatpush1.msra.mxu0 0.0
    %2072 = vmatprep.subr.mxu0 0.0
    %2073 = vmatpush1.msra.mxu0 0.0
    %2074 = vmatprep.subr.mxu0 0.0
    %2075 = vmatpush1.msra.mxu0 0.0
    %2076 = vmatprep.subr.mxu0 0.0
    %2077 = vmatpush1.msra.mxu0 0.0
    %2078 = vmatprep.subr.mxu0 0.0
    %2079 = vmatpush1.msra.mxu0 %v202
    %2080 = vmatprep.subr.mxu0 0.0
    %2081 = vmatpush1.msra.mxu0 %v201
    %2082 = vmatprep.subr.mxu0 0.0
    %2083 = vmatpush1.msra.mxu0 %v200
    %2084 = vmatprep.subr.mxu0 0.0
    %2085 = vmatpush1.msra.mxu0 %v199
    %2086 = vmatprep.subr.mxu0 0.0
    %2087 = vmatpush2.msra.mxu0 0.0
    %2088 = vmatprep.subr.mxu0 0.0
    %2089 = vmatpush2.msra.mxu0 0.0
    %2090 = vmatprep.subr.mxu0 0.0
    %2091 = vmatpush2.msra.mxu0 0.0
    %2092 = vmatprep.subr.mxu0 0.0
    %2093 = vmatpush2.msra.mxu0 0.0
    %2094 = vmatprep.subr.mxu0 0.0
    %2095 = vmatpush2.msra.mxu0 0.0
    %2096 = vmatprep.subr.mxu0 0.0
    %2097 = vmatpush2.msra.mxu0 0.0
    %2098 = vmatprep.subr.mxu0 0.0
    %2099 = vmatpush2.msra.mxu0 0.0
    %2100 = vmatprep.subr.mxu0 0.0
    %2101 = vmatpush2.msra.mxu0 0.0
    %2102 = vmatprep.subr.mxu0 0.0
    %2103 = vmatpush2.msra.mxu0 0.0
    %2104 = vmatprep.subr.mxu0 0.0
    %2105 = vmatpush2.msra.mxu0 0.0
    %2106 = vmatprep.subr.mxu0 0.0
    %2107 = vmatpush2.msra.mxu0 0.0
    %2108 = vmatprep.subr.mxu0 0.0
    %2109 = vmatpush2.msra.mxu0 0.0
    %2110 = vmatprep.subr.mxu0 0.0
    %2111 = vmatpush2.msra.mxu0 0.0
    %2112 = vmatprep.subr.mxu0 0.0
    %2113 = vmatpush2.msra.mxu0 0.0
    %2114 = vmatprep.subr.mxu0 0.0
    %2115 = vmatpush2.msra.mxu0 0.0
    %2116 = vmatprep.subr.mxu0 0.0
    %2117 = vmatpush2.msra.mxu0 0.0
    %2118 = vmatprep.mubr.f32.mxu0 0.0
    %2119 = vmatmul.mubr.f32.gmra.mxu0 %v2052
    %v2120 = vpop.f32.mrf.mxu0
    %v2121 = vadd.f32 %v212, %v2120
    %v2122 = vpop.f32.mrf.mxu0
    %2123 = vdwg.mxu0
    %v2124 = vsel %vm221, %v1937, 0
    %2126 = vmatprep.subr.mxu0 0.0
    %2127 = vmatpush1.msra.mxu0 0.0
    %2128 = vmatprep.subr.mxu0 0.0
    %2129 = vmatpush1.msra.mxu0 0.0
    %2130 = vmatprep.subr.mxu0 0.0
    %2131 = vmatpush1.msra.mxu0 0.0
    %2132 = vmatprep.subr.mxu0 0.0
    %2133 = vmatpush1.msra.mxu0 0.0
    %2134 = vmatprep.subr.mxu0 0.0
    %2135 = vmatpush1.msra.mxu0 0.0
    %2136 = vmatprep.subr.mxu0 0.0
    %2137 = vmatpush1.msra.mxu0 0.0
    %2138 = vmatprep.subr.mxu0 0.0
    %2139 = vmatpush1.msra.mxu0 0.0
    %2140 = vmatprep.subr.mxu0 0.0
    %2141 = vmatpush1.msra.mxu0 0.0
    %2142 = vmatprep.subr.mxu0 0.0
    %2143 = vmatpush1.msra.mxu0 0.0
    %2144 = vmatprep.subr.mxu0 0.0
    %2145 = vmatpush1.msra.mxu0 0.0
    %2146 = vmatprep.subr.mxu0 0.0
    %2147 = vmatpush1.msra.mxu0 0.0
    %2148 = vmatprep.subr.mxu0 0.0
    %2149 = vmatpush1.msra.mxu0 0.0
    %2150 = vmatprep.subr.mxu0 0.0
    %2151 = vmatpush1.msra.mxu0 %v210
    %2152 = vmatprep.subr.mxu0 0.0
    %2153 = vmatpush1.msra.mxu0 %v209
    %2154 = vmatprep.subr.mxu0 0.0
    %2155 = vmatpush1.msra.mxu0 %v208
    %2156 = vmatprep.subr.mxu0 0.0
    %2157 = vmatpush1.msra.mxu0 %v207
    %2158 = vmatprep.subr.mxu0 0.0
    %2159 = vmatpush2.msra.mxu0 0.0
    %2160 = vmatprep.subr.mxu0 0.0
    %2161 = vmatpush2.msra.mxu0 0.0
    %2162 = vmatprep.subr.mxu0 0.0
    %2163 = vmatpush2.msra.mxu0 0.0
    %2164 = vmatprep.subr.mxu0 0.0
    %2165 = vmatpush2.msra.mxu0 0.0
    %2166 = vmatprep.subr.mxu0 0.0
    %2167 = vmatpush2.msra.mxu0 0.0
    %2168 = vmatprep.subr.mxu0 0.0
    %2169 = vmatpush2.msra.mxu0 0.0
    %2170 = vmatprep.subr.mxu0 0.0
    %2171 = vmatpush2.msra.mxu0 0.0
    %2172 = vmatprep.subr.mxu0 0.0
    %2173 = vmatpush2.msra.mxu0 0.0
    %2174 = vmatprep.subr.mxu0 0.0
    %2175 = vmatpush2.msra.mxu0 0.0
    %2176 = vmatprep.subr.mxu0 0.0
    %2177 = vmatpush2.msra.mxu0 0.0
    %2178 = vmatprep.subr.mxu0 0.0
    %2179 = vmatpush2.msra.mxu0 0.0
    %2180 = vmatprep.subr.mxu0 0.0
    %2181 = vmatpush2.msra.mxu0 0.0
    %2182 = vmatprep.subr.mxu0 0.0
    %2183 = vmatpush2.msra.mxu0 0.0
    %2184 = vmatprep.subr.mxu0 0.0
    %2185 = vmatpush2.msra.mxu0 0.0
    %2186 = vmatprep.subr.mxu0 0.0
    %2187 = vmatpush2.msra.mxu0 0.0
    %2188 = vmatprep.subr.mxu0 0.0
    %2189 = vmatpush2.msra.mxu0 0.0
    %2190 = vmatprep.mubr.f32.mxu0 0.0
    %2191 = vmatmul.mubr.f32.gmra.mxu0 %v2124
    %v2192 = vpop.f32.mrf.mxu0
    %v2193 = vadd.f32 0.0, %v2192
    %v2194 = vpop.f32.mrf.mxu0
    %2195 = vdwg.mxu0
    %v2196 = vadd.f32 %v1830, %v2193
    %v2197 = vxor.u32 %v2196, 2147483648
    %v2198 = vmul.f32 %v2197, 1.442695
    %v2199 = vpow.pop %v2198
    %v2200 = vadd.f32 %v2199, 1.0
    %v2201 = vrcp.pop %v2200
    %v2202 = vmul.f32 1.0, %v2201
    %v2203 = vadd.f32 %v2193, %v214
    %2205 = vrot.lane.b32.xlu0 %v2203, 64
    %v2206 = vpop.permute.xlu0 %2205
    %v2208 = vmul.f32 %v2202, %v2206
    %2210 = vrot.lane.b32.xlu0 %v2208, 64
    %v2211 = vpop.permute.xlu0 %2210
    %v2213 = vadd.f32 %v1830, %v2211
    %v2214 = vtanh.pop %v2213
    %v2215 = vsub.f32 %v1934, %v2214
    %2217 = vrot.lane.b32.xlu0 %v2215, 96
    %v2218 = vpop.permute.xlu0 %2217
    %v2220 = vmul.f32 %v2202, %v2218
    %2222 = vrot.lane.b32.xlu0 %v2220, 32
    %v2223 = vpop.permute.xlu0 %2222
    %v2225 = vadd.f32 %v2214, %v2223
    %2227 = vrot.lane.b32.xlu0 %v2225, 64
    %v2228 = vpop.permute.xlu0 %2227
    %2230 = vst.msk [vmem:[#allocation11 + $0x5] sm:$0x1] %vm774, %v2228
    %2231 = vmatprep.subr.mxu0 0.0
    %2232 = vmatpush1.msra.mxu0 0.0
    %2233 = vmatprep.subr.mxu0 0.0
    %2234 = vmatpush1.msra.mxu0 0.0
    %2235 = vmatprep.subr.mxu0 0.0
    %2236 = vmatpush1.msra.mxu0 0.0
    %2237 = vmatprep.subr.mxu0 0.0
    %2238 = vmatpush1.msra.mxu0 0.0
    %2239 = vmatprep.subr.mxu0 0.0
    %2240 = vmatpush1.msra.mxu0 0.0
    %2241 = vmatprep.subr.mxu0 0.0
    %2242 = vmatpush1.msra.mxu0 0.0
    %2243 = vmatprep.subr.mxu0 0.0
    %2244 = vmatpush1.msra.mxu0 0.0
    %2245 = vmatprep.subr.mxu0 0.0
    %2246 = vmatpush1.msra.mxu0 0.0
    %2247 = vmatprep.subr.mxu0 0.0
    %2248 = vmatpush1.msra.mxu0 0.0
    %2249 = vmatprep.subr.mxu0 0.0
    %2250 = vmatpush1.msra.mxu0 0.0
    %2251 = vmatprep.subr.mxu0 0.0
    %2252 = vmatpush1.msra.mxu0 0.0
    %2253 = vmatprep.subr.mxu0 0.0
    %2254 = vmatpush1.msra.mxu0 0.0
    %2255 = vmatprep.subr.mxu0 0.0
    %2256 = vmatpush1.msra.mxu0 %v206
    %2257 = vmatprep.subr.mxu0 0.0
    %2258 = vmatpush1.msra.mxu0 %v205
    %2259 = vmatprep.subr.mxu0 0.0
    %2260 = vmatpush1.msra.mxu0 %v204
    %2261 = vmatprep.subr.mxu0 0.0
    %2262 = vmatpush1.msra.mxu0 %v203
    %2263 = vmatprep.subr.mxu0 0.0
    %2264 = vmatpush2.msra.mxu0 0.0
    %2265 = vmatprep.subr.mxu0 0.0
    %2266 = vmatpush2.msra.mxu0 0.0
    %2267 = vmatprep.subr.mxu0 0.0
    %2268 = vmatpush2.msra.mxu0 0.0
    %2269 = vmatprep.subr.mxu0 0.0
    %2270 = vmatpush2.msra.mxu0 0.0
    %2271 = vmatprep.subr.mxu0 0.0
    %2272 = vmatpush2.msra.mxu0 0.0
    %2273 = vmatprep.subr.mxu0 0.0
    %2274 = vmatpush2.msra.mxu0 0.0
    %2275 = vmatprep.subr.mxu0 0.0
    %2276 = vmatpush2.msra.mxu0 0.0
    %2277 = vmatprep.subr.mxu0 0.0
    %2278 = vmatpush2.msra.mxu0 0.0
    %2279 = vmatprep.subr.mxu0 0.0
    %2280 = vmatpush2.msra.mxu0 0.0
    %2281 = vmatprep.subr.mxu0 0.0
    %2282 = vmatpush2.msra.mxu0 0.0
    %2283 = vmatprep.subr.mxu0 0.0
    %2284 = vmatpush2.msra.mxu0 0.0
    %2285 = vmatprep.subr.mxu0 0.0
    %2286 = vmatpush2.msra.mxu0 0.0
    %2287 = vmatprep.subr.mxu0 0.0
    %2288 = vmatpush2.msra.mxu0 0.0
    %2289 = vmatprep.subr.mxu0 0.0
    %2290 = vmatpush2.msra.mxu0 0.0
    %2291 = vmatprep.subr.mxu0 0.0
    %2292 = vmatpush2.msra.mxu0 0.0
    %2293 = vmatprep.subr.mxu0 0.0
    %2294 = vmatpush2.msra.mxu0 0.0
    %2295 = vmatprep.mubr.f32.mxu0 0.0
    %2296 = vmatmul.mubr.f32.gmra.mxu0 %v2052
    %v2297 = vpop.f32.mrf.mxu0
    %v2298 = vadd.f32 0.0, %v2297
    %v2299 = vpop.f32.mrf.mxu0
    %2300 = vdwg.mxu0
    %v2302 = vrot.slane %v2298, 1
    %v2304 = vadd.f32 %v292, %v2302
    %v2305 = vxor.u32 %v2304, 2147483648
    %v2306 = vmul.f32 %v2305, 1.442695
    %v2307 = vpow.pop %v2306
    %v2308 = vadd.f32 %v2307, 1.0
    %v2309 = vrcp.pop %v2308
    %v2310 = vmul.f32 1.0, %v2309
    %v2311 = vadd.f32 %v2298, %v213
    %v2313 = vrot.slane %v2311, 1
    %2314 = vrot.lane.b32.xlu0 %v2313, 64
    %v2315 = vpop.permute.xlu0 %2314
    %v2317 = vmul.f32 %v2310, %v2315
    %2319 = vrot.lane.b32.xlu0 %v2317, 64
    %v2320 = vpop.permute.xlu0 %2319
    %v2322 = vadd.f32 %v292, %v2320
    %v2323 = vtanh.pop %v2322
    %v2325 = vrot.slane %v2323, 1
    %v2327 = vsub.f32 %v2047, %v2325
    %v2329 = vrot.slane %v2327, 7
    %2330 = vrot.lane.b32.xlu0 %v2329, 96
    %v2331 = vpop.permute.xlu0 %2330
    %v2333 = vmul.f32 %v2310, %v2331
    %2335 = vrot.lane.b32.xlu0 %v2333, 32
    %v2336 = vpop.permute.xlu0 %2335
    %v2338 = vadd.f32 %v2323, %v2336
    %v2340 = vrot.slane %v2338, 7
    %2341 = vrot.lane.b32.xlu0 %v2340, 64
    %v2342 = vpop.permute.xlu0 %2341
    %v2343 = vsel %vm221, %v2342, 0
    %2345 = vmatprep.subr.mxu0 0.0
    %2346 = vmatpush1.msra.mxu0 0.0
    %2347 = vmatprep.subr.mxu0 0.0
    %2348 = vmatpush1.msra.mxu0 0.0
    %2349 = vmatprep.subr.mxu0 0.0
    %2350 = vmatpush1.msra.mxu0 0.0
    %2351 = vmatprep.subr.mxu0 0.0
    %2352 = vmatpush1.msra.mxu0 0.0
    %2353 = vmatprep.subr.mxu0 0.0
    %2354 = vmatpush1.msra.mxu0 0.0
    %2355 = vmatprep.subr.mxu0 0.0
    %2356 = vmatpush1.msra.mxu0 0.0
    %2357 = vmatprep.subr.mxu0 0.0
    %2358 = vmatpush1.msra.mxu0 0.0
    %2359 = vmatprep.subr.mxu0 0.0
    %2360 = vmatpush1.msra.mxu0 0.0
    %2361 = vmatprep.subr.mxu0 0.0
    %2362 = vmatpush1.msra.mxu0 0.0
    %2363 = vmatprep.subr.mxu0 0.0
    %2364 = vmatpush1.msra.mxu0 0.0
    %2365 = vmatprep.subr.mxu0 0.0
    %2366 = vmatpush1.msra.mxu0 0.0
    %2367 = vmatprep.subr.mxu0 0.0
    %2368 = vmatpush1.msra.mxu0 0.0
    %2369 = vmatprep.subr.mxu0 0.0
    %2370 = vmatpush1.msra.mxu0 %v202
    %2371 = vmatprep.subr.mxu0 0.0
    %2372 = vmatpush1.msra.mxu0 %v201
    %2373 = vmatprep.subr.mxu0 0.0
    %2374 = vmatpush1.msra.mxu0 %v200
    %2375 = vmatprep.subr.mxu0 0.0
    %2376 = vmatpush1.msra.mxu0 %v199
    %2377 = vmatprep.subr.mxu0 0.0
    %2378 = vmatpush2.msra.mxu0 0.0
    %2379 = vmatprep.subr.mxu0 0.0
    %2380 = vmatpush2.msra.mxu0 0.0
    %2381 = vmatprep.subr.mxu0 0.0
    %2382 = vmatpush2.msra.mxu0 0.0
    %2383 = vmatprep.subr.mxu0 0.0
    %2384 = vmatpush2.msra.mxu0 0.0
    %2385 = vmatprep.subr.mxu0 0.0
    %2386 = vmatpush2.msra.mxu0 0.0
    %2387 = vmatprep.subr.mxu0 0.0
    %2388 = vmatpush2.msra.mxu0 0.0
    %2389 = vmatprep.subr.mxu0 0.0
    %2390 = vmatpush2.msra.mxu0 0.0
    %2391 = vmatprep.subr.mxu0 0.0
    %2392 = vmatpush2.msra.mxu0 0.0
    %2393 = vmatprep.subr.mxu0 0.0
    %2394 = vmatpush2.msra.mxu0 0.0
    %2395 = vmatprep.subr.mxu0 0.0
    %2396 = vmatpush2.msra.mxu0 0.0
    %2397 = vmatprep.subr.mxu0 0.0
    %2398 = vmatpush2.msra.mxu0 0.0
    %2399 = vmatprep.subr.mxu0 0.0
    %2400 = vmatpush2.msra.mxu0 0.0
    %2401 = vmatprep.subr.mxu0 0.0
    %2402 = vmatpush2.msra.mxu0 0.0
    %2403 = vmatprep.subr.mxu0 0.0
    %2404 = vmatpush2.msra.mxu0 0.0
    %2405 = vmatprep.subr.mxu0 0.0
    %2406 = vmatpush2.msra.mxu0 0.0
    %2407 = vmatprep.subr.mxu0 0.0
    %2408 = vmatpush2.msra.mxu0 0.0
    %2409 = vmatprep.mubr.f32.mxu0 0.0
    %2410 = vmatmul.mubr.f32.gmra.mxu0 %v2343
    %v2411 = vpop.f32.mrf.mxu0
    %v2412 = vadd.f32 %v212, %v2411
    %v2413 = vpop.f32.mrf.mxu0
    %2414 = vdwg.mxu0
    %2415 = vrot.lane.b32.xlu0 %v2338, 64
    %v2416 = vpop.permute.xlu0 %2415
    %vm2418 = vcmask 261127
    %2419 = vst.msk [vmem:[#allocation12 - $0x7] sm:$0x80] %vm2418, %v2416
    %v2420 = vsel %vm221, %v2228, 0
    %2422 = vmatprep.subr.mxu0 0.0
    %2423 = vmatpush1.msra.mxu0 0.0
    %2424 = vmatprep.subr.mxu0 0.0
    %2425 = vmatpush1.msra.mxu0 0.0
    %2426 = vmatprep.subr.mxu0 0.0
    %2427 = vmatpush1.msra.mxu0 0.0
    %2428 = vmatprep.subr.mxu0 0.0
    %2429 = vmatpush1.msra.mxu0 0.0
    %2430 = vmatprep.subr.mxu0 0.0
    %2431 = vmatpush1.msra.mxu0 0.0
    %2432 = vmatprep.subr.mxu0 0.0
    %2433 = vmatpush1.msra.mxu0 0.0
    %2434 = vmatprep.subr.mxu0 0.0
    %2435 = vmatpush1.msra.mxu0 0.0
    %2436 = vmatprep.subr.mxu0 0.0
    %2437 = vmatpush1.msra.mxu0 0.0
    %2438 = vmatprep.subr.mxu0 0.0
    %2439 = vmatpush1.msra.mxu0 0.0
    %2440 = vmatprep.subr.mxu0 0.0
    %2441 = vmatpush1.msra.mxu0 0.0
    %2442 = vmatprep.subr.mxu0 0.0
    %2443 = vmatpush1.msra.mxu0 0.0
    %2444 = vmatprep.subr.mxu0 0.0
    %2445 = vmatpush1.msra.mxu0 0.0
    %2446 = vmatprep.subr.mxu0 0.0
    %2447 = vmatpush1.msra.mxu0 %v210
    %2448 = vmatprep.subr.mxu0 0.0
    %2449 = vmatpush1.msra.mxu0 %v209
    %2450 = vmatprep.subr.mxu0 0.0
    %2451 = vmatpush1.msra.mxu0 %v208
    %2452 = vmatprep.subr.mxu0 0.0
    %2453 = vmatpush1.msra.mxu0 %v207
    %2454 = vmatprep.subr.mxu0 0.0
    %2455 = vmatpush2.msra.mxu0 0.0
    %2456 = vmatprep.subr.mxu0 0.0
    %2457 = vmatpush2.msra.mxu0 0.0
    %2458 = vmatprep.subr.mxu0 0.0
    %2459 = vmatpush2.msra.mxu0 0.0
    %2460 = vmatprep.subr.mxu0 0.0
    %2461 = vmatpush2.msra.mxu0 0.0
    %2462 = vmatprep.subr.mxu0 0.0
    %2463 = vmatpush2.msra.mxu0 0.0
    %2464 = vmatprep.subr.mxu0 0.0
    %2465 = vmatpush2.msra.mxu0 0.0
    %2466 = vmatprep.subr.mxu0 0.0
    %2467 = vmatpush2.msra.mxu0 0.0
    %2468 = vmatprep.subr.mxu0 0.0
    %2469 = vmatpush2.msra.mxu0 0.0
    %2470 = vmatprep.subr.mxu0 0.0
    %2471 = vmatpush2.msra.mxu0 0.0
    %2472 = vmatprep.subr.mxu0 0.0
    %2473 = vmatpush2.msra.mxu0 0.0
    %2474 = vmatprep.subr.mxu0 0.0
    %2475 = vmatpush2.msra.mxu0 0.0
    %2476 = vmatprep.subr.mxu0 0.0
    %2477 = vmatpush2.msra.mxu0 0.0
    %2478 = vmatprep.subr.mxu0 0.0
    %2479 = vmatpush2.msra.mxu0 0.0
    %2480 = vmatprep.subr.mxu0 0.0
    %2481 = vmatpush2.msra.mxu0 0.0
    %2482 = vmatprep.subr.mxu0 0.0
    %2483 = vmatpush2.msra.mxu0 0.0
    %2484 = vmatprep.subr.mxu0 0.0
    %2485 = vmatpush2.msra.mxu0 0.0
    %2486 = vmatprep.mubr.f32.mxu0 0.0
    %2487 = vmatmul.mubr.f32.gmra.mxu0 %v2420
    %v2488 = vpop.f32.mrf.mxu0
    %v2489 = vadd.f32 0.0, %v2488
    %v2490 = vpop.f32.mrf.mxu0
    %2491 = vdwg.mxu0
    %v2492 = vadd.f32 %v2121, %v2489
    %v2493 = vxor.u32 %v2492, 2147483648
    %v2494 = vmul.f32 %v2493, 1.442695
    %v2495 = vpow.pop %v2494
    %v2496 = vadd.f32 %v2495, 1.0
    %v2497 = vrcp.pop %v2496
    %v2498 = vmul.f32 1.0, %v2497
    %v2499 = vadd.f32 %v2489, %v214
    %2501 = vrot.lane.b32.xlu0 %v2499, 64
    %v2502 = vpop.permute.xlu0 %2501
    %v2504 = vmul.f32 %v2498, %v2502
    %2506 = vrot.lane.b32.xlu0 %v2504, 64
    %v2507 = vpop.permute.xlu0 %2506
    %v2509 = vadd.f32 %v2121, %v2507
    %v2510 = vtanh.pop %v2509
    %v2511 = vsub.f32 %v2225, %v2510
    %2513 = vrot.lane.b32.xlu0 %v2511, 96
    %v2514 = vpop.permute.xlu0 %2513
    %v2516 = vmul.f32 %v2498, %v2514
    %2518 = vrot.lane.b32.xlu0 %v2516, 32
    %v2519 = vpop.permute.xlu0 %2518
    %v2521 = vadd.f32 %v2510, %v2519
    %2523 = vrot.lane.b32.xlu0 %v2521, 64
    %v2524 = vpop.permute.xlu0 %2523
    %2526 = vst.msk [vmem:[#allocation11 + $0x6] sm:$0x1] %vm774, %v2524
    %v2527 = vsel %vm221, %v2524, 0
    %2529 = vmatprep.subr.mxu0 0.0
    %2530 = vmatpush1.msra.mxu0 0.0
    %2531 = vmatprep.subr.mxu0 0.0
    %2532 = vmatpush1.msra.mxu0 0.0
    %2533 = vmatprep.subr.mxu0 0.0
    %2534 = vmatpush1.msra.mxu0 0.0
    %2535 = vmatprep.subr.mxu0 0.0
    %2536 = vmatpush1.msra.mxu0 0.0
    %2537 = vmatprep.subr.mxu0 0.0
    %2538 = vmatpush1.msra.mxu0 0.0
    %2539 = vmatprep.subr.mxu0 0.0
    %2540 = vmatpush1.msra.mxu0 0.0
    %2541 = vmatprep.subr.mxu0 0.0
    %2542 = vmatpush1.msra.mxu0 0.0
    %2543 = vmatprep.subr.mxu0 0.0
    %2544 = vmatpush1.msra.mxu0 0.0
    %2545 = vmatprep.subr.mxu0 0.0
    %2546 = vmatpush1.msra.mxu0 0.0
    %2547 = vmatprep.subr.mxu0 0.0
    %2548 = vmatpush1.msra.mxu0 0.0
    %2549 = vmatprep.subr.mxu0 0.0
    %2550 = vmatpush1.msra.mxu0 0.0
    %2551 = vmatprep.subr.mxu0 0.0
    %2552 = vmatpush1.msra.mxu0 0.0
    %2553 = vmatprep.subr.mxu0 0.0
    %2554 = vmatpush1.msra.mxu0 %v210
    %2555 = vmatprep.subr.mxu0 0.0
    %2556 = vmatpush1.msra.mxu0 %v209
    %2557 = vmatprep.subr.mxu0 0.0
    %2558 = vmatpush1.msra.mxu0 %v208
    %2559 = vmatprep.subr.mxu0 0.0
    %2560 = vmatpush1.msra.mxu0 %v207
    %2561 = vmatprep.subr.mxu0 0.0
    %2562 = vmatpush2.msra.mxu0 0.0
    %2563 = vmatprep.subr.mxu0 0.0
    %2564 = vmatpush2.msra.mxu0 0.0
    %2565 = vmatprep.subr.mxu0 0.0
    %2566 = vmatpush2.msra.mxu0 0.0
    %2567 = vmatprep.subr.mxu0 0.0
    %2568 = vmatpush2.msra.mxu0 0.0
    %2569 = vmatprep.subr.mxu0 0.0
    %2570 = vmatpush2.msra.mxu0 0.0
    %2571 = vmatprep.subr.mxu0 0.0
    %2572 = vmatpush2.msra.mxu0 0.0
    %2573 = vmatprep.subr.mxu0 0.0
    %2574 = vmatpush2.msra.mxu0 0.0
    %2575 = vmatprep.subr.mxu0 0.0
    %2576 = vmatpush2.msra.mxu0 0.0
    %2577 = vmatprep.subr.mxu0 0.0
    %2578 = vmatpush2.msra.mxu0 0.0
    %2579 = vmatprep.subr.mxu0 0.0
    %2580 = vmatpush2.msra.mxu0 0.0
    %2581 = vmatprep.subr.mxu0 0.0
    %2582 = vmatpush2.msra.mxu0 0.0
    %2583 = vmatprep.subr.mxu0 0.0
    %2584 = vmatpush2.msra.mxu0 0.0
    %2585 = vmatprep.subr.mxu0 0.0
    %2586 = vmatpush2.msra.mxu0 0.0
    %2587 = vmatprep.subr.mxu0 0.0
    %2588 = vmatpush2.msra.mxu0 0.0
    %2589 = vmatprep.subr.mxu0 0.0
    %2590 = vmatpush2.msra.mxu0 0.0
    %2591 = vmatprep.subr.mxu0 0.0
    %2592 = vmatpush2.msra.mxu0 0.0
    %2593 = vmatprep.mubr.f32.mxu0 0.0
    %2594 = vmatmul.mubr.f32.gmra.mxu0 %v2527
    %v2595 = vpop.f32.mrf.mxu0
    %v2596 = vadd.f32 0.0, %v2595
    %v2597 = vpop.f32.mrf.mxu0
    %2598 = vdwg.mxu0
    %v2599 = vadd.f32 %v2412, %v2596
    %v2600 = vxor.u32 %v2599, 2147483648
    %v2601 = vmul.f32 %v2600, 1.442695
    %v2602 = vpow.pop %v2601
    %v2603 = vadd.f32 %v2602, 1.0
    %v2604 = vrcp.pop %v2603
    %v2605 = vmul.f32 1.0, %v2604
    %v2606 = vadd.f32 %v2596, %v214
    %2608 = vrot.lane.b32.xlu0 %v2606, 64
    %v2609 = vpop.permute.xlu0 %2608
    %v2611 = vmul.f32 %v2605, %v2609
    %2613 = vrot.lane.b32.xlu0 %v2611, 64
    %v2614 = vpop.permute.xlu0 %2613
    %v2616 = vadd.f32 %v2412, %v2614
    %v2617 = vtanh.pop %v2616
    %v2618 = vsub.f32 %v2521, %v2617
    %2620 = vrot.lane.b32.xlu0 %v2618, 96
    %v2621 = vpop.permute.xlu0 %2620
    %v2623 = vmul.f32 %v2605, %v2621
    %2625 = vrot.lane.b32.xlu0 %v2623, 32
    %v2626 = vpop.permute.xlu0 %2625
    %v2628 = vadd.f32 %v2617, %v2626
    %2630 = vrot.lane.b32.xlu0 %v2628, 64
    %v2631 = vpop.permute.xlu0 %2630
    %2633 = vst.msk [vmem:[#allocation11 + $0x7] sm:$0x1] %vm774, %v2631
    %2634 = vst.msk [vmem:[#allocation12 + $0x1] sm:$0x1] %vm774, %v2631
    // Predicated region
    $region66: #{tpu_custom_call.1} parent=1 // pred_check
      _
    $region67: #{tpu_custom_call.1} parent=1 // pred_check_branch
      %2636 = sbr.rel (0) target = $region69
    $region68: #{tpu_custom_call.1} parent=1 // pred_region
      %s2638 = ssub.s32 128, 128
      %2639 = vsyncadd [#allocation4], %s2638
      %s2641 = sshll.u32 [#allocation11], 4
      %s2642 = int_to_ptr.vmem [resolvable:$true] %s2641
      %2644 = dma.vmem_to_hbm [thread:$0]  %s2642, 128, %s11, [#allocation4]
    $region69: #{tpu_custom_call.1} parent=1 // pred_fallthru
      _
    // Predicated region
    $region70: #{tpu_custom_call.1} parent=1 // pred_check
      _
    $region71: #{tpu_custom_call.1} parent=1 // pred_check_branch
      %2646 = sbr.rel (0) target = $region73
    $region72: #{tpu_custom_call.1} parent=1 // pred_region
      %s2648 = ssub.s32 32, 32
      %2649 = vsyncadd [#allocation13], %s2648
      %s2651 = sshll.u32 [#allocation12], 4
      %s2652 = int_to_ptr.vmem [resolvable:$true] %s2651
      %2654 = dma.vmem_to_hbm [thread:$0]  %s2652, 32, %s12, [#allocation13]
    $region73: #{tpu_custom_call.1} parent=1 // pred_fallthru
      _
    // Predicated region
    $region74: #{tpu_custom_call.1} parent=1 // pred_check
      _
    $region75: #{tpu_custom_call.1} parent=1 // pred_check_branch
      %2656 = sbr.rel (0) target = $region77
    $region76: #{tpu_custom_call.1} parent=1 // pred_region
      %2657 = dma.done [#allocation4], 128
    $region77: #{tpu_custom_call.1} parent=1 // pred_fallthru
      _
    // Predicated region
    $region78: #{tpu_custom_call.1} parent=1 // pred_check
      _
    $region79: #{tpu_custom_call.1} parent=1 // pred_check_branch
      %2659 = sbr.rel (0) target = $region81
    $region80: #{tpu_custom_call.1} parent=1 // pred_region
      %2660 = dma.done [#allocation13], 32
    $region81: #{tpu_custom_call.1} parent=1 // pred_fallthru
      _
    %2661 = vsyncpa [#allocation3], 1
    %2662 = vsyncpa [#allocation6], 1
    %2663 = vsyncpa [#allocation9], 1
    %2664 = vsyncpa [#allocation4], 1
    %2665 = vsyncpa [#allocation13], 1

</llo_original>
